<compile_context>
chip_gen: v6e
topology: v6e:2x2x1
jax: 0.10.0
libtpu: 0.0.40
codegen_flags: <defaults>
</compile_context>

<pallas_src>
import functools

import jax
import jax.numpy as jnp
from jax.experimental import pallas as pl
from jax.experimental.pallas import tpu as pltpu


# ----------------------------------------------------------------------------
# small helpers
# ----------------------------------------------------------------------------
def _round_up(x, m):
    return ((x + m - 1) // m) * m


def _pick_tile(total, max_tile, unit=128):
    """Largest multiple of `unit` <= max_tile that evenly divides `total`."""
    q = total // unit
    best = 1
    for d in range(1, min(q, max_tile // unit) + 1):
        if q % d == 0:
            best = d
    return best * unit


def _vmem_limit_bytes(tm, tn, tk, out_itemsize):
    need = (2 * (tm * tk + tk * tn) * 2      # double-buffered bf16 x / w tiles
            + 2 * tn * 4                     # bias tile
            + 2 * tm * tn * out_itemsize     # double-buffered output tile
            + tm * tn * 4)                   # f32 accumulator scratch
    return int(min(max(2 * need, 16 << 20), 64 << 20))


# ----------------------------------------------------------------------------
# Pallas kernels
# ----------------------------------------------------------------------------
def _matmul_bias_act_kernel(x_ref, w_ref, b_ref, o_ref, acc_ref, *, act, k_axis):
    """Tiled o = act(x @ w + b).  K-reduction lives on grid axis `k_axis`."""
    k = pl.program_id(k_axis)

    @pl.when(k == 0)
    def _():
        acc_ref[...] = jnp.zeros_like(acc_ref)

    acc_ref[...] += jnp.dot(x_ref[...], w_ref[...],
                            preferred_element_type=jnp.float32)

    @pl.when(k == pl.num_programs(k_axis) - 1)
    def _():
        y = acc_ref[...] + b_ref[...]          # f32 epilogue (v5e friendly)
        if act == "relu":
            y = jnp.maximum(y, 0.0)
        elif act == "sigmoid":
            y = jax.nn.sigmoid(y)
        o_ref[...] = y.astype(o_ref.dtype)


def _bottleneck_kernel(h_ref, w_ref, b_ref, eps_ref, stats_ref, z_ref, acc_ref):
    """Fused [mu | logvar] matmul + reparameterization epilogue.

    w is the column-concatenation of the (padded) fc1 and fc2 weights, so
    stats = h @ w + b holds mu in lanes [0:half) and logvar in [half:2*half).
    z = mu + exp(0.5 * logvar) * eps.  Grid = (K tiles,).
    """
    k = pl.program_id(0)

    @pl.when(k == 0)
    def _():
        acc_ref[...] = jnp.zeros_like(acc_ref)

    acc_ref[...] += jnp.dot(h_ref[...], w_ref[...],
                            preferred_element_type=jnp.float32)

    @pl.when(k == pl.num_programs(0) - 1)
    def _():
        stats = acc_ref[...] + b_ref[...]
        stats_ref[...] = stats
        half = stats.shape[1] // 2             # 128-lane aligned split
        mu = stats[:, :half]
        logvar = stats[:, half:]
        z_ref[...] = mu + jnp.exp(0.5 * logvar) * eps_ref[...]


# ----------------------------------------------------------------------------
# Pallas wrappers
# ----------------------------------------------------------------------------
def pallas_linear(x, w_p, b_p, n_out, act="none", out_dtype=jnp.bfloat16):
    """act(x @ w + b) with a (M, N, K)-tiled Pallas matmul.

    x: (M, K) any float dtype.  w_p: (Kp, Np) bf16 pre-padded at init.
    b_p: (1, Np) f32 pre-padded.  Returns (M, n_out) in out_dtype.
    """
    M, K = x.shape
    Kp, Np = w_p.shape

    tm = min(256, _round_up(M, 8))
    Mp = _round_up(M, tm)
    tk = _pick_tile(Kp, 512)
    tn = _pick_tile(Np, 256)

    xp = x.astype(jnp.bfloat16)
    if (Mp, Kp) != (M, K):
        xp = jnp.pad(xp, ((0, Mp - M), (0, Kp - K)))

    out = pl.pallas_call(
        functools.partial(_matmul_bias_act_kernel, act=act, k_axis=2),
        out_shape=jax.ShapeDtypeStruct((Mp, Np), out_dtype),
        grid_spec=pltpu.PrefetchScalarGridSpec(
            num_scalar_prefetch=0,
            grid=(Mp // tm, Np // tn, Kp // tk),
            in_specs=[
                pl.BlockSpec((tm, tk), lambda i, j, k: (i, k)),
                pl.BlockSpec((tk, tn), lambda i, j, k: (k, j)),
                pl.BlockSpec((1, tn), lambda i, j, k: (0, j)),
            ],
            out_specs=pl.BlockSpec((tm, tn), lambda i, j, k: (i, j)),
            scratch_shapes=[pltpu.VMEM((tm, tn), jnp.float32)],
        ),
        compiler_params=pltpu.CompilerParams(
            dimension_semantics=("parallel", "parallel", "arbitrary"),
            vmem_limit_bytes=_vmem_limit_bytes(tm, tn, tk,
                                               jnp.dtype(out_dtype).itemsize),
        ),
    )(xp, w_p, b_p)
    return out[:M, :n_out]


def pallas_grouped_linear(x, w_p, b_p, n_out, act="none", out_dtype=jnp.bfloat16):
    """act(x[g] @ w[g] + b) for all groups g in ONE pallas_call.

    x: (G, M, K).  w_p: (G, Kp, Np) bf16 pre-padded.  b_p: (1, Np) f32 shared.
    Returns (G, M, n_out).  Used for the 4-phase conv-transpose decomposition.
    """
    G, M, K = x.shape
    _, Kp, Np = w_p.shape

    tm = min(256, _round_up(M, 8))
    Mp = _round_up(M, tm)
    tk = _pick_tile(Kp, 512)
    tn = _pick_tile(Np, 256)

    xp = x.astype(jnp.bfloat16)
    if (Mp, Kp) != (M, K):
        xp = jnp.pad(xp, ((0, 0), (0, Mp - M), (0, Kp - K)))

    out = pl.pallas_call(
        functools.partial(_matmul_bias_act_kernel, act=act, k_axis=3),
        out_shape=jax.ShapeDtypeStruct((G, Mp, Np), out_dtype),
        grid_spec=pltpu.PrefetchScalarGridSpec(
            num_scalar_prefetch=0,
            grid=(G, Mp // tm, Np // tn, Kp // tk),
            in_specs=[
                pl.BlockSpec((None, tm, tk), lambda g, i, j, k: (g, i, k)),
                pl.BlockSpec((None, tk, tn), lambda g, i, j, k: (g, k, j)),
                pl.BlockSpec((1, tn), lambda g, i, j, k: (0, j)),
            ],
            out_specs=pl.BlockSpec((None, tm, tn), lambda g, i, j, k: (g, i, j)),
            scratch_shapes=[pltpu.VMEM((tm, tn), jnp.float32)],
        ),
        compiler_params=pltpu.CompilerParams(
            dimension_semantics=("parallel", "parallel", "parallel", "arbitrary"),
            vmem_limit_bytes=_vmem_limit_bytes(tm, tn, tk,
                                               jnp.dtype(out_dtype).itemsize),
        ),
    )(xp, w_p, b_p)
    return out[:, :M, :n_out]


def pallas_bottleneck(h, w_p, b_p, eps, z_dim):
    """Fused fc1/fc2 + reparameterization.  Returns (z, mu, logvar) in f32."""
    B, K = h.shape
    Kp, Np = w_p.shape
    half = Np // 2
    Bp = _round_up(B, 8)
    tk = _pick_tile(Kp, 512)

    hp = jnp.pad(h.astype(jnp.bfloat16), ((0, Bp - B), (0, Kp - K)))
    eps_p = jnp.pad(eps.astype(jnp.float32), ((0, Bp - B), (0, half - z_dim)))

    stats, zz = pl.pallas_call(
        _bottleneck_kernel,
        out_shape=(jax.ShapeDtypeStruct((Bp, Np), jnp.float32),
                   jax.ShapeDtypeStruct((Bp, half), jnp.float32)),
        grid_spec=pltpu.PrefetchScalarGridSpec(
            num_scalar_prefetch=0,
            grid=(Kp // tk,),
            in_specs=[
                pl.BlockSpec((Bp, tk), lambda k: (0, k)),
                pl.BlockSpec((tk, Np), lambda k: (k, 0)),
                pl.BlockSpec((1, Np), lambda k: (0, 0)),
                pl.BlockSpec((Bp, half), lambda k: (0, 0)),
            ],
            out_specs=(pl.BlockSpec((Bp, Np), lambda k: (0, 0)),
                       pl.BlockSpec((Bp, half), lambda k: (0, 0))),
            scratch_shapes=[pltpu.VMEM((Bp, Np), jnp.float32)],
        ),
        compiler_params=pltpu.CompilerParams(
            dimension_semantics=("arbitrary",),
            vmem_limit_bytes=_vmem_limit_bytes(Bp, Np, tk, 4),
        ),
    )(hp, w_p, b_p, eps_p)

    mu = stats[:B, :z_dim]
    logvar = stats[:B, half:half + z_dim]
    z = zz[:B, :z_dim]
    return z, mu, logvar


# ----------------------------------------------------------------------------
# im2col (XLA glue, NHWC) and conv wrappers
# ----------------------------------------------------------------------------
def _im2col_nhwc(x, kh, kw, stride, pad):
    """x: (B, H, W, C) -> patches (B*Ho*Wo, kh*kw*C), flatten order (dy, dx, c)."""
    B, H, W, C = x.shape
    (pad_t, pad_b), (pad_l, pad_r) = pad
    xp = jnp.pad(x, ((0, 0), (pad_t, pad_b), (pad_l, pad_r), (0, 0)))
    Ho = (H + pad_t + pad_b - kh) // stride + 1
    Wo = (W + pad_l + pad_r - kw) // stride + 1
    cols = []
    for dy in range(kh):
        for dx in range(kw):
            cols.append(xp[:, dy:dy + stride * Ho:stride,
                           dx:dx + stride * Wo:stride, :])
    p = jnp.stack(cols, axis=3)                 # (B, Ho, Wo, kh*kw, C)
    return p.reshape(B * Ho * Wo, kh * kw * C), Ho, Wo


def conv2d_nhwc(x, w_p, b_p, n_out, act):
    """PyTorch Conv2d(k=4, stride=2, pad=1) on NHWC input, bf16 output."""
    B = x.shape[0]
    patches, Ho, Wo = _im2col_nhwc(x, 4, 4, 2, ((1, 1), (1, 1)))
    y = pallas_linear(patches, w_p, b_p, n_out, act=act, out_dtype=jnp.bfloat16)
    return y.reshape(B, Ho, Wo, n_out)


def conv_transpose2d_nhwc(x, params, name, n_out, act, out_dtype=jnp.bfloat16):
    """PyTorch ConvTranspose2d(k=4, stride=2, pad=1) via 4-phase decomposition.

    Each output-pixel parity class (ry, rx) is a stride-1 conv with a 2x2
    sub-kernel on the un-dilated input.  All 4 phases are computed in a single
    grouped Pallas matmul and interleaved with a scatter-free reshape.
    """
    B, H, W, C = x.shape
    xpad = jnp.pad(x, ((0, 0), (1, 1), (1, 1), (0, 0)))

    phase_patches = []
    for ry in range(2):
        for rx in range(2):
            taps = []
            for dy in range(2):
                for dx in range(2):
                    taps.append(xpad[:, ry + dy:ry + dy + H,
                                     rx + dx:rx + dx + W, :])
            p = jnp.stack(taps, axis=3)            # (B, H, W, 4, C)
            phase_patches.append(p.reshape(B * H * W, 4 * C))
    patches = jnp.stack(phase_patches, axis=0)     # (4, B*H*W, 4*C)

    y = pallas_grouped_linear(patches, params[f"{name}_w"], params[f"{name}_b"],
                              n_out, act=act, out_dtype=out_dtype)
    # interleave: out[b, 2i+ry, 2j+rx, :] = y[(ry,rx), b*H*W + i*W + j, :]
    y = y.reshape(2, 2, B, H, W, n_out)
    y = jnp.transpose(y, (2, 3, 0, 4, 1, 5))       # (B, H, 2, W, 2, C)
    return y.reshape(B, 2 * H, 2 * W, n_out)


# ----------------------------------------------------------------------------
# parameter init (PyTorch layout) and one-time prep (pad / permute / phase-split)
# ----------------------------------------------------------------------------
def init_raw_params(key, im_c, im_h, im_w, z_dim):
    h_dim = 256 * (im_h // 16) * (im_w // 16)
    shapes = {
        "enc1_w": (32, im_c, 4, 4), "enc1_b": (32,),
        "enc2_w": (64, 32, 4, 4), "enc2_b": (64,),
        "enc3_w": (128, 64, 4, 4), "enc3_b": (128,),
        "enc4_w": (256, 128, 4, 4), "enc4_b": (256,),
        "fc1_w": (z_dim, h_dim), "fc1_b": (z_dim,),
        "fc2_w": (z_dim, h_dim), "fc2_b": (z_dim,),
        "fc3_w": (h_dim, z_dim), "fc3_b": (h_dim,),
        "dec1_w": (256, 128, 4, 4), "dec1_b": (128,),
        "dec2_w": (128, 64, 4, 4), "dec2_b": (64,),
        "dec3_w": (64, 32, 4, 4), "dec3_b": (32,),
        "dec4_w": (32, im_c, 4, 4), "dec4_b": (im_c,),
    }
    keys = jax.random.split(key, len(shapes))
    raw = {name: 0.05 * jax.random.normal(k, shp, dtype=jnp.float32)
           for k, (name, shp) in zip(keys, sorted(shapes.items()))}
    return raw, h_dim


def prepare_params(raw, im_c, im_h, im_w, z_dim):
    """One-time transform of PyTorch-layout weights into lane-aligned, bf16,
    NHWC-ordered matmul operands (done outside the jitted forward)."""
    Hc, Wc = im_h // 16, im_w // 16
    C_em = 256
    h_dim = C_em * Hc * Wc
    p = {}

    def pad_w(wm):
        K, N = wm.shape
        return jnp.pad(wm.astype(jnp.bfloat16),
                       ((0, _round_up(K, 128) - K), (0, _round_up(N, 128) - N)))

    def pad_b(b):
        N = b.shape[0]
        return jnp.pad(b.astype(jnp.float32),
                       (0, _round_up(N, 128) - N)).reshape(1, -1)

    # --- encoder convs: (Cout, Cin, 4, 4) -> (16*Cin, Cout), (dy,dx,c) order ---
    for i in range(1, 5):
        w = raw[f"enc{i}_w"]
        wm = w.transpose(2, 3, 1, 0).reshape(-1, w.shape[0])
        p[f"enc{i}_w"] = pad_w(wm)
        p[f"enc{i}_b"] = pad_b(raw[f"enc{i}_b"])

    # --- fused fc1/fc2 (NCHW-flatten -> NHWC-flatten row permutation) ---
    def fc_enc_w(w):   # (z_dim, h_dim[c,h,w]) -> (h_dim[h,w,c], z_dim)
        return w.reshape(z_dim, C_em, Hc, Wc).transpose(2, 3, 1, 0).reshape(h_dim, z_dim)

    half = _round_up(z_dim, 128)
    Kp = _round_up(h_dim, 128)
    wz = jnp.zeros((Kp, 2 * half), jnp.bfloat16)
    wz = wz.at[:h_dim, :z_dim].set(fc_enc_w(raw["fc1_w"]).astype(jnp.bfloat16))
    wz = wz.at[:h_dim, half:half + z_dim].set(fc_enc_w(raw["fc2_w"]).astype(jnp.bfloat16))
    bz = jnp.zeros((1, 2 * half), jnp.float32)
    bz = bz.at[0, :z_dim].set(raw["fc1_b"])
    bz = bz.at[0, half:half + z_dim].set(raw["fc2_b"])
    p["fc12_w"], p["fc12_b"] = wz, bz

    # --- fc3: output columns permuted from (c,h,w) to (h,w,c) ---
    w3 = raw["fc3_w"].T.reshape(z_dim, C_em, Hc, Wc).transpose(0, 2, 3, 1).reshape(z_dim, h_dim)
    b3 = raw["fc3_b"].reshape(C_em, Hc, Wc).transpose(1, 2, 0).reshape(h_dim)
    p["fc3_w"] = pad_w(w3)
    p["fc3_b"] = pad_b(b3)

    # --- decoder transposed convs: four 2x2 phase sub-kernels, stacked ---
    for i in range(1, 5):
        wt = raw[f"dec{i}_w"]                    # (Cin, Cout, 4, 4)
        cin, cout = wt.shape[0], wt.shape[1]
        phase_ws = []
        for ry in range(2):
            kys = jnp.array((3, 1) if ry == 0 else (2, 0))
            for rx in range(2):
                kxs = jnp.array((3, 1) if rx == 0 else (2, 0))
                sub = wt[:, :, kys, :][:, :, :, kxs]         # (Cin, Cout, 2, 2)
                wm = sub.transpose(2, 3, 0, 1).reshape(4 * cin, cout)
                phase_ws.append(pad_w(wm))
        p[f"dec{i}_w"] = jnp.stack(phase_ws, axis=0)         # (4, Kp, Np)
        p[f"dec{i}_b"] = pad_b(raw[f"dec{i}_b"])

    return p, (Hc, Wc)


# ----------------------------------------------------------------------------
# VAE forward
# ----------------------------------------------------------------------------
def vae_forward(params, x_nchw, eps, *, z_dim, em_hw):
    B, im_c = x_nchw.shape[0], x_nchw.shape[1]
    Hc, Wc = em_hw

    # boundary: NCHW -> NHWC, bf16 activations
    x = jnp.transpose(x_nchw, (0, 2, 3, 1)).astype(jnp.bfloat16)

    # ---- encoder ----
    h = conv2d_nhwc(x, params["enc1_w"], params["enc1_b"], 32, "relu")
    h = conv2d_nhwc(h, params["enc2_w"], params["enc2_b"], 64, "relu")
    h = conv2d_nhwc(h, params["enc3_w"], params["enc3_b"], 128, "relu")
    h = conv2d_nhwc(h, params["enc4_w"], params["enc4_b"], 256, "relu")
    h_flat = h.reshape(B, -1)                    # NHWC flatten (weights permuted to match)

    # ---- bottleneck (fused fc1/fc2 matmul + reparameterization epilogue) ----
    z, mu, logvar = pallas_bottleneck(h_flat, params["fc12_w"], params["fc12_b"], eps, z_dim)

    # ---- decoder ----
    d = pallas_linear(z, params["fc3_w"], params["fc3_b"], Hc * Wc * 256,
                      act="none", out_dtype=jnp.bfloat16)
    d = d.reshape(B, Hc, Wc, 256)
    d = conv_transpose2d_nhwc(d, params, "dec1", 128, "relu")
    d = conv_transpose2d_nhwc(d, params, "dec2", 64, "relu")
    d = conv_transpose2d_nhwc(d, params, "dec3", 32, "relu")
    recon = conv_transpose2d_nhwc(d, params, "dec4", im_c, "sigmoid",
                                  out_dtype=jnp.float32)
    recon = jnp.transpose(recon, (0, 3, 1, 2))   # NHWC -> NCHW
    return recon, mu, logvar


if __name__ == "__main__":
    B, IM_C, IM_H, IM_W, Z_DIM = 2, 3, 16, 16, 32

    root = jax.random.PRNGKey(0)
    k_params, k_x, k_eps = jax.random.split(root, 3)

    raw, h_dim = init_raw_params(k_params, IM_C, IM_H, IM_W, Z_DIM)
    params, em_hw = prepare_params(raw, IM_C, IM_H, IM_W, Z_DIM)

    x = jax.random.uniform(k_x, (B, IM_C, IM_H, IM_W), dtype=jnp.float32)
    eps = jax.random.normal(k_eps, (B, Z_DIM), dtype=jnp.float32)

    fwd = jax.jit(functools.partial(vae_forward, z_dim=Z_DIM, em_hw=em_hw))
    recon, mu, logvar = fwd(params, x, eps)
    jax.block_until_ready((recon, mu, logvar))

    assert recon.shape == (B, IM_C, IM_H, IM_W), recon.shape
    assert mu.shape == (B, Z_DIM) and logvar.shape == (B, Z_DIM)
    assert bool(jnp.all(jnp.isfinite(recon)))
    assert bool(jnp.all((recon >= 0.0) & (recon <= 1.0)))  # sigmoid output range
    print("KERNEL_OK")
</pallas_src>

<mosaic_0001>
module attributes {stable_mosaic.version = 11 : i64} {
  func.func @_matmul_bias_act_kernel(%arg0: i32, %arg1: i32, %arg2: i32, %arg3: memref<128x128xbf16, #tpu.memory_space<vmem>>, %arg4: memref<128x128xbf16, #tpu.memory_space<vmem>>, %arg5: memref<1x128xf32, #tpu.memory_space<vmem>>, %arg6: memref<128x128xbf16, #tpu.memory_space<vmem>>, %arg7: memref<128x128xf32, #tpu.memory_space<vmem>>) attributes {dimension_semantics = [#tpu.dimension_semantics<parallel>, #tpu.dimension_semantics<parallel>, #tpu.dimension_semantics<arbitrary>], iteration_bounds = array<i64: 1, 1, 1>, scalar_prefetch = 0 : i64, scratch_operands = 1 : i64, tpu.core_type = #tpu.core_type<tc>, window_params = [{transform_indices = @transform_0, window_bounds = array<i64: 128, 128>}, {transform_indices = @transform_1, window_bounds = array<i64: 128, 128>}, {transform_indices = @transform_2, window_bounds = array<i64: 1, 128>}, {transform_indices = @transform_3, window_bounds = array<i64: 128, 128>}]} {
    %c0_i32 = arith.constant 0 : i32
    %0 = arith.cmpi eq, %arg2, %c0_i32 : i32
    %1 = arith.extui %0 : i1 to i32
    %c0_i32_0 = arith.constant 0 : i32
    %2 = arith.cmpi ne, %1, %c0_i32_0 : i32
    scf.if %2 {
      %cst_10 = arith.constant 0.000000e+00 : f32
      %12 = vector.broadcast %cst_10 : f32 to vector<128x128xf32>
      %c0_11 = arith.constant 0 : index
      %c0_12 = arith.constant 0 : index
      %13 = vector.load %arg7[%c0_11, %c0_12] : memref<128x128xf32, #tpu.memory_space<vmem>>, vector<128x128xf32>
      tpu.vector_store %arg7[%c0_11, %c0_12], %12 {strides = array<i32>} : memref<128x128xf32, #tpu.memory_space<vmem>>, vector<128x128xf32>,
    } else {
    }
    %c0 = arith.constant 0 : index
    %c0_1 = arith.constant 0 : index
    %3 = vector.load %arg7[%c0, %c0_1] : memref<128x128xf32, #tpu.memory_space<vmem>>, vector<128x128xf32>
    %c0_2 = arith.constant 0 : index
    %c0_3 = arith.constant 0 : index
    %4 = vector.load %arg3[%c0_2, %c0_3] : memref<128x128xbf16, #tpu.memory_space<vmem>>, vector<128x128xbf16>
    %c0_4 = arith.constant 0 : index
    %c0_5 = arith.constant 0 : index
    %5 = vector.load %arg4[%c0_4, %c0_5] : memref<128x128xbf16, #tpu.memory_space<vmem>>, vector<128x128xbf16>
    %cst = arith.constant dense<0.000000e+00> : vector<128x128xf32>
    %6 = tpu.matmul %4, %5, %cst {dimension_numbers = #tpu.dot_dimension_numbers<[1], [0], [0], [1], [0, 0, 1, 1], [], []>} : vector<128x128xbf16>, vector<128x128xbf16>, vector<128x128xf32> -> vector<128x128xf32>
    %7 = arith.addf %3, %6 : vector<128x128xf32>
    %c0_6 = arith.constant 0 : index
    %c0_7 = arith.constant 0 : index
    %8 = vector.load %arg7[%c0_6, %c0_7] : memref<128x128xf32, #tpu.memory_space<vmem>>, vector<128x128xf32>
    tpu.vector_store %arg7[%c0_6, %c0_7], %7 {strides = array<i32>} : memref<128x128xf32, #tpu.memory_space<vmem>>, vector<128x128xf32>,
    %c0_i32_8 = arith.constant 0 : i32
    %9 = arith.cmpi eq, %arg2, %c0_i32_8 : i32
    %10 = arith.extui %9 : i1 to i32
    %c0_i32_9 = arith.constant 0 : i32
    %11 = arith.cmpi ne, %10, %c0_i32_9 : i32
    scf.if %11 {
      %c0_10 = arith.constant 0 : index
      %c0_11 = arith.constant 0 : index
      %12 = vector.load %arg7[%c0_10, %c0_11] : memref<128x128xf32, #tpu.memory_space<vmem>>, vector<128x128xf32>
      %c0_12 = arith.constant 0 : index
      %c0_13 = arith.constant 0 : index
      %13 = vector.load %arg5[%c0_12, %c0_13] : memref<1x128xf32, #tpu.memory_space<vmem>>, vector<1x128xf32>
      %14 = vector.broadcast %13 : vector<1x128xf32> to vector<128x128xf32>
      %15 = arith.addf %12, %14 : vector<128x128xf32>
      %cst_14 = arith.constant 0.000000e+00 : f32
      %16 = vector.broadcast %cst_14 : f32 to vector<128x128xf32>
      %17 = arith.maximumf %15, %16 : vector<128x128xf32>
      %18 = arith.truncf %17 : vector<128x128xf32> to vector<128x128xbf16>
      %c0_15 = arith.constant 0 : index
      %c0_16 = arith.constant 0 : index
      %19 = vector.load %arg6[%c0_15, %c0_16] : memref<128x128xbf16, #tpu.memory_space<vmem>>, vector<128x128xbf16>
      tpu.vector_store %arg6[%c0_15, %c0_16], %18 {strides = array<i32>} : memref<128x128xbf16, #tpu.memory_space<vmem>>, vector<128x128xbf16>,
    } else {
    }
    return
  }
  func.func @transform_0(%arg0: i32, %arg1: i32, %arg2: i32) -> (i32, i32) {
    %c0_i32 = arith.constant 0 : i32
    return %arg0, %arg2 : i32, i32
  }
  func.func @transform_1(%arg0: i32, %arg1: i32, %arg2: i32) -> (i32, i32) {
    %c0_i32 = arith.constant 0 : i32
    return %arg2, %arg1 : i32, i32
  }
  func.func @transform_2(%arg0: i32, %arg1: i32, %arg2: i32) -> (i32, i32) {
    %c0_i32 = arith.constant 0 : i32
    %c0_i32_0 = arith.constant 0 : i32
    return %c0_i32, %arg1 : i32, i32
  }
  func.func @transform_3(%arg0: i32, %arg1: i32, %arg2: i32) -> (i32, i32) {
    %c0_i32 = arith.constant 0 : i32
    return %arg0, %arg1 : i32, i32
  }
}

module attributes {stable_mosaic.version = 11 : i64} {
  func.func @_matmul_bias_act_kernel(%arg0: i32, %arg1: i32, %arg2: i32, %arg3: memref<32x512xbf16, #tpu.memory_space<vmem>>, %arg4: memref<512x128xbf16, #tpu.memory_space<vmem>>, %arg5: memref<1x128xf32, #tpu.memory_space<vmem>>, %arg6: memref<32x128xbf16, #tpu.memory_space<vmem>>, %arg7: memref<32x128xf32, #tpu.memory_space<vmem>>) attributes {dimension_semantics = [#tpu.dimension_semantics<parallel>, #tpu.dimension_semantics<parallel>, #tpu.dimension_semantics<arbitrary>], iteration_bounds = array<i64: 1, 1, 1>, scalar_prefetch = 0 : i64, scratch_operands = 1 : i64, tpu.core_type = #tpu.core_type<tc>, window_params = [{transform_indices = @transform_0, window_bounds = array<i64: 32, 512>}, {transform_indices = @transform_1, window_bounds = array<i64: 512, 128>}, {transform_indices = @transform_2, window_bounds = array<i64: 1, 128>}, {transform_indices = @transform_3, window_bounds = array<i64: 32, 128>}]} {
    %c0_i32 = arith.constant 0 : i32
    %0 = arith.cmpi eq, %arg2, %c0_i32 : i32
    %1 = arith.extui %0 : i1 to i32
    %c0_i32_0 = arith.constant 0 : i32
    %2 = arith.cmpi ne, %1, %c0_i32_0 : i32
    scf.if %2 {
      %cst_10 = arith.constant 0.000000e+00 : f32
      %12 = vector.broadcast %cst_10 : f32 to vector<32x128xf32>
      %c0_11 = arith.constant 0 : index
      %c0_12 = arith.constant 0 : index
      %13 = vector.load %arg7[%c0_11, %c0_12] : memref<32x128xf32, #tpu.memory_space<vmem>>, vector<32x128xf32>
      tpu.vector_store %arg7[%c0_11, %c0_12], %12 {strides = array<i32>} : memref<32x128xf32, #tpu.memory_space<vmem>>, vector<32x128xf32>,
    } else {
    }
    %c0 = arith.constant 0 : index
    %c0_1 = arith.constant 0 : index
    %3 = vector.load %arg7[%c0, %c0_1] : memref<32x128xf32, #tpu.memory_space<vmem>>, vector<32x128xf32>
    %c0_2 = arith.constant 0 : index
    %c0_3 = arith.constant 0 : index
    %4 = vector.load %arg3[%c0_2, %c0_3] : memref<32x512xbf16, #tpu.memory_space<vmem>>, vector<32x512xbf16>
    %c0_4 = arith.constant 0 : index
    %c0_5 = arith.constant 0 : index
    %5 = vector.load %arg4[%c0_4, %c0_5] : memref<512x128xbf16, #tpu.memory_space<vmem>>, vector<512x128xbf16>
    %cst = arith.constant dense<0.000000e+00> : vector<32x128xf32>
    %6 = tpu.matmul %4, %5, %cst {dimension_numbers = #tpu.dot_dimension_numbers<[1], [0], [0], [1], [0, 0, 1, 1], [], []>} : vector<32x512xbf16>, vector<512x128xbf16>, vector<32x128xf32> -> vector<32x128xf32>
    %7 = arith.addf %3, %6 : vector<32x128xf32>
    %c0_6 = arith.constant 0 : index
    %c0_7 = arith.constant 0 : index
    %8 = vector.load %arg7[%c0_6, %c0_7] : memref<32x128xf32, #tpu.memory_space<vmem>>, vector<32x128xf32>
    tpu.vector_store %arg7[%c0_6, %c0_7], %7 {strides = array<i32>} : memref<32x128xf32, #tpu.memory_space<vmem>>, vector<32x128xf32>,
    %c0_i32_8 = arith.constant 0 : i32
    %9 = arith.cmpi eq, %arg2, %c0_i32_8 : i32
    %10 = arith.extui %9 : i1 to i32
    %c0_i32_9 = arith.constant 0 : i32
    %11 = arith.cmpi ne, %10, %c0_i32_9 : i32
    scf.if %11 {
      %c0_10 = arith.constant 0 : index
      %c0_11 = arith.constant 0 : index
      %12 = vector.load %arg7[%c0_10, %c0_11] : memref<32x128xf32, #tpu.memory_space<vmem>>, vector<32x128xf32>
      %c0_12 = arith.constant 0 : index
      %c0_13 = arith.constant 0 : index
      %13 = vector.load %arg5[%c0_12, %c0_13] : memref<1x128xf32, #tpu.memory_space<vmem>>, vector<1x128xf32>
      %14 = vector.broadcast %13 : vector<1x128xf32> to vector<32x128xf32>
      %15 = arith.addf %12, %14 : vector<32x128xf32>
      %cst_14 = arith.constant 0.000000e+00 : f32
      %16 = vector.broadcast %cst_14 : f32 to vector<32x128xf32>
      %17 = arith.maximumf %15, %16 : vector<32x128xf32>
      %18 = arith.truncf %17 : vector<32x128xf32> to vector<32x128xbf16>
      %c0_15 = arith.constant 0 : index
      %c0_16 = arith.constant 0 : index
      %19 = vector.load %arg6[%c0_15, %c0_16] : memref<32x128xbf16, #tpu.memory_space<vmem>>, vector<32x128xbf16>
      tpu.vector_store %arg6[%c0_15, %c0_16], %18 {strides = array<i32>} : memref<32x128xbf16, #tpu.memory_space<vmem>>, vector<32x128xbf16>,
    } else {
    }
    return
  }
  func.func @transform_0(%arg0: i32, %arg1: i32, %arg2: i32) -> (i32, i32) {
    %c0_i32 = arith.constant 0 : i32
    return %arg0, %arg2 : i32, i32
  }
  func.func @transform_1(%arg0: i32, %arg1: i32, %arg2: i32) -> (i32, i32) {
    %c0_i32 = arith.constant 0 : i32
    return %arg2, %arg1 : i32, i32
  }
  func.func @transform_2(%arg0: i32, %arg1: i32, %arg2: i32) -> (i32, i32) {
    %c0_i32 = arith.constant 0 : i32
    %c0_i32_0 = arith.constant 0 : i32
    return %c0_i32, %arg1 : i32, i32
  }
  func.func @transform_3(%arg0: i32, %arg1: i32, %arg2: i32) -> (i32, i32) {
    %c0_i32 = arith.constant 0 : i32
    return %arg0, %arg1 : i32, i32
  }
}

module attributes {stable_mosaic.version = 11 : i64} {
  func.func @_matmul_bias_act_kernel(%arg0: i32, %arg1: i32, %arg2: i32, %arg3: memref<8x512xbf16, #tpu.memory_space<vmem>>, %arg4: memref<512x256xbf16, #tpu.memory_space<vmem>>, %arg5: memref<1x256xf32, #tpu.memory_space<vmem>>, %arg6: memref<8x256xbf16, #tpu.memory_space<vmem>>, %arg7: memref<8x256xf32, #tpu.memory_space<vmem>>) attributes {dimension_semantics = [#tpu.dimension_semantics<parallel>, #tpu.dimension_semantics<parallel>, #tpu.dimension_semantics<arbitrary>], iteration_bounds = array<i64: 1, 1, 4>, scalar_prefetch = 0 : i64, scratch_operands = 1 : i64, tpu.core_type = #tpu.core_type<tc>, window_params = [{transform_indices = @transform_0, window_bounds = array<i64: 8, 512>}, {transform_indices = @transform_1, window_bounds = array<i64: 512, 256>}, {transform_indices = @transform_2, window_bounds = array<i64: 1, 256>}, {transform_indices = @transform_3, window_bounds = array<i64: 8, 256>}]} {
    %c0_i32 = arith.constant 0 : i32
    %0 = arith.cmpi eq, %arg2, %c0_i32 : i32
    %1 = arith.extui %0 : i1 to i32
    %c0_i32_0 = arith.constant 0 : i32
    %2 = arith.cmpi ne, %1, %c0_i32_0 : i32
    scf.if %2 {
      %cst_9 = arith.constant 0.000000e+00 : f32
      %12 = vector.broadcast %cst_9 : f32 to vector<8x256xf32>
      %c0_10 = arith.constant 0 : index
      %c0_11 = arith.constant 0 : index
      %13 = vector.load %arg7[%c0_10, %c0_11] : memref<8x256xf32, #tpu.memory_space<vmem>>, vector<8x256xf32>
      tpu.vector_store %arg7[%c0_10, %c0_11], %12 {strides = array<i32>} : memref<8x256xf32, #tpu.memory_space<vmem>>, vector<8x256xf32>,
    } else {
    }
    %c0 = arith.constant 0 : index
    %c0_1 = arith.constant 0 : index
    %3 = vector.load %arg7[%c0, %c0_1] : memref<8x256xf32, #tpu.memory_space<vmem>>, vector<8x256xf32>
    %c0_2 = arith.constant 0 : index
    %c0_3 = arith.constant 0 : index
    %4 = vector.load %arg3[%c0_2, %c0_3] : memref<8x512xbf16, #tpu.memory_space<vmem>>, vector<8x512xbf16>
    %c0_4 = arith.constant 0 : index
    %c0_5 = arith.constant 0 : index
    %5 = vector.load %arg4[%c0_4, %c0_5] : memref<512x256xbf16, #tpu.memory_space<vmem>>, vector<512x256xbf16>
    %cst = arith.constant dense<0.000000e+00> : vector<8x256xf32>
    %6 = tpu.matmul %4, %5, %cst {dimension_numbers = #tpu.dot_dimension_numbers<[1], [0], [0], [1], [0, 0, 1, 1], [], []>} : vector<8x512xbf16>, vector<512x256xbf16>, vector<8x256xf32> -> vector<8x256xf32>
    %7 = arith.addf %3, %6 : vector<8x256xf32>
    %c0_6 = arith.constant 0 : index
    %c0_7 = arith.constant 0 : index
    %8 = vector.load %arg7[%c0_6, %c0_7] : memref<8x256xf32, #tpu.memory_space<vmem>>, vector<8x256xf32>
    tpu.vector_store %arg7[%c0_6, %c0_7], %7 {strides = array<i32>} : memref<8x256xf32, #tpu.memory_space<vmem>>, vector<8x256xf32>,
    %c3_i32 = arith.constant 3 : i32
    %9 = arith.cmpi eq, %arg2, %c3_i32 : i32
    %10 = arith.extui %9 : i1 to i32
    %c0_i32_8 = arith.constant 0 : i32
    %11 = arith.cmpi ne, %10, %c0_i32_8 : i32
    scf.if %11 {
      %c0_9 = arith.constant 0 : index
      %c0_10 = arith.constant 0 : index
      %12 = vector.load %arg7[%c0_9, %c0_10] : memref<8x256xf32, #tpu.memory_space<vmem>>, vector<8x256xf32>
      %c0_11 = arith.constant 0 : index
      %c0_12 = arith.constant 0 : index
      %13 = vector.load %arg5[%c0_11, %c0_12] : memref<1x256xf32, #tpu.memory_space<vmem>>, vector<1x256xf32>
      %14 = vector.broadcast %13 : vector<1x256xf32> to vector<8x256xf32>
      %15 = arith.addf %12, %14 : vector<8x256xf32>
      %cst_13 = arith.constant 0.000000e+00 : f32
      %16 = vector.broadcast %cst_13 : f32 to vector<8x256xf32>
      %17 = arith.maximumf %15, %16 : vector<8x256xf32>
      %18 = arith.truncf %17 : vector<8x256xf32> to vector<8x256xbf16>
      %c0_14 = arith.constant 0 : index
      %c0_15 = arith.constant 0 : index
      %19 = vector.load %arg6[%c0_14, %c0_15] : memref<8x256xbf16, #tpu.memory_space<vmem>>, vector<8x256xbf16>
      tpu.vector_store %arg6[%c0_14, %c0_15], %18 {strides = array<i32>} : memref<8x256xbf16, #tpu.memory_space<vmem>>, vector<8x256xbf16>,
    } else {
    }
    return
  }
  func.func @transform_0(%arg0: i32, %arg1: i32, %arg2: i32) -> (i32, i32) {
    %c0_i32 = arith.constant 0 : i32
    return %arg0, %arg2 : i32, i32
  }
  func.func @transform_1(%arg0: i32, %arg1: i32, %arg2: i32) -> (i32, i32) {
    %c0_i32 = arith.constant 0 : i32
    return %arg2, %arg1 : i32, i32
  }
  func.func @transform_2(%arg0: i32, %arg1: i32, %arg2: i32) -> (i32, i32) {
    %c0_i32 = arith.constant 0 : i32
    %c0_i32_0 = arith.constant 0 : i32
    return %c0_i32, %arg1 : i32, i32
  }
  func.func @transform_3(%arg0: i32, %arg1: i32, %arg2: i32) -> (i32, i32) {
    %c0_i32 = arith.constant 0 : i32
    return %arg0, %arg1 : i32, i32
  }
}

module attributes {stable_mosaic.version = 11 : i64} {
  func.func @_bottleneck_kernel(%arg0: i32, %arg1: memref<8x256xbf16, #tpu.memory_space<vmem>>, %arg2: memref<256x256xbf16, #tpu.memory_space<vmem>>, %arg3: memref<1x256xf32, #tpu.memory_space<vmem>>, %arg4: memref<8x128xf32, #tpu.memory_space<vmem>>, %arg5: memref<8x256xf32, #tpu.memory_space<vmem>>, %arg6: memref<8x128xf32, #tpu.memory_space<vmem>>, %arg7: memref<8x256xf32, #tpu.memory_space<vmem>>) attributes {dimension_semantics = [#tpu.dimension_semantics<arbitrary>], iteration_bounds = array<i64: 1>, scalar_prefetch = 0 : i64, scratch_operands = 1 : i64, tpu.core_type = #tpu.core_type<tc>, window_params = [{transform_indices = @transform_0, window_bounds = array<i64: 8, 256>}, {transform_indices = @transform_1, window_bounds = array<i64: 256, 256>}, {pipeline_mode = #tpu.pipeline_mode<synchronous>, transform_indices = @transform_2, window_bounds = array<i64: 1, 256>}, {pipeline_mode = #tpu.pipeline_mode<synchronous>, transform_indices = @transform_3, window_bounds = array<i64: 8, 128>}, {pipeline_mode = #tpu.pipeline_mode<synchronous>, transform_indices = @transform_4, window_bounds = array<i64: 8, 256>}, {pipeline_mode = #tpu.pipeline_mode<synchronous>, transform_indices = @transform_5, window_bounds = array<i64: 8, 128>}]} {
    %c0_i32 = arith.constant 0 : i32
    %0 = arith.cmpi eq, %arg0, %c0_i32 : i32
    %1 = arith.extui %0 : i1 to i32
    %c0_i32_0 = arith.constant 0 : i32
    %2 = arith.cmpi ne, %1, %c0_i32_0 : i32
    scf.if %2 {
      %cst_10 = arith.constant 0.000000e+00 : f32
      %12 = vector.broadcast %cst_10 : f32 to vector<8x256xf32>
      %c0_11 = arith.constant 0 : index
      %c0_12 = arith.constant 0 : index
      %13 = vector.load %arg7[%c0_11, %c0_12] : memref<8x256xf32, #tpu.memory_space<vmem>>, vector<8x256xf32>
      tpu.vector_store %arg7[%c0_11, %c0_12], %12 {strides = array<i32>} : memref<8x256xf32, #tpu.memory_space<vmem>>, vector<8x256xf32>,
    } else {
    }
    %c0 = arith.constant 0 : index
    %c0_1 = arith.constant 0 : index
    %3 = vector.load %arg7[%c0, %c0_1] : memref<8x256xf32, #tpu.memory_space<vmem>>, vector<8x256xf32>
    %c0_2 = arith.constant 0 : index
    %c0_3 = arith.constant 0 : index
    %4 = vector.load %arg1[%c0_2, %c0_3] : memref<8x256xbf16, #tpu.memory_space<vmem>>, vector<8x256xbf16>
    %c0_4 = arith.constant 0 : index
    %c0_5 = arith.constant 0 : index
    %5 = vector.load %arg2[%c0_4, %c0_5] : memref<256x256xbf16, #tpu.memory_space<vmem>>, vector<256x256xbf16>
    %cst = arith.constant dense<0.000000e+00> : vector<8x256xf32>
    %6 = tpu.matmul %4, %5, %cst {dimension_numbers = #tpu.dot_dimension_numbers<[1], [0], [0], [1], [0, 0, 1, 1], [], []>} : vector<8x256xbf16>, vector<256x256xbf16>, vector<8x256xf32> -> vector<8x256xf32>
    %7 = arith.addf %3, %6 : vector<8x256xf32>
    %c0_6 = arith.constant 0 : index
    %c0_7 = arith.constant 0 : index
    %8 = vector.load %arg7[%c0_6, %c0_7] : memref<8x256xf32, #tpu.memory_space<vmem>>, vector<8x256xf32>
    tpu.vector_store %arg7[%c0_6, %c0_7], %7 {strides = array<i32>} : memref<8x256xf32, #tpu.memory_space<vmem>>, vector<8x256xf32>,
    %c0_i32_8 = arith.constant 0 : i32
    %9 = arith.cmpi eq, %arg0, %c0_i32_8 : i32
    %10 = arith.extui %9 : i1 to i32
    %c0_i32_9 = arith.constant 0 : i32
    %11 = arith.cmpi ne, %10, %c0_i32_9 : i32
    scf.if %11 {
      %c0_10 = arith.constant 0 : index
      %c0_11 = arith.constant 0 : index
      %12 = vector.load %arg7[%c0_10, %c0_11] : memref<8x256xf32, #tpu.memory_space<vmem>>, vector<8x256xf32>
      %c0_12 = arith.constant 0 : index
      %c0_13 = arith.constant 0 : index
      %13 = vector.load %arg3[%c0_12, %c0_13] : memref<1x256xf32, #tpu.memory_space<vmem>>, vector<1x256xf32>
      %14 = vector.broadcast %13 : vector<1x256xf32> to vector<8x256xf32>
      %15 = arith.addf %12, %14 : vector<8x256xf32>
      %c0_14 = arith.constant 0 : index
      %c0_15 = arith.constant 0 : index
      %16 = vector.load %arg5[%c0_14, %c0_15] : memref<8x256xf32, #tpu.memory_space<vmem>>, vector<8x256xf32>
      tpu.vector_store %arg5[%c0_14, %c0_15], %15 {strides = array<i32>} : memref<8x256xf32, #tpu.memory_space<vmem>>, vector<8x256xf32>,
      %17 = vector.extract_strided_slice %15 {offsets = [0, 0], sizes = [8, 128], strides = [1, 1]} : vector<8x256xf32> to vector<8x128xf32>
      %18 = vector.extract_strided_slice %15 {offsets = [0, 128], sizes = [8, 128], strides = [1, 1]} : vector<8x256xf32> to vector<8x128xf32>
      %cst_16 = arith.constant 5.000000e-01 : f32
      %19 = vector.broadcast %cst_16 : f32 to vector<8x128xf32>
      %20 = arith.mulf %19, %18 : vector<8x128xf32>
      %21 = math.exp %20 : vector<8x128xf32>
      %c0_17 = arith.constant 0 : index
      %c0_18 = arith.constant 0 : index
      %22 = vector.load %arg4[%c0_17, %c0_18] : memref<8x128xf32, #tpu.memory_space<vmem>>, vector<8x128xf32>
      %23 = arith.mulf %21, %22 : vector<8x128xf32>
      %24 = arith.addf %17, %23 : vector<8x128xf32>
      %c0_19 = arith.constant 0 : index
      %c0_20 = arith.constant 0 : index
      %25 = vector.load %arg6[%c0_19, %c0_20] : memref<8x128xf32, #tpu.memory_space<vmem>>, vector<8x128xf32>
      tpu.vector_store %arg6[%c0_19, %c0_20], %24 {strides = array<i32>} : memref<8x128xf32, #tpu.memory_space<vmem>>, vector<8x128xf32>,
    } else {
    }
    return
  }
  func.func @transform_0(%arg0: i32) -> (i32, i32) {
    %c0_i32 = arith.constant 0 : i32
    %c0_i32_0 = arith.constant 0 : i32
    return %c0_i32, %arg0 : i32, i32
  }
  func.func @transform_1(%arg0: i32) -> (i32, i32) {
    %c0_i32 = arith.constant 0 : i32
    %c0_i32_0 = arith.constant 0 : i32
    return %arg0, %c0_i32 : i32, i32
  }
  func.func @transform_2(%arg0: i32) -> (i32, i32) {
    %c0_i32 = arith.constant 0 : i32
    %c0_i32_0 = arith.constant 0 : i32
    %c0_i32_1 = arith.constant 0 : i32
    return %c0_i32, %c0_i32_0 : i32, i32
  }
  func.func @transform_3(%arg0: i32) -> (i32, i32) {
    %c0_i32 = arith.constant 0 : i32
    %c0_i32_0 = arith.constant 0 : i32
    %c0_i32_1 = arith.constant 0 : i32
    return %c0_i32, %c0_i32_0 : i32, i32
  }
  func.func @transform_4(%arg0: i32) -> (i32, i32) {
    %c0_i32 = arith.constant 0 : i32
    %c0_i32_0 = arith.constant 0 : i32
    %c0_i32_1 = arith.constant 0 : i32
    return %c0_i32, %c0_i32_0 : i32, i32
  }
  func.func @transform_5(%arg0: i32) -> (i32, i32) {
    %c0_i32 = arith.constant 0 : i32
    %c0_i32_0 = arith.constant 0 : i32
    %c0_i32_1 = arith.constant 0 : i32
    return %c0_i32, %c0_i32_0 : i32, i32
  }
}

module attributes {stable_mosaic.version = 11 : i64} {
  func.func @_matmul_bias_act_kernel(%arg0: i32, %arg1: i32, %arg2: i32, %arg3: memref<8x512xbf16, #tpu.memory_space<vmem>>, %arg4: memref<512x128xbf16, #tpu.memory_space<vmem>>, %arg5: memref<1x128xf32, #tpu.memory_space<vmem>>, %arg6: memref<8x128xbf16, #tpu.memory_space<vmem>>, %arg7: memref<8x128xf32, #tpu.memory_space<vmem>>) attributes {dimension_semantics = [#tpu.dimension_semantics<parallel>, #tpu.dimension_semantics<parallel>, #tpu.dimension_semantics<arbitrary>], iteration_bounds = array<i64: 1, 1, 2>, scalar_prefetch = 0 : i64, scratch_operands = 1 : i64, tpu.core_type = #tpu.core_type<tc>, window_params = [{transform_indices = @transform_0, window_bounds = array<i64: 8, 512>}, {transform_indices = @transform_1, window_bounds = array<i64: 512, 128>}, {transform_indices = @transform_2, window_bounds = array<i64: 1, 128>}, {transform_indices = @transform_3, window_bounds = array<i64: 8, 128>}]} {
    %c0_i32 = arith.constant 0 : i32
    %0 = arith.cmpi eq, %arg2, %c0_i32 : i32
    %1 = arith.extui %0 : i1 to i32
    %c0_i32_0 = arith.constant 0 : i32
    %2 = arith.cmpi ne, %1, %c0_i32_0 : i32
    scf.if %2 {
      %cst_9 = arith.constant 0.000000e+00 : f32
      %12 = vector.broadcast %cst_9 : f32 to vector<8x128xf32>
      %c0_10 = arith.constant 0 : index
      %c0_11 = arith.constant 0 : index
      %13 = vector.load %arg7[%c0_10, %c0_11] : memref<8x128xf32, #tpu.memory_space<vmem>>, vector<8x128xf32>
      tpu.vector_store %arg7[%c0_10, %c0_11], %12 {strides = array<i32>} : memref<8x128xf32, #tpu.memory_space<vmem>>, vector<8x128xf32>,
    } else {
    }
    %c0 = arith.constant 0 : index
    %c0_1 = arith.constant 0 : index
    %3 = vector.load %arg7[%c0, %c0_1] : memref<8x128xf32, #tpu.memory_space<vmem>>, vector<8x128xf32>
    %c0_2 = arith.constant 0 : index
    %c0_3 = arith.constant 0 : index
    %4 = vector.load %arg3[%c0_2, %c0_3] : memref<8x512xbf16, #tpu.memory_space<vmem>>, vector<8x512xbf16>
    %c0_4 = arith.constant 0 : index
    %c0_5 = arith.constant 0 : index
    %5 = vector.load %arg4[%c0_4, %c0_5] : memref<512x128xbf16, #tpu.memory_space<vmem>>, vector<512x128xbf16>
    %cst = arith.constant dense<0.000000e+00> : vector<8x128xf32>
    %6 = tpu.matmul %4, %5, %cst {dimension_numbers = #tpu.dot_dimension_numbers<[1], [0], [0], [1], [0, 0, 1, 1], [], []>} : vector<8x512xbf16>, vector<512x128xbf16>, vector<8x128xf32> -> vector<8x128xf32>
    %7 = arith.addf %3, %6 : vector<8x128xf32>
    %c0_6 = arith.constant 0 : index
    %c0_7 = arith.constant 0 : index
    %8 = vector.load %arg7[%c0_6, %c0_7] : memref<8x128xf32, #tpu.memory_space<vmem>>, vector<8x128xf32>
    tpu.vector_store %arg7[%c0_6, %c0_7], %7 {strides = array<i32>} : memref<8x128xf32, #tpu.memory_space<vmem>>, vector<8x128xf32>,
    %c1_i32 = arith.constant 1 : i32
    %9 = arith.cmpi eq, %arg2, %c1_i32 : i32
    %10 = arith.extui %9 : i1 to i32
    %c0_i32_8 = arith.constant 0 : i32
    %11 = arith.cmpi ne, %10, %c0_i32_8 : i32
    scf.if %11 {
      %c0_9 = arith.constant 0 : index
      %c0_10 = arith.constant 0 : index
      %12 = vector.load %arg7[%c0_9, %c0_10] : memref<8x128xf32, #tpu.memory_space<vmem>>, vector<8x128xf32>
      %c0_11 = arith.constant 0 : index
      %c0_12 = arith.constant 0 : index
      %13 = vector.load %arg5[%c0_11, %c0_12] : memref<1x128xf32, #tpu.memory_space<vmem>>, vector<1x128xf32>
      %14 = vector.broadcast %13 : vector<1x128xf32> to vector<8x128xf32>
      %15 = arith.addf %12, %14 : vector<8x128xf32>
      %cst_13 = arith.constant 0.000000e+00 : f32
      %16 = vector.broadcast %cst_13 : f32 to vector<8x128xf32>
      %17 = arith.maximumf %15, %16 : vector<8x128xf32>
      %18 = arith.truncf %17 : vector<8x128xf32> to vector<8x128xbf16>
      %c0_14 = arith.constant 0 : index
      %c0_15 = arith.constant 0 : index
      %19 = vector.load %arg6[%c0_14, %c0_15] : memref<8x128xbf16, #tpu.memory_space<vmem>>, vector<8x128xbf16>
      tpu.vector_store %arg6[%c0_14, %c0_15], %18 {strides = array<i32>} : memref<8x128xbf16, #tpu.memory_space<vmem>>, vector<8x128xbf16>,
    } else {
    }
    return
  }
  func.func @transform_0(%arg0: i32, %arg1: i32, %arg2: i32) -> (i32, i32) {
    %c0_i32 = arith.constant 0 : i32
    return %arg0, %arg2 : i32, i32
  }
  func.func @transform_1(%arg0: i32, %arg1: i32, %arg2: i32) -> (i32, i32) {
    %c0_i32 = arith.constant 0 : i32
    return %arg2, %arg1 : i32, i32
  }
  func.func @transform_2(%arg0: i32, %arg1: i32, %arg2: i32) -> (i32, i32) {
    %c0_i32 = arith.constant 0 : i32
    %c0_i32_0 = arith.constant 0 : i32
    return %c0_i32, %arg1 : i32, i32
  }
  func.func @transform_3(%arg0: i32, %arg1: i32, %arg2: i32) -> (i32, i32) {
    %c0_i32 = arith.constant 0 : i32
    return %arg0, %arg1 : i32, i32
  }
}

module attributes {stable_mosaic.version = 11 : i64} {
  func.func @_matmul_bias_act_kernel(%arg0: i32, %arg1: i32, %arg2: i32, %arg3: memref<8x128xbf16, #tpu.memory_space<vmem>>, %arg4: memref<128x256xbf16, #tpu.memory_space<vmem>>, %arg5: memref<1x256xf32, #tpu.memory_space<vmem>>, %arg6: memref<8x256xbf16, #tpu.memory_space<vmem>>, %arg7: memref<8x256xf32, #tpu.memory_space<vmem>>) attributes {dimension_semantics = [#tpu.dimension_semantics<parallel>, #tpu.dimension_semantics<parallel>, #tpu.dimension_semantics<arbitrary>], iteration_bounds = array<i64: 1, 1, 1>, scalar_prefetch = 0 : i64, scratch_operands = 1 : i64, tpu.core_type = #tpu.core_type<tc>, window_params = [{transform_indices = @transform_0, window_bounds = array<i64: 8, 128>}, {transform_indices = @transform_1, window_bounds = array<i64: 128, 256>}, {transform_indices = @transform_2, window_bounds = array<i64: 1, 256>}, {transform_indices = @transform_3, window_bounds = array<i64: 8, 256>}]} {
    %c0_i32 = arith.constant 0 : i32
    %0 = arith.cmpi eq, %arg2, %c0_i32 : i32
    %1 = arith.extui %0 : i1 to i32
    %c0_i32_0 = arith.constant 0 : i32
    %2 = arith.cmpi ne, %1, %c0_i32_0 : i32
    scf.if %2 {
      %cst_10 = arith.constant 0.000000e+00 : f32
      %12 = vector.broadcast %cst_10 : f32 to vector<8x256xf32>
      %c0_11 = arith.constant 0 : index
      %c0_12 = arith.constant 0 : index
      %13 = vector.load %arg7[%c0_11, %c0_12] : memref<8x256xf32, #tpu.memory_space<vmem>>, vector<8x256xf32>
      tpu.vector_store %arg7[%c0_11, %c0_12], %12 {strides = array<i32>} : memref<8x256xf32, #tpu.memory_space<vmem>>, vector<8x256xf32>,
    } else {
    }
    %c0 = arith.constant 0 : index
    %c0_1 = arith.constant 0 : index
    %3 = vector.load %arg7[%c0, %c0_1] : memref<8x256xf32, #tpu.memory_space<vmem>>, vector<8x256xf32>
    %c0_2 = arith.constant 0 : index
    %c0_3 = arith.constant 0 : index
    %4 = vector.load %arg3[%c0_2, %c0_3] : memref<8x128xbf16, #tpu.memory_space<vmem>>, vector<8x128xbf16>
    %c0_4 = arith.constant 0 : index
    %c0_5 = arith.constant 0 : index
    %5 = vector.load %arg4[%c0_4, %c0_5] : memref<128x256xbf16, #tpu.memory_space<vmem>>, vector<128x256xbf16>
    %cst = arith.constant dense<0.000000e+00> : vector<8x256xf32>
    %6 = tpu.matmul %4, %5, %cst {dimension_numbers = #tpu.dot_dimension_numbers<[1], [0], [0], [1], [0, 0, 1, 1], [], []>} : vector<8x128xbf16>, vector<128x256xbf16>, vector<8x256xf32> -> vector<8x256xf32>
    %7 = arith.addf %3, %6 : vector<8x256xf32>
    %c0_6 = arith.constant 0 : index
    %c0_7 = arith.constant 0 : index
    %8 = vector.load %arg7[%c0_6, %c0_7] : memref<8x256xf32, #tpu.memory_space<vmem>>, vector<8x256xf32>
    tpu.vector_store %arg7[%c0_6, %c0_7], %7 {strides = array<i32>} : memref<8x256xf32, #tpu.memory_space<vmem>>, vector<8x256xf32>,
    %c0_i32_8 = arith.constant 0 : i32
    %9 = arith.cmpi eq, %arg2, %c0_i32_8 : i32
    %10 = arith.extui %9 : i1 to i32
    %c0_i32_9 = arith.constant 0 : i32
    %11 = arith.cmpi ne, %10, %c0_i32_9 : i32
    scf.if %11 {
      %c0_10 = arith.constant 0 : index
      %c0_11 = arith.constant 0 : index
      %12 = vector.load %arg7[%c0_10, %c0_11] : memref<8x256xf32, #tpu.memory_space<vmem>>, vector<8x256xf32>
      %c0_12 = arith.constant 0 : index
      %c0_13 = arith.constant 0 : index
      %13 = vector.load %arg5[%c0_12, %c0_13] : memref<1x256xf32, #tpu.memory_space<vmem>>, vector<1x256xf32>
      %14 = vector.broadcast %13 : vector<1x256xf32> to vector<8x256xf32>
      %15 = arith.addf %12, %14 : vector<8x256xf32>
      %16 = arith.truncf %15 : vector<8x256xf32> to vector<8x256xbf16>
      %c0_14 = arith.constant 0 : index
      %c0_15 = arith.constant 0 : index
      %17 = vector.load %arg6[%c0_14, %c0_15] : memref<8x256xbf16, #tpu.memory_space<vmem>>, vector<8x256xbf16>
      tpu.vector_store %arg6[%c0_14, %c0_15], %16 {strides = array<i32>} : memref<8x256xbf16, #tpu.memory_space<vmem>>, vector<8x256xbf16>,
    } else {
    }
    return
  }
  func.func @transform_0(%arg0: i32, %arg1: i32, %arg2: i32) -> (i32, i32) {
    %c0_i32 = arith.constant 0 : i32
    return %arg0, %arg2 : i32, i32
  }
  func.func @transform_1(%arg0: i32, %arg1: i32, %arg2: i32) -> (i32, i32) {
    %c0_i32 = arith.constant 0 : i32
    return %arg2, %arg1 : i32, i32
  }
  func.func @transform_2(%arg0: i32, %arg1: i32, %arg2: i32) -> (i32, i32) {
    %c0_i32 = arith.constant 0 : i32
    %c0_i32_0 = arith.constant 0 : i32
    return %c0_i32, %arg1 : i32, i32
  }
  func.func @transform_3(%arg0: i32, %arg1: i32, %arg2: i32) -> (i32, i32) {
    %c0_i32 = arith.constant 0 : i32
    return %arg0, %arg1 : i32, i32
  }
}

module attributes {stable_mosaic.version = 11 : i64} {
  func.func @_matmul_bias_act_kernel(%arg0: i32, %arg1: i32, %arg2: i32, %arg3: i32, %arg4: memref<1x8x512xbf16, #tpu.memory_space<vmem>>, %arg5: memref<1x512x128xbf16, #tpu.memory_space<vmem>>, %arg6: memref<1x128xf32, #tpu.memory_space<vmem>>, %arg7: memref<1x8x128xbf16, #tpu.memory_space<vmem>>, %arg8: memref<8x128xf32, #tpu.memory_space<vmem>>) attributes {dimension_semantics = [#tpu.dimension_semantics<parallel>, #tpu.dimension_semantics<parallel>, #tpu.dimension_semantics<parallel>, #tpu.dimension_semantics<arbitrary>], iteration_bounds = array<i64: 4, 1, 1, 2>, scalar_prefetch = 0 : i64, scratch_operands = 1 : i64, tpu.core_type = #tpu.core_type<tc>, window_params = [{transform_indices = @transform_0, window_bounds = array<i64: 1, 8, 512>}, {transform_indices = @transform_1, window_bounds = array<i64: 1, 512, 128>}, {transform_indices = @transform_2, window_bounds = array<i64: 1, 128>}, {transform_indices = @transform_3, window_bounds = array<i64: 1, 8, 128>}]} {
    %c0_i32 = arith.constant 0 : i32
    %0 = arith.cmpi eq, %arg3, %c0_i32 : i32
    %1 = arith.extui %0 : i1 to i32
    %c0_i32_0 = arith.constant 0 : i32
    %2 = arith.cmpi ne, %1, %c0_i32_0 : i32
    scf.if %2 {
      %cst_11 = arith.constant 0.000000e+00 : f32
      %14 = vector.broadcast %cst_11 : f32 to vector<8x128xf32>
      %c0_12 = arith.constant 0 : index
      %c0_13 = arith.constant 0 : index
      %15 = vector.load %arg8[%c0_12, %c0_13] : memref<8x128xf32, #tpu.memory_space<vmem>>, vector<8x128xf32>
      tpu.vector_store %arg8[%c0_12, %c0_13], %14 {strides = array<i32>} : memref<8x128xf32, #tpu.memory_space<vmem>>, vector<8x128xf32>,
    } else {
    }
    %c0 = arith.constant 0 : index
    %c0_1 = arith.constant 0 : index
    %3 = vector.load %arg8[%c0, %c0_1] : memref<8x128xf32, #tpu.memory_space<vmem>>, vector<8x128xf32>
    %c0_2 = arith.constant 0 : index
    %c0_3 = arith.constant 0 : index
    %c0_4 = arith.constant 0 : index
    %4 = vector.load %arg4[%c0_2, %c0_3, %c0_4] : memref<1x8x512xbf16, #tpu.memory_space<vmem>>, vector<1x8x512xbf16>
    %5 = vector.shape_cast %4 : vector<1x8x512xbf16> to vector<8x512xbf16>
    %c0_5 = arith.constant 0 : index
    %c0_6 = arith.constant 0 : index
    %c0_7 = arith.constant 0 : index
    %6 = vector.load %arg5[%c0_5, %c0_6, %c0_7] : memref<1x512x128xbf16, #tpu.memory_space<vmem>>, vector<1x512x128xbf16>
    %7 = vector.shape_cast %6 : vector<1x512x128xbf16> to vector<512x128xbf16>
    %cst = arith.constant dense<0.000000e+00> : vector<8x128xf32>
    %8 = tpu.matmul %5, %7, %cst {dimension_numbers = #tpu.dot_dimension_numbers<[1], [0], [0], [1], [0, 0, 1, 1], [], []>} : vector<8x512xbf16>, vector<512x128xbf16>, vector<8x128xf32> -> vector<8x128xf32>
    %9 = arith.addf %3, %8 : vector<8x128xf32>
    %c0_8 = arith.constant 0 : index
    %c0_9 = arith.constant 0 : index
    %10 = vector.load %arg8[%c0_8, %c0_9] : memref<8x128xf32, #tpu.memory_space<vmem>>, vector<8x128xf32>
    tpu.vector_store %arg8[%c0_8, %c0_9], %9 {strides = array<i32>} : memref<8x128xf32, #tpu.memory_space<vmem>>, vector<8x128xf32>,
    %c1_i32 = arith.constant 1 : i32
    %11 = arith.cmpi eq, %arg3, %c1_i32 : i32
    %12 = arith.extui %11 : i1 to i32
    %c0_i32_10 = arith.constant 0 : i32
    %13 = arith.cmpi ne, %12, %c0_i32_10 : i32
    scf.if %13 {
      %c0_11 = arith.constant 0 : index
      %c0_12 = arith.constant 0 : index
      %14 = vector.load %arg8[%c0_11, %c0_12] : memref<8x128xf32, #tpu.memory_space<vmem>>, vector<8x128xf32>
      %c0_13 = arith.constant 0 : index
      %c0_14 = arith.constant 0 : index
      %15 = vector.load %arg6[%c0_13, %c0_14] : memref<1x128xf32, #tpu.memory_space<vmem>>, vector<1x128xf32>
      %16 = vector.broadcast %15 : vector<1x128xf32> to vector<8x128xf32>
      %17 = arith.addf %14, %16 : vector<8x128xf32>
      %cst_15 = arith.constant 0.000000e+00 : f32
      %18 = vector.broadcast %cst_15 : f32 to vector<8x128xf32>
      %19 = arith.maximumf %17, %18 : vector<8x128xf32>
      %20 = arith.truncf %19 : vector<8x128xf32> to vector<8x128xbf16>
      %c0_16 = arith.constant 0 : index
      %c0_17 = arith.constant 0 : index
      %c0_18 = arith.constant 0 : index
      %21 = vector.load %arg7[%c0_16, %c0_17, %c0_18] : memref<1x8x128xbf16, #tpu.memory_space<vmem>>, vector<1x8x128xbf16>
      %22 = vector.shape_cast %21 : vector<1x8x128xbf16> to vector<8x128xbf16>
      %23 = vector.shape_cast %20 : vector<8x128xbf16> to vector<1x8x128xbf16>
      tpu.vector_store %arg7[%c0_16, %c0_17, %c0_18], %23 {strides = array<i32>} : memref<1x8x128xbf16, #tpu.memory_space<vmem>>, vector<1x8x128xbf16>,
    } else {
    }
    return
  }
  func.func @transform_0(%arg0: i32, %arg1: i32, %arg2: i32, %arg3: i32) -> (i32, i32, i32) {
    %c0_i32 = arith.constant 0 : i32
    return %arg0, %arg1, %arg3 : i32, i32, i32
  }
  func.func @transform_1(%arg0: i32, %arg1: i32, %arg2: i32, %arg3: i32) -> (i32, i32, i32) {
    %c0_i32 = arith.constant 0 : i32
    return %arg0, %arg3, %arg2 : i32, i32, i32
  }
  func.func @transform_2(%arg0: i32, %arg1: i32, %arg2: i32, %arg3: i32) -> (i32, i32) {
    %c0_i32 = arith.constant 0 : i32
    %c0_i32_0 = arith.constant 0 : i32
    return %c0_i32, %arg2 : i32, i32
  }
  func.func @transform_3(%arg0: i32, %arg1: i32, %arg2: i32, %arg3: i32) -> (i32, i32, i32) {
    %c0_i32 = arith.constant 0 : i32
    return %arg0, %arg1, %arg2 : i32, i32, i32
  }
}

module attributes {stable_mosaic.version = 11 : i64} {
  func.func @_matmul_bias_act_kernel(%arg0: i32, %arg1: i32, %arg2: i32, %arg3: i32, %arg4: memref<1x8x512xbf16, #tpu.memory_space<vmem>>, %arg5: memref<1x512x128xbf16, #tpu.memory_space<vmem>>, %arg6: memref<1x128xf32, #tpu.memory_space<vmem>>, %arg7: memref<1x8x128xbf16, #tpu.memory_space<vmem>>, %arg8: memref<8x128xf32, #tpu.memory_space<vmem>>) attributes {dimension_semantics = [#tpu.dimension_semantics<parallel>, #tpu.dimension_semantics<parallel>, #tpu.dimension_semantics<parallel>, #tpu.dimension_semantics<arbitrary>], iteration_bounds = array<i64: 4, 1, 1, 1>, scalar_prefetch = 0 : i64, scratch_operands = 1 : i64, tpu.core_type = #tpu.core_type<tc>, window_params = [{transform_indices = @transform_0, window_bounds = array<i64: 1, 8, 512>}, {transform_indices = @transform_1, window_bounds = array<i64: 1, 512, 128>}, {transform_indices = @transform_2, window_bounds = array<i64: 1, 128>}, {transform_indices = @transform_3, window_bounds = array<i64: 1, 8, 128>}]} {
    %c0_i32 = arith.constant 0 : i32
    %0 = arith.cmpi eq, %arg3, %c0_i32 : i32
    %1 = arith.extui %0 : i1 to i32
    %c0_i32_0 = arith.constant 0 : i32
    %2 = arith.cmpi ne, %1, %c0_i32_0 : i32
    scf.if %2 {
      %cst_12 = arith.constant 0.000000e+00 : f32
      %14 = vector.broadcast %cst_12 : f32 to vector<8x128xf32>
      %c0_13 = arith.constant 0 : index
      %c0_14 = arith.constant 0 : index
      %15 = vector.load %arg8[%c0_13, %c0_14] : memref<8x128xf32, #tpu.memory_space<vmem>>, vector<8x128xf32>
      tpu.vector_store %arg8[%c0_13, %c0_14], %14 {strides = array<i32>} : memref<8x128xf32, #tpu.memory_space<vmem>>, vector<8x128xf32>,
    } else {
    }
    %c0 = arith.constant 0 : index
    %c0_1 = arith.constant 0 : index
    %3 = vector.load %arg8[%c0, %c0_1] : memref<8x128xf32, #tpu.memory_space<vmem>>, vector<8x128xf32>
    %c0_2 = arith.constant 0 : index
    %c0_3 = arith.constant 0 : index
    %c0_4 = arith.constant 0 : index
    %4 = vector.load %arg4[%c0_2, %c0_3, %c0_4] : memref<1x8x512xbf16, #tpu.memory_space<vmem>>, vector<1x8x512xbf16>
    %5 = vector.shape_cast %4 : vector<1x8x512xbf16> to vector<8x512xbf16>
    %c0_5 = arith.constant 0 : index
    %c0_6 = arith.constant 0 : index
    %c0_7 = arith.constant 0 : index
    %6 = vector.load %arg5[%c0_5, %c0_6, %c0_7] : memref<1x512x128xbf16, #tpu.memory_space<vmem>>, vector<1x512x128xbf16>
    %7 = vector.shape_cast %6 : vector<1x512x128xbf16> to vector<512x128xbf16>
    %cst = arith.constant dense<0.000000e+00> : vector<8x128xf32>
    %8 = tpu.matmul %5, %7, %cst {dimension_numbers = #tpu.dot_dimension_numbers<[1], [0], [0], [1], [0, 0, 1, 1], [], []>} : vector<8x512xbf16>, vector<512x128xbf16>, vector<8x128xf32> -> vector<8x128xf32>
    %9 = arith.addf %3, %8 : vector<8x128xf32>
    %c0_8 = arith.constant 0 : index
    %c0_9 = arith.constant 0 : index
    %10 = vector.load %arg8[%c0_8, %c0_9] : memref<8x128xf32, #tpu.memory_space<vmem>>, vector<8x128xf32>
    tpu.vector_store %arg8[%c0_8, %c0_9], %9 {strides = array<i32>} : memref<8x128xf32, #tpu.memory_space<vmem>>, vector<8x128xf32>,
    %c0_i32_10 = arith.constant 0 : i32
    %11 = arith.cmpi eq, %arg3, %c0_i32_10 : i32
    %12 = arith.extui %11 : i1 to i32
    %c0_i32_11 = arith.constant 0 : i32
    %13 = arith.cmpi ne, %12, %c0_i32_11 : i32
    scf.if %13 {
      %c0_12 = arith.constant 0 : index
      %c0_13 = arith.constant 0 : index
      %14 = vector.load %arg8[%c0_12, %c0_13] : memref<8x128xf32, #tpu.memory_space<vmem>>, vector<8x128xf32>
      %c0_14 = arith.constant 0 : index
      %c0_15 = arith.constant 0 : index
      %15 = vector.load %arg6[%c0_14, %c0_15] : memref<1x128xf32, #tpu.memory_space<vmem>>, vector<1x128xf32>
      %16 = vector.broadcast %15 : vector<1x128xf32> to vector<8x128xf32>
      %17 = arith.addf %14, %16 : vector<8x128xf32>
      %cst_16 = arith.constant 0.000000e+00 : f32
      %18 = vector.broadcast %cst_16 : f32 to vector<8x128xf32>
      %19 = arith.maximumf %17, %18 : vector<8x128xf32>
      %20 = arith.truncf %19 : vector<8x128xf32> to vector<8x128xbf16>
      %c0_17 = arith.constant 0 : index
      %c0_18 = arith.constant 0 : index
      %c0_19 = arith.constant 0 : index
      %21 = vector.load %arg7[%c0_17, %c0_18, %c0_19] : memref<1x8x128xbf16, #tpu.memory_space<vmem>>, vector<1x8x128xbf16>
      %22 = vector.shape_cast %21 : vector<1x8x128xbf16> to vector<8x128xbf16>
      %23 = vector.shape_cast %20 : vector<8x128xbf16> to vector<1x8x128xbf16>
      tpu.vector_store %arg7[%c0_17, %c0_18, %c0_19], %23 {strides = array<i32>} : memref<1x8x128xbf16, #tpu.memory_space<vmem>>, vector<1x8x128xbf16>,
    } else {
    }
    return
  }
  func.func @transform_0(%arg0: i32, %arg1: i32, %arg2: i32, %arg3: i32) -> (i32, i32, i32) {
    %c0_i32 = arith.constant 0 : i32
    return %arg0, %arg1, %arg3 : i32, i32, i32
  }
  func.func @transform_1(%arg0: i32, %arg1: i32, %arg2: i32, %arg3: i32) -> (i32, i32, i32) {
    %c0_i32 = arith.constant 0 : i32
    return %arg0, %arg3, %arg2 : i32, i32, i32
  }
  func.func @transform_2(%arg0: i32, %arg1: i32, %arg2: i32, %arg3: i32) -> (i32, i32) {
    %c0_i32 = arith.constant 0 : i32
    %c0_i32_0 = arith.constant 0 : i32
    return %c0_i32, %arg2 : i32, i32
  }
  func.func @transform_3(%arg0: i32, %arg1: i32, %arg2: i32, %arg3: i32) -> (i32, i32, i32) {
    %c0_i32 = arith.constant 0 : i32
    return %arg0, %arg1, %arg2 : i32, i32, i32
  }
}

module attributes {stable_mosaic.version = 11 : i64} {
  func.func @_matmul_bias_act_kernel(%arg0: i32, %arg1: i32, %arg2: i32, %arg3: i32, %arg4: memref<1x32x256xbf16, #tpu.memory_space<vmem>>, %arg5: memref<1x256x128xbf16, #tpu.memory_space<vmem>>, %arg6: memref<1x128xf32, #tpu.memory_space<vmem>>, %arg7: memref<1x32x128xbf16, #tpu.memory_space<vmem>>, %arg8: memref<32x128xf32, #tpu.memory_space<vmem>>) attributes {dimension_semantics = [#tpu.dimension_semantics<parallel>, #tpu.dimension_semantics<parallel>, #tpu.dimension_semantics<parallel>, #tpu.dimension_semantics<arbitrary>], iteration_bounds = array<i64: 4, 1, 1, 1>, scalar_prefetch = 0 : i64, scratch_operands = 1 : i64, tpu.core_type = #tpu.core_type<tc>, window_params = [{transform_indices = @transform_0, window_bounds = array<i64: 1, 32, 256>}, {transform_indices = @transform_1, window_bounds = array<i64: 1, 256, 128>}, {transform_indices = @transform_2, window_bounds = array<i64: 1, 128>}, {transform_indices = @transform_3, window_bounds = array<i64: 1, 32, 128>}]} {
    %c0_i32 = arith.constant 0 : i32
    %0 = arith.cmpi eq, %arg3, %c0_i32 : i32
    %1 = arith.extui %0 : i1 to i32
    %c0_i32_0 = arith.constant 0 : i32
    %2 = arith.cmpi ne, %1, %c0_i32_0 : i32
    scf.if %2 {
      %cst_12 = arith.constant 0.000000e+00 : f32
      %14 = vector.broadcast %cst_12 : f32 to vector<32x128xf32>
      %c0_13 = arith.constant 0 : index
      %c0_14 = arith.constant 0 : index
      %15 = vector.load %arg8[%c0_13, %c0_14] : memref<32x128xf32, #tpu.memory_space<vmem>>, vector<32x128xf32>
      tpu.vector_store %arg8[%c0_13, %c0_14], %14 {strides = array<i32>} : memref<32x128xf32, #tpu.memory_space<vmem>>, vector<32x128xf32>,
    } else {
    }
    %c0 = arith.constant 0 : index
    %c0_1 = arith.constant 0 : index
    %3 = vector.load %arg8[%c0, %c0_1] : memref<32x128xf32, #tpu.memory_space<vmem>>, vector<32x128xf32>
    %c0_2 = arith.constant 0 : index
    %c0_3 = arith.constant 0 : index
    %c0_4 = arith.constant 0 : index
    %4 = vector.load %arg4[%c0_2, %c0_3, %c0_4] : memref<1x32x256xbf16, #tpu.memory_space<vmem>>, vector<1x32x256xbf16>
    %5 = vector.shape_cast %4 : vector<1x32x256xbf16> to vector<32x256xbf16>
    %c0_5 = arith.constant 0 : index
    %c0_6 = arith.constant 0 : index
    %c0_7 = arith.constant 0 : index
    %6 = vector.load %arg5[%c0_5, %c0_6, %c0_7] : memref<1x256x128xbf16, #tpu.memory_space<vmem>>, vector<1x256x128xbf16>
    %7 = vector.shape_cast %6 : vector<1x256x128xbf16> to vector<256x128xbf16>
    %cst = arith.constant dense<0.000000e+00> : vector<32x128xf32>
    %8 = tpu.matmul %5, %7, %cst {dimension_numbers = #tpu.dot_dimension_numbers<[1], [0], [0], [1], [0, 0, 1, 1], [], []>} : vector<32x256xbf16>, vector<256x128xbf16>, vector<32x128xf32> -> vector<32x128xf32>
    %9 = arith.addf %3, %8 : vector<32x128xf32>
    %c0_8 = arith.constant 0 : index
    %c0_9 = arith.constant 0 : index
    %10 = vector.load %arg8[%c0_8, %c0_9] : memref<32x128xf32, #tpu.memory_space<vmem>>, vector<32x128xf32>
    tpu.vector_store %arg8[%c0_8, %c0_9], %9 {strides = array<i32>} : memref<32x128xf32, #tpu.memory_space<vmem>>, vector<32x128xf32>,
    %c0_i32_10 = arith.constant 0 : i32
    %11 = arith.cmpi eq, %arg3, %c0_i32_10 : i32
    %12 = arith.extui %11 : i1 to i32
    %c0_i32_11 = arith.constant 0 : i32
    %13 = arith.cmpi ne, %12, %c0_i32_11 : i32
    scf.if %13 {
      %c0_12 = arith.constant 0 : index
      %c0_13 = arith.constant 0 : index
      %14 = vector.load %arg8[%c0_12, %c0_13] : memref<32x128xf32, #tpu.memory_space<vmem>>, vector<32x128xf32>
      %c0_14 = arith.constant 0 : index
      %c0_15 = arith.constant 0 : index
      %15 = vector.load %arg6[%c0_14, %c0_15] : memref<1x128xf32, #tpu.memory_space<vmem>>, vector<1x128xf32>
      %16 = vector.broadcast %15 : vector<1x128xf32> to vector<32x128xf32>
      %17 = arith.addf %14, %16 : vector<32x128xf32>
      %cst_16 = arith.constant 0.000000e+00 : f32
      %18 = vector.broadcast %cst_16 : f32 to vector<32x128xf32>
      %19 = arith.maximumf %17, %18 : vector<32x128xf32>
      %20 = arith.truncf %19 : vector<32x128xf32> to vector<32x128xbf16>
      %c0_17 = arith.constant 0 : index
      %c0_18 = arith.constant 0 : index
      %c0_19 = arith.constant 0 : index
      %21 = vector.load %arg7[%c0_17, %c0_18, %c0_19] : memref<1x32x128xbf16, #tpu.memory_space<vmem>>, vector<1x32x128xbf16>
      %22 = vector.shape_cast %21 : vector<1x32x128xbf16> to vector<32x128xbf16>
      %23 = vector.shape_cast %20 : vector<32x128xbf16> to vector<1x32x128xbf16>
      tpu.vector_store %arg7[%c0_17, %c0_18, %c0_19], %23 {strides = array<i32>} : memref<1x32x128xbf16, #tpu.memory_space<vmem>>, vector<1x32x128xbf16>,
    } else {
    }
    return
  }
  func.func @transform_0(%arg0: i32, %arg1: i32, %arg2: i32, %arg3: i32) -> (i32, i32, i32) {
    %c0_i32 = arith.constant 0 : i32
    return %arg0, %arg1, %arg3 : i32, i32, i32
  }
  func.func @transform_1(%arg0: i32, %arg1: i32, %arg2: i32, %arg3: i32) -> (i32, i32, i32) {
    %c0_i32 = arith.constant 0 : i32
    return %arg0, %arg3, %arg2 : i32, i32, i32
  }
  func.func @transform_2(%arg0: i32, %arg1: i32, %arg2: i32, %arg3: i32) -> (i32, i32) {
    %c0_i32 = arith.constant 0 : i32
    %c0_i32_0 = arith.constant 0 : i32
    return %c0_i32, %arg2 : i32, i32
  }
  func.func @transform_3(%arg0: i32, %arg1: i32, %arg2: i32, %arg3: i32) -> (i32, i32, i32) {
    %c0_i32 = arith.constant 0 : i32
    return %arg0, %arg1, %arg2 : i32, i32, i32
  }
}

module attributes {stable_mosaic.version = 11 : i64} {
  func.func @_matmul_bias_act_kernel(%arg0: i32, %arg1: i32, %arg2: i32, %arg3: i32, %arg4: memref<1x128x128xbf16, #tpu.memory_space<vmem>>, %arg5: memref<1x128x128xbf16, #tpu.memory_space<vmem>>, %arg6: memref<1x128xf32, #tpu.memory_space<vmem>>, %arg7: memref<1x128x128xf32, #tpu.memory_space<vmem>>, %arg8: memref<128x128xf32, #tpu.memory_space<vmem>>) attributes {dimension_semantics = [#tpu.dimension_semantics<parallel>, #tpu.dimension_semantics<parallel>, #tpu.dimension_semantics<parallel>, #tpu.dimension_semantics<arbitrary>], iteration_bounds = array<i64: 4, 1, 1, 1>, scalar_prefetch = 0 : i64, scratch_operands = 1 : i64, tpu.core_type = #tpu.core_type<tc>, window_params = [{transform_indices = @transform_0, window_bounds = array<i64: 1, 128, 128>}, {transform_indices = @transform_1, window_bounds = array<i64: 1, 128, 128>}, {transform_indices = @transform_2, window_bounds = array<i64: 1, 128>}, {transform_indices = @transform_3, window_bounds = array<i64: 1, 128, 128>}]} {
    %c0_i32 = arith.constant 0 : i32
    %0 = arith.cmpi eq, %arg3, %c0_i32 : i32
    %1 = arith.extui %0 : i1 to i32
    %c0_i32_0 = arith.constant 0 : i32
    %2 = arith.cmpi ne, %1, %c0_i32_0 : i32
    scf.if %2 {
      %cst_12 = arith.constant 0.000000e+00 : f32
      %14 = vector.broadcast %cst_12 : f32 to vector<128x128xf32>
      %c0_13 = arith.constant 0 : index
      %c0_14 = arith.constant 0 : index
      %15 = vector.load %arg8[%c0_13, %c0_14] : memref<128x128xf32, #tpu.memory_space<vmem>>, vector<128x128xf32>
      tpu.vector_store %arg8[%c0_13, %c0_14], %14 {strides = array<i32>} : memref<128x128xf32, #tpu.memory_space<vmem>>, vector<128x128xf32>,
    } else {
    }
    %c0 = arith.constant 0 : index
    %c0_1 = arith.constant 0 : index
    %3 = vector.load %arg8[%c0, %c0_1] : memref<128x128xf32, #tpu.memory_space<vmem>>, vector<128x128xf32>
    %c0_2 = arith.constant 0 : index
    %c0_3 = arith.constant 0 : index
    %c0_4 = arith.constant 0 : index
    %4 = vector.load %arg4[%c0_2, %c0_3, %c0_4] : memref<1x128x128xbf16, #tpu.memory_space<vmem>>, vector<1x128x128xbf16>
    %5 = vector.shape_cast %4 : vector<1x128x128xbf16> to vector<128x128xbf16>
    %c0_5 = arith.constant 0 : index
    %c0_6 = arith.constant 0 : index
    %c0_7 = arith.constant 0 : index
    %6 = vector.load %arg5[%c0_5, %c0_6, %c0_7] : memref<1x128x128xbf16, #tpu.memory_space<vmem>>, vector<1x128x128xbf16>
    %7 = vector.shape_cast %6 : vector<1x128x128xbf16> to vector<128x128xbf16>
    %cst = arith.constant dense<0.000000e+00> : vector<128x128xf32>
    %8 = tpu.matmul %5, %7, %cst {dimension_numbers = #tpu.dot_dimension_numbers<[1], [0], [0], [1], [0, 0, 1, 1], [], []>} : vector<128x128xbf16>, vector<128x128xbf16>, vector<128x128xf32> -> vector<128x128xf32>
    %9 = arith.addf %3, %8 : vector<128x128xf32>
    %c0_8 = arith.constant 0 : index
    %c0_9 = arith.constant 0 : index
    %10 = vector.load %arg8[%c0_8, %c0_9] : memref<128x128xf32, #tpu.memory_space<vmem>>, vector<128x128xf32>
    tpu.vector_store %arg8[%c0_8, %c0_9], %9 {strides = array<i32>} : memref<128x128xf32, #tpu.memory_space<vmem>>, vector<128x128xf32>,
    %c0_i32_10 = arith.constant 0 : i32
    %11 = arith.cmpi eq, %arg3, %c0_i32_10 : i32
    %12 = arith.extui %11 : i1 to i32
    %c0_i32_11 = arith.constant 0 : i32
    %13 = arith.cmpi ne, %12, %c0_i32_11 : i32
    scf.if %13 {
      %c0_12 = arith.constant 0 : index
      %c0_13 = arith.constant 0 : index
      %14 = vector.load %arg8[%c0_12, %c0_13] : memref<128x128xf32, #tpu.memory_space<vmem>>, vector<128x128xf32>
      %c0_14 = arith.constant 0 : index
      %c0_15 = arith.constant 0 : index
      %15 = vector.load %arg6[%c0_14, %c0_15] : memref<1x128xf32, #tpu.memory_space<vmem>>, vector<1x128xf32>
      %16 = vector.broadcast %15 : vector<1x128xf32> to vector<128x128xf32>
      %17 = arith.addf %14, %16 : vector<128x128xf32>
      %18 = arith.negf %17 : vector<128x128xf32>
      %19 = math.exp %18 : vector<128x128xf32>
      %cst_16 = arith.constant 1.000000e+00 : f32
      %20 = vector.broadcast %cst_16 : f32 to vector<128x128xf32>
      %21 = arith.addf %20, %19 : vector<128x128xf32>
      %22 = arith.divf %20, %21 : vector<128x128xf32>
      %c0_17 = arith.constant 0 : index
      %c0_18 = arith.constant 0 : index
      %c0_19 = arith.constant 0 : index
      %23 = vector.load %arg7[%c0_17, %c0_18, %c0_19] : memref<1x128x128xf32, #tpu.memory_space<vmem>>, vector<1x128x128xf32>
      %24 = vector.shape_cast %23 : vector<1x128x128xf32> to vector<128x128xf32>
      %25 = vector.shape_cast %22 : vector<128x128xf32> to vector<1x128x128xf32>
      tpu.vector_store %arg7[%c0_17, %c0_18, %c0_19], %25 {strides = array<i32>} : memref<1x128x128xf32, #tpu.memory_space<vmem>>, vector<1x128x128xf32>,
    } else {
    }
    return
  }
  func.func @transform_0(%arg0: i32, %arg1: i32, %arg2: i32, %arg3: i32) -> (i32, i32, i32) {
    %c0_i32 = arith.constant 0 : i32
    return %arg0, %arg1, %arg3 : i32, i32, i32
  }
  func.func @transform_1(%arg0: i32, %arg1: i32, %arg2: i32, %arg3: i32) -> (i32, i32, i32) {
    %c0_i32 = arith.constant 0 : i32
    return %arg0, %arg3, %arg2 : i32, i32, i32
  }
  func.func @transform_2(%arg0: i32, %arg1: i32, %arg2: i32, %arg3: i32) -> (i32, i32) {
    %c0_i32 = arith.constant 0 : i32
    %c0_i32_0 = arith.constant 0 : i32
    return %c0_i32, %arg2 : i32, i32
  }
  func.func @transform_3(%arg0: i32, %arg1: i32, %arg2: i32, %arg3: i32) -> (i32, i32, i32) {
    %c0_i32 = arith.constant 0 : i32
    return %arg0, %arg1, %arg2 : i32, i32, i32
  }
}

</mosaic_0001>

<llo_original>
// kernel: vae_forward.10
$region0: #{vae_forward.10}
  #allocation0 [shape = 'u32[]', space=smem, size = 0x4, offset = 0x4, fixed_abs, tag = 'smem constant byte address 0x4 - core index']
  #allocation1 [shape = 'u32[144,128]{1,0:T(1,128)}', space=vmem, size = 0x12000, scoped, tag = 'internal scratch']
  #allocation2 [shape = 'f32[128,128]{1,0:T(8,128)}', space=vmem, size = 0x10000, scoped, tag = 'scratch operand']
  %s0 = inlined_call_operand.vmem [shape: bf16[128,128], index: 0, kind: input, shape index: {}]
  %s1 = inlined_call_operand.vmem [shape: bf16[128,128], index: 1, kind: input, shape index: {}]
  %s2 = inlined_call_operand.vmem [shape: f32[1,128], index: 2, kind: input, shape index: {}]
  %s3 = inlined_call_operand.vmem [shape: bf16[128,128], index: 3, kind: output, shape index: {}]
  %s4 = sld [smem:[#allocation0]]
  $region30: #{vae_forward.10} parent=0
    _
  %s6 = ssub.s32 1, %s4
  %s7 = scalar_select 0, %s6, %s4
  // Predicated region
  $region2: #{vae_forward.10} parent=0 // pred_check
    _
  $region3: #{vae_forward.10} parent=0 // pred_check_branch
    %9 = sbr.rel (0) target = $region5
  $region4: #{vae_forward.10} parent=0 // pred_region
    _
  $region5: #{vae_forward.10} parent=0 // pred_fallthru
    _
  // Predicated region
  $region6: #{vae_forward.10} parent=0 // pred_check
    _
  $region7: #{vae_forward.10} parent=0 // pred_check_branch
    %11 = sbr.rel (0) target = $region9
  $region8: #{vae_forward.10} parent=0 // pred_region
    _
  $region9: #{vae_forward.10} parent=0 // pred_fallthru
    _
  // Predicated region
  $region10: #{vae_forward.10} parent=0 // pred_check
    _
  $region11: #{vae_forward.10} parent=0 // pred_check_branch
    %13 = sbr.rel (0) target = $region13
  $region12: #{vae_forward.10} parent=0 // pred_region
    _
  $region13: #{vae_forward.10} parent=0 // pred_fallthru
    _
  %p15 = scmp.eq.s32.totalorder 0, 0
  // Predicated region
  $region14: #{vae_forward.10} parent=0 // pred_check
    %p16 = pneg %p15
  $region15: #{vae_forward.10} parent=0 // pred_check_branch
    %18 = sbr.rel (%p16) target = $region17
  $region16: #{vae_forward.10} parent=0 // pred_region
    %19 = vst [vmem:[#allocation2] sm:$0xff] 0.0
    %20 = vst [vmem:[#allocation2 + $0x8] sm:$0xff] 0.0
    %21 = vst [vmem:[#allocation2 + $0x10] sm:$0xff] 0.0
    %22 = vst [vmem:[#allocation2 + $0x18] sm:$0xff] 0.0
    %23 = vst [vmem:[#allocation2 + $0x20] sm:$0xff] 0.0
    %24 = vst [vmem:[#allocation2 + $0x28] sm:$0xff] 0.0
    %25 = vst [vmem:[#allocation2 + $0x30] sm:$0xff] 0.0
    %26 = vst [vmem:[#allocation2 + $0x38] sm:$0xff] 0.0
    %27 = vst [vmem:[#allocation2 + $0x40] sm:$0xff] 0.0
    %28 = vst [vmem:[#allocation2 + $0x48] sm:$0xff] 0.0
    %29 = vst [vmem:[#allocation2 + $0x50] sm:$0xff] 0.0
    %30 = vst [vmem:[#allocation2 + $0x58] sm:$0xff] 0.0
    %31 = vst [vmem:[#allocation2 + $0x60] sm:$0xff] 0.0
    %32 = vst [vmem:[#allocation2 + $0x68] sm:$0xff] 0.0
    %33 = vst [vmem:[#allocation2 + $0x70] sm:$0xff] 0.0
    %34 = vst [vmem:[#allocation2 + $0x78] sm:$0xff] 0.0
  $region17: #{vae_forward.10} parent=0 // pred_fallthru
    _
  %v35 = vld [vmem:[#allocation2] sm:$0xff]
  %v36 = vld [vmem:[#allocation2 + $0x8] sm:$0xff]
  %v37 = vld [vmem:[#allocation2 + $0x10] sm:$0xff]
  %v38 = vld [vmem:[#allocation2 + $0x18] sm:$0xff]
  %v39 = vld [vmem:[#allocation2 + $0x20] sm:$0xff]
  %v40 = vld [vmem:[#allocation2 + $0x28] sm:$0xff]
  %v41 = vld [vmem:[#allocation2 + $0x30] sm:$0xff]
  %v42 = vld [vmem:[#allocation2 + $0x38] sm:$0xff]
  %v43 = vld [vmem:[#allocation2 + $0x40] sm:$0xff]
  %v44 = vld [vmem:[#allocation2 + $0x48] sm:$0xff]
  %v45 = vld [vmem:[#allocation2 + $0x50] sm:$0xff]
  %v46 = vld [vmem:[#allocation2 + $0x58] sm:$0xff]
  %v47 = vld [vmem:[#allocation2 + $0x60] sm:$0xff]
  %v48 = vld [vmem:[#allocation2 + $0x68] sm:$0xff]
  %v49 = vld [vmem:[#allocation2 + $0x70] sm:$0xff]
  %v50 = vld [vmem:[#allocation2 + $0x78] sm:$0xff]
  %v51 = vld [vmem:[%s0] sm:$0xf]
  %v52 = vld [vmem:[%s0 + $0x4] sm:$0xf]
  %v53 = vld [vmem:[%s0 + $0x8] sm:$0xf]
  %v54 = vld [vmem:[%s0 + $0xc] sm:$0xf]
  %v55 = vld [vmem:[%s0 + $0x10] sm:$0xf]
  %v56 = vld [vmem:[%s0 + $0x14] sm:$0xf]
  %v57 = vld [vmem:[%s0 + $0x18] sm:$0xf]
  %v58 = vld [vmem:[%s0 + $0x1c] sm:$0xf]
  %v59 = vld [vmem:[%s0 + $0x20] sm:$0xf]
  %v60 = vld [vmem:[%s0 + $0x24] sm:$0xf]
  %v61 = vld [vmem:[%s0 + $0x28] sm:$0xf]
  %v62 = vld [vmem:[%s0 + $0x2c] sm:$0xf]
  %v63 = vld [vmem:[%s0 + $0x30] sm:$0xf]
  %v64 = vld [vmem:[%s0 + $0x34] sm:$0xf]
  %v65 = vld [vmem:[%s0 + $0x38] sm:$0xf]
  %v66 = vld [vmem:[%s0 + $0x3c] sm:$0xf]
  %v67 = vld [vmem:[%s1] sm:$0xf]
  %v68 = vld [vmem:[%s1 + $0x4] sm:$0xf]
  %v69 = vld [vmem:[%s1 + $0x8] sm:$0xf]
  %v70 = vld [vmem:[%s1 + $0xc] sm:$0xf]
  %v71 = vld [vmem:[%s1 + $0x10] sm:$0xf]
  %v72 = vld [vmem:[%s1 + $0x14] sm:$0xf]
  %v73 = vld [vmem:[%s1 + $0x18] sm:$0xf]
  %v74 = vld [vmem:[%s1 + $0x1c] sm:$0xf]
  %v75 = vld [vmem:[%s1 + $0x20] sm:$0xf]
  %v76 = vld [vmem:[%s1 + $0x24] sm:$0xf]
  %v77 = vld [vmem:[%s1 + $0x28] sm:$0xf]
  %v78 = vld [vmem:[%s1 + $0x2c] sm:$0xf]
  %v79 = vld [vmem:[%s1 + $0x30] sm:$0xf]
  %v80 = vld [vmem:[%s1 + $0x34] sm:$0xf]
  %v81 = vld [vmem:[%s1 + $0x38] sm:$0xf]
  %v82 = vld [vmem:[%s1 + $0x3c] sm:$0xf]
  %v99 = vunpack.c.l.b16 %v51
  %v100 = vunpack.c.l.b16 %v52
  %v101 = vunpack.c.l.b16 %v53
  %v102 = vunpack.c.l.b16 %v54
  %v103 = vunpack.c.l.b16 %v55
  %v104 = vunpack.c.l.b16 %v56
  %v105 = vunpack.c.l.b16 %v57
  %v106 = vunpack.c.l.b16 %v58
  %v107 = vunpack.c.l.b16 %v59
  %v108 = vunpack.c.l.b16 %v60
  %v109 = vunpack.c.l.b16 %v61
  %v110 = vunpack.c.l.b16 %v62
  %v111 = vunpack.c.l.b16 %v63
  %v112 = vunpack.c.l.b16 %v64
  %v113 = vunpack.c.l.b16 %v65
  %v114 = vunpack.c.l.b16 %v66
  %v115 = vpack.c.b16 %v100, %v99
  %v116 = vpack.c.b16 %v102, %v101
  %v117 = vpack.c.b16 %v104, %v103
  %v118 = vpack.c.b16 %v106, %v105
  %v119 = vpack.c.b16 %v108, %v107
  %v120 = vpack.c.b16 %v110, %v109
  %v121 = vpack.c.b16 %v112, %v111
  %v122 = vpack.c.b16 %v114, %v113
  %v147 = vunpack.c.l.b16 %v67
  %v148 = vunpack.c.l.b16 %v68
  %v149 = vunpack.c.l.b16 %v69
  %v150 = vunpack.c.l.b16 %v70
  %v151 = vunpack.c.l.b16 %v71
  %v152 = vunpack.c.l.b16 %v72
  %v153 = vunpack.c.l.b16 %v73
  %v154 = vunpack.c.l.b16 %v74
  %v155 = vunpack.c.l.b16 %v75
  %v156 = vunpack.c.l.b16 %v76
  %v157 = vunpack.c.l.b16 %v77
  %v158 = vunpack.c.l.b16 %v78
  %v159 = vunpack.c.l.b16 %v79
  %v160 = vunpack.c.l.b16 %v80
  %v161 = vunpack.c.l.b16 %v81
  %v162 = vunpack.c.l.b16 %v82
  %v163 = vpack.c.b16 %v148, %v147
  %v164 = vpack.c.b16 %v150, %v149
  %v165 = vpack.c.b16 %v152, %v151
  %v166 = vpack.c.b16 %v154, %v153
  %v167 = vpack.c.b16 %v156, %v155
  %v168 = vpack.c.b16 %v158, %v157
  %v169 = vpack.c.b16 %v160, %v159
  %v170 = vpack.c.b16 %v162, %v161
  %179 = vmatprep.subr.bf16.mxu0 0
  %180 = vmatpush1.bf16.msra.mxu0 %v170
  %181 = vmatprep.subr.bf16.mxu0 0
  %182 = vmatpush1.bf16.msra.mxu0 %v169
  %183 = vmatprep.subr.bf16.mxu0 0
  %184 = vmatpush1.bf16.msra.mxu0 %v168
  %185 = vmatprep.subr.bf16.mxu0 0
  %186 = vmatpush1.bf16.msra.mxu0 %v167
  %187 = vmatprep.subr.bf16.mxu0 0
  %188 = vmatpush1.bf16.msra.mxu0 %v166
  %189 = vmatprep.subr.bf16.mxu0 0
  %190 = vmatpush1.bf16.msra.mxu0 %v165
  %191 = vmatprep.subr.bf16.mxu0 0
  %192 = vmatpush1.bf16.msra.mxu0 %v164
  %193 = vmatprep.subr.bf16.mxu0 0
  %194 = vmatpush1.bf16.msra.mxu0 %v163
  %195 = vmatprep.subr.bf16.mxu0 0
  %196 = vmatpush2.bf16.msra.mxu0 0
  %197 = vmatprep.subr.bf16.mxu0 0
  %198 = vmatpush2.bf16.msra.mxu0 0
  %199 = vmatprep.subr.bf16.mxu0 0
  %200 = vmatpush2.bf16.msra.mxu0 0
  %201 = vmatprep.subr.bf16.mxu0 0
  %202 = vmatpush2.bf16.msra.mxu0 0
  %203 = vmatprep.subr.bf16.mxu0 0
  %204 = vmatpush2.bf16.msra.mxu0 0
  %205 = vmatprep.subr.bf16.mxu0 0
  %206 = vmatpush2.bf16.msra.mxu0 0
  %207 = vmatprep.subr.bf16.mxu0 0
  %208 = vmatpush2.bf16.msra.mxu0 0
  %209 = vmatprep.subr.bf16.mxu0 0
  %210 = vmatpush2.bf16.msra.mxu0 0
  %211 = vmatprep.mubr.bf16.mxu0 0
  %212 = vmatmul.mubr.bf16.gmra.mxu0 %v115
  %v213 = vpop.f32.mrf.mxu0
  %v214 = vadd.f32 0.0, %v213
  %v215 = vpop.f32.mrf.mxu0
  %v216 = vpop.f32.mrf.mxu0
  %v217 = vadd.f32 0.0, %v216
  %v218 = vpop.f32.mrf.mxu0
  %219 = vmatprep.mubr.bf16.mxu0 0
  %220 = vmatmul.mubr.bf16.gmra.mxu0 %v116
  %v221 = vpop.f32.mrf.mxu0
  %v222 = vadd.f32 0.0, %v221
  %v223 = vpop.f32.mrf.mxu0
  %v224 = vpop.f32.mrf.mxu0
  %v225 = vadd.f32 0.0, %v224
  %v226 = vpop.f32.mrf.mxu0
  %227 = vmatprep.mubr.bf16.mxu0 0
  %228 = vmatmul.mubr.bf16.gmra.mxu0 %v117
  %v229 = vpop.f32.mrf.mxu0
  %v230 = vadd.f32 0.0, %v229
  %v231 = vpop.f32.mrf.mxu0
  %v232 = vpop.f32.mrf.mxu0
  %v233 = vadd.f32 0.0, %v232
  %v234 = vpop.f32.mrf.mxu0
  %235 = vmatprep.mubr.bf16.mxu0 0
  %236 = vmatmul.mubr.bf16.gmra.mxu0 %v118
  %v237 = vpop.f32.mrf.mxu0
  %v238 = vadd.f32 0.0, %v237
  %v239 = vpop.f32.mrf.mxu0
  %v240 = vpop.f32.mrf.mxu0
  %v241 = vadd.f32 0.0, %v240
  %v242 = vpop.f32.mrf.mxu0
  %243 = vmatprep.mubr.bf16.mxu0 0
  %244 = vmatmul.mubr.bf16.gmra.mxu0 %v119
  %v245 = vpop.f32.mrf.mxu0
  %v246 = vadd.f32 0.0, %v245
  %v247 = vpop.f32.mrf.mxu0
  %v248 = vpop.f32.mrf.mxu0
  %v249 = vadd.f32 0.0, %v248
  %v250 = vpop.f32.mrf.mxu0
  %251 = vmatprep.mubr.bf16.mxu0 0
  %252 = vmatmul.mubr.bf16.gmra.mxu0 %v120
  %v253 = vpop.f32.mrf.mxu0
  %v254 = vadd.f32 0.0, %v253
  %v255 = vpop.f32.mrf.mxu0
  %v256 = vpop.f32.mrf.mxu0
  %v257 = vadd.f32 0.0, %v256
  %v258 = vpop.f32.mrf.mxu0
  %259 = vmatprep.mubr.bf16.mxu0 0
  %260 = vmatmul.mubr.bf16.gmra.mxu0 %v121
  %v261 = vpop.f32.mrf.mxu0
  %v262 = vadd.f32 0.0, %v261
  %v263 = vpop.f32.mrf.mxu0
  %v264 = vpop.f32.mrf.mxu0
  %v265 = vadd.f32 0.0, %v264
  %v266 = vpop.f32.mrf.mxu0
  %267 = vmatprep.mubr.bf16.mxu0 0
  %268 = vmatmul.mubr.bf16.gmra.mxu0 %v122
  %v269 = vpop.f32.mrf.mxu0
  %v270 = vadd.f32 0.0, %v269
  %v271 = vpop.f32.mrf.mxu0
  %v272 = vpop.f32.mrf.mxu0
  %v273 = vadd.f32 0.0, %v272
  %v274 = vpop.f32.mrf.mxu0
  %275 = vdwg.mxu0
  %v276 = vadd.f32 %v35, %v214
  %v277 = vadd.f32 %v36, %v217
  %v278 = vadd.f32 %v37, %v222
  %v279 = vadd.f32 %v38, %v225
  %v280 = vadd.f32 %v39, %v230
  %v281 = vadd.f32 %v40, %v233
  %v282 = vadd.f32 %v41, %v238
  %v283 = vadd.f32 %v42, %v241
  %v284 = vadd.f32 %v43, %v246
  %v285 = vadd.f32 %v44, %v249
  %v286 = vadd.f32 %v45, %v254
  %v287 = vadd.f32 %v46, %v257
  %v288 = vadd.f32 %v47, %v262
  %v289 = vadd.f32 %v48, %v265
  %v290 = vadd.f32 %v49, %v270
  %v291 = vadd.f32 %v50, %v273
  %292 = vst [vmem:[#allocation2] sm:$0xff] %v276
  %293 = vst [vmem:[#allocation2 + $0x8] sm:$0xff] %v277
  %294 = vst [vmem:[#allocation2 + $0x10] sm:$0xff] %v278
  %295 = vst [vmem:[#allocation2 + $0x18] sm:$0xff] %v279
  %296 = vst [vmem:[#allocation2 + $0x20] sm:$0xff] %v280
  %297 = vst [vmem:[#allocation2 + $0x28] sm:$0xff] %v281
  %298 = vst [vmem:[#allocation2 + $0x30] sm:$0xff] %v282
  %299 = vst [vmem:[#allocation2 + $0x38] sm:$0xff] %v283
  %300 = vst [vmem:[#allocation2 + $0x40] sm:$0xff] %v284
  %301 = vst [vmem:[#allocation2 + $0x48] sm:$0xff] %v285
  %302 = vst [vmem:[#allocation2 + $0x50] sm:$0xff] %v286
  %303 = vst [vmem:[#allocation2 + $0x58] sm:$0xff] %v287
  %304 = vst [vmem:[#allocation2 + $0x60] sm:$0xff] %v288
  %305 = vst [vmem:[#allocation2 + $0x68] sm:$0xff] %v289
  %306 = vst [vmem:[#allocation2 + $0x70] sm:$0xff] %v290
  %307 = vst [vmem:[#allocation2 + $0x78] sm:$0xff] %v291
  // Predicated region
  $region18: #{vae_forward.10} parent=0 // pred_check
    %p308 = pneg %p15
  $region19: #{vae_forward.10} parent=0 // pred_check_branch
    %310 = sbr.rel (%p308) target = $region21
  $region20: #{vae_forward.10} parent=0 // pred_region
    %v311 = vld [vmem:[#allocation2] sm:$0xff]
    %v312 = vld [vmem:[#allocation2 + $0x8] sm:$0xff]
    %v313 = vld [vmem:[#allocation2 + $0x10] sm:$0xff]
    %v314 = vld [vmem:[#allocation2 + $0x18] sm:$0xff]
    %v315 = vld [vmem:[#allocation2 + $0x20] sm:$0xff]
    %v316 = vld [vmem:[#allocation2 + $0x28] sm:$0xff]
    %v317 = vld [vmem:[#allocation2 + $0x30] sm:$0xff]
    %v318 = vld [vmem:[#allocation2 + $0x38] sm:$0xff]
    %v319 = vld [vmem:[#allocation2 + $0x40] sm:$0xff]
    %v320 = vld [vmem:[#allocation2 + $0x48] sm:$0xff]
    %v321 = vld [vmem:[#allocation2 + $0x50] sm:$0xff]
    %v322 = vld [vmem:[#allocation2 + $0x58] sm:$0xff]
    %v323 = vld [vmem:[#allocation2 + $0x60] sm:$0xff]
    %v324 = vld [vmem:[#allocation2 + $0x68] sm:$0xff]
    %v325 = vld [vmem:[#allocation2 + $0x70] sm:$0xff]
    %v326 = vld [vmem:[#allocation2 + $0x78] sm:$0xff]
    %v327 = vld [vmem:[%s2] sm:$0x1]
    %v329 = vlaneseq
    %v330 = vshrl.u32 %v329, 7
    %v331 = vsub.s32 0, %v330
    %v332 = vrot.slane %v327, %v331
    %v334 = vadd.f32 %v311, %v332
    %v335 = vadd.f32 %v312, %v332
    %v336 = vadd.f32 %v313, %v332
    %v337 = vadd.f32 %v314, %v332
    %v338 = vadd.f32 %v315, %v332
    %v339 = vadd.f32 %v316, %v332
    %v340 = vadd.f32 %v317, %v332
    %v341 = vadd.f32 %v318, %v332
    %v342 = vadd.f32 %v319, %v332
    %v343 = vadd.f32 %v320, %v332
    %v344 = vadd.f32 %v321, %v332
    %v345 = vadd.f32 %v322, %v332
    %v346 = vadd.f32 %v323, %v332
    %v347 = vadd.f32 %v324, %v332
    %v348 = vadd.f32 %v325, %v332
    %v349 = vadd.f32 %v326, %v332
    %v350 = vmax.f32 %v334, 0.0
    %v351 = vmax.f32 %v335, 0.0
    %v352 = vmax.f32 %v336, 0.0
    %v353 = vmax.f32 %v337, 0.0
    %v354 = vmax.f32 %v338, 0.0
    %v355 = vmax.f32 %v339, 0.0
    %v356 = vmax.f32 %v340, 0.0
    %v357 = vmax.f32 %v341, 0.0
    %v358 = vmax.f32 %v342, 0.0
    %v359 = vmax.f32 %v343, 0.0
    %v360 = vmax.f32 %v344, 0.0
    %v361 = vmax.f32 %v345, 0.0
    %v362 = vmax.f32 %v346, 0.0
    %v363 = vmax.f32 %v347, 0.0
    %v364 = vmax.f32 %v348, 0.0
    %v365 = vmax.f32 %v349, 0.0
    %v366 = vpack.c.bf16 %v351, %v350
    %v367 = vpack.c.bf16 %v353, %v352
    %v368 = vpack.c.bf16 %v355, %v354
    %v369 = vpack.c.bf16 %v357, %v356
    %v370 = vpack.c.bf16 %v359, %v358
    %v371 = vpack.c.bf16 %v361, %v360
    %v372 = vpack.c.bf16 %v363, %v362
    %v373 = vpack.c.bf16 %v365, %v364
    %v382 = vunpack.c.l.b16 %v366
    %v383 = vunpack.c.h.b16 %v366
    %v384 = vunpack.c.l.b16 %v367
    %v385 = vunpack.c.h.b16 %v367
    %v386 = vunpack.c.l.b16 %v368
    %v387 = vunpack.c.h.b16 %v368
    %v388 = vunpack.c.l.b16 %v369
    %v389 = vunpack.c.h.b16 %v369
    %v390 = vunpack.c.l.b16 %v370
    %v391 = vunpack.c.h.b16 %v370
    %v392 = vunpack.c.l.b16 %v371
    %v393 = vunpack.c.h.b16 %v371
    %v394 = vunpack.c.l.b16 %v372
    %v395 = vunpack.c.h.b16 %v372
    %v396 = vunpack.c.l.b16 %v373
    %v397 = vunpack.c.h.b16 %v373
    %v398 = vpack.c.b16 %v382, %v382
    %v399 = vpack.c.b16 %v383, %v383
    %v400 = vpack.c.b16 %v384, %v384
    %v401 = vpack.c.b16 %v385, %v385
    %v402 = vpack.c.b16 %v386, %v386
    %v403 = vpack.c.b16 %v387, %v387
    %v404 = vpack.c.b16 %v388, %v388
    %v405 = vpack.c.b16 %v389, %v389
    %v406 = vpack.c.b16 %v390, %v390
    %v407 = vpack.c.b16 %v391, %v391
    %v408 = vpack.c.b16 %v392, %v392
    %v409 = vpack.c.b16 %v393, %v393
    %v410 = vpack.c.b16 %v394, %v394
    %v411 = vpack.c.b16 %v395, %v395
    %v412 = vpack.c.b16 %v396, %v396
    %v413 = vpack.c.b16 %v397, %v397
    %430 = vst [vmem:[%s3] sm:$0xf] %v398
    %431 = vst [vmem:[%s3 + $0x4] sm:$0xf] %v399
    %432 = vst [vmem:[%s3 + $0x8] sm:$0xf] %v400
    %433 = vst [vmem:[%s3 + $0xc] sm:$0xf] %v401
    %434 = vst [vmem:[%s3 + $0x10] sm:$0xf] %v402
    %435 = vst [vmem:[%s3 + $0x14] sm:$0xf] %v403
    %436 = vst [vmem:[%s3 + $0x18] sm:$0xf] %v404
    %437 = vst [vmem:[%s3 + $0x1c] sm:$0xf] %v405
    %438 = vst [vmem:[%s3 + $0x20] sm:$0xf] %v406
    %439 = vst [vmem:[%s3 + $0x24] sm:$0xf] %v407
    %440 = vst [vmem:[%s3 + $0x28] sm:$0xf] %v408
    %441 = vst [vmem:[%s3 + $0x2c] sm:$0xf] %v409
    %442 = vst [vmem:[%s3 + $0x30] sm:$0xf] %v410
    %443 = vst [vmem:[%s3 + $0x34] sm:$0xf] %v411
    %444 = vst [vmem:[%s3 + $0x38] sm:$0xf] %v412
    %445 = vst [vmem:[%s3 + $0x3c] sm:$0xf] %v413
  $region21: #{vae_forward.10} parent=0 // pred_fallthru
    _
  // Predicated region
  $region22: #{vae_forward.10} parent=0 // pred_check
    _
  $region23: #{vae_forward.10} parent=0 // pred_check_branch
    %447 = sbr.rel (0) target = $region25
  $region24: #{vae_forward.10} parent=0 // pred_region
    _
  $region25: #{vae_forward.10} parent=0 // pred_fallthru
    _
  // Predicated region
  $region26: #{vae_forward.10} parent=0 // pred_check
    _
  $region27: #{vae_forward.10} parent=0 // pred_check_branch
    %449 = sbr.rel (0) target = $region29
  $region28: #{vae_forward.10} parent=0 // pred_region
    _
  $region29: #{vae_forward.10} parent=0 // pred_fallthru
    _

// kernel: vae_forward.11
$region0: #{vae_forward.11}
  #allocation0 [shape = 'u32[]', space=smem, size = 0x4, offset = 0x4, fixed_abs, tag = 'smem constant byte address 0x4 - core index']
  #allocation1 [shape = 'u32[144,128]{1,0:T(1,128)}', space=vmem, size = 0x12000, scoped, tag = 'internal scratch']
  #allocation2 [shape = 'f32[32,128]{1,0:T(8,128)}', space=vmem, size = 0x4000, scoped, tag = 'scratch operand']
  %s0 = inlined_call_operand.vmem [shape: bf16[32,512], index: 0, kind: input, shape index: {}]
  %s1 = inlined_call_operand.vmem [shape: bf16[512,128], index: 1, kind: input, shape index: {}]
  %s2 = inlined_call_operand.vmem [shape: f32[1,128], index: 2, kind: input, shape index: {}]
  %s3 = inlined_call_operand.vmem [shape: bf16[32,128], index: 3, kind: output, shape index: {}]
  %s4 = sld [smem:[#allocation0]]
  $region30: #{vae_forward.11} parent=0
    _
  %s6 = ssub.s32 1, %s4
  %s7 = scalar_select 0, %s6, %s4
  // Predicated region
  $region2: #{vae_forward.11} parent=0 // pred_check
    _
  $region3: #{vae_forward.11} parent=0 // pred_check_branch
    %9 = sbr.rel (0) target = $region5
  $region4: #{vae_forward.11} parent=0 // pred_region
    _
  $region5: #{vae_forward.11} parent=0 // pred_fallthru
    _
  // Predicated region
  $region6: #{vae_forward.11} parent=0 // pred_check
    _
  $region7: #{vae_forward.11} parent=0 // pred_check_branch
    %11 = sbr.rel (0) target = $region9
  $region8: #{vae_forward.11} parent=0 // pred_region
    _
  $region9: #{vae_forward.11} parent=0 // pred_fallthru
    _
  // Predicated region
  $region10: #{vae_forward.11} parent=0 // pred_check
    _
  $region11: #{vae_forward.11} parent=0 // pred_check_branch
    %13 = sbr.rel (0) target = $region13
  $region12: #{vae_forward.11} parent=0 // pred_region
    _
  $region13: #{vae_forward.11} parent=0 // pred_fallthru
    _
  %p15 = scmp.eq.s32.totalorder 0, 0
  // Predicated region
  $region14: #{vae_forward.11} parent=0 // pred_check
    %p16 = pneg %p15
  $region15: #{vae_forward.11} parent=0 // pred_check_branch
    %18 = sbr.rel (%p16) target = $region17
  $region16: #{vae_forward.11} parent=0 // pred_region
    %19 = vst [vmem:[#allocation2] sm:$0xff] 0.0
    %20 = vst [vmem:[#allocation2 + $0x8] sm:$0xff] 0.0
    %21 = vst [vmem:[#allocation2 + $0x10] sm:$0xff] 0.0
    %22 = vst [vmem:[#allocation2 + $0x18] sm:$0xff] 0.0
  $region17: #{vae_forward.11} parent=0 // pred_fallthru
    _
  %v23 = vld [vmem:[#allocation2] sm:$0xff]
  %v24 = vld [vmem:[#allocation2 + $0x8] sm:$0xff]
  %v25 = vld [vmem:[#allocation2 + $0x10] sm:$0xff]
  %v26 = vld [vmem:[#allocation2 + $0x18] sm:$0xff]
  %v27 = vld [vmem:[%s0] sm:$0xff]
  %v28 = vld [vmem:[%s0 + $0x8] sm:$0xff]
  %v29 = vld [vmem:[%s0 + $0x10] sm:$0xff]
  %v30 = vld [vmem:[%s0 + $0x18] sm:$0xff]
  %v31 = vld [vmem:[%s0 + $0x20] sm:$0xff]
  %v32 = vld [vmem:[%s0 + $0x28] sm:$0xff]
  %v33 = vld [vmem:[%s0 + $0x30] sm:$0xff]
  %v34 = vld [vmem:[%s0 + $0x38] sm:$0xff]
  %v35 = vld [vmem:[%s1] sm:$0xf]
  %v36 = vld [vmem:[%s1 + $0x4] sm:$0xf]
  %v37 = vld [vmem:[%s1 + $0x8] sm:$0xf]
  %v38 = vld [vmem:[%s1 + $0xc] sm:$0xf]
  %v39 = vld [vmem:[%s1 + $0x10] sm:$0xf]
  %v40 = vld [vmem:[%s1 + $0x14] sm:$0xf]
  %v41 = vld [vmem:[%s1 + $0x18] sm:$0xf]
  %v42 = vld [vmem:[%s1 + $0x1c] sm:$0xf]
  %v43 = vld [vmem:[%s1 + $0x20] sm:$0xf]
  %v44 = vld [vmem:[%s1 + $0x24] sm:$0xf]
  %v45 = vld [vmem:[%s1 + $0x28] sm:$0xf]
  %v46 = vld [vmem:[%s1 + $0x2c] sm:$0xf]
  %v47 = vld [vmem:[%s1 + $0x30] sm:$0xf]
  %v48 = vld [vmem:[%s1 + $0x34] sm:$0xf]
  %v49 = vld [vmem:[%s1 + $0x38] sm:$0xf]
  %v50 = vld [vmem:[%s1 + $0x3c] sm:$0xf]
  %v51 = vld [vmem:[%s1 + $0x40] sm:$0xf]
  %v52 = vld [vmem:[%s1 + $0x44] sm:$0xf]
  %v53 = vld [vmem:[%s1 + $0x48] sm:$0xf]
  %v54 = vld [vmem:[%s1 + $0x4c] sm:$0xf]
  %v55 = vld [vmem:[%s1 + $0x50] sm:$0xf]
  %v56 = vld [vmem:[%s1 + $0x54] sm:$0xf]
  %v57 = vld [vmem:[%s1 + $0x58] sm:$0xf]
  %v58 = vld [vmem:[%s1 + $0x5c] sm:$0xf]
  %v59 = vld [vmem:[%s1 + $0x60] sm:$0xf]
  %v60 = vld [vmem:[%s1 + $0x64] sm:$0xf]
  %v61 = vld [vmem:[%s1 + $0x68] sm:$0xf]
  %v62 = vld [vmem:[%s1 + $0x6c] sm:$0xf]
  %v63 = vld [vmem:[%s1 + $0x70] sm:$0xf]
  %v64 = vld [vmem:[%s1 + $0x74] sm:$0xf]
  %v65 = vld [vmem:[%s1 + $0x78] sm:$0xf]
  %v66 = vld [vmem:[%s1 + $0x7c] sm:$0xf]
  %v67 = vld [vmem:[%s1 + $0x80] sm:$0xf]
  %v68 = vld [vmem:[%s1 + $0x84] sm:$0xf]
  %v69 = vld [vmem:[%s1 + $0x88] sm:$0xf]
  %v70 = vld [vmem:[%s1 + $0x8c] sm:$0xf]
  %v71 = vld [vmem:[%s1 + $0x90] sm:$0xf]
  %v72 = vld [vmem:[%s1 + $0x94] sm:$0xf]
  %v73 = vld [vmem:[%s1 + $0x98] sm:$0xf]
  %v74 = vld [vmem:[%s1 + $0x9c] sm:$0xf]
  %v75 = vld [vmem:[%s1 + $0xa0] sm:$0xf]
  %v76 = vld [vmem:[%s1 + $0xa4] sm:$0xf]
  %v77 = vld [vmem:[%s1 + $0xa8] sm:$0xf]
  %v78 = vld [vmem:[%s1 + $0xac] sm:$0xf]
  %v79 = vld [vmem:[%s1 + $0xb0] sm:$0xf]
  %v80 = vld [vmem:[%s1 + $0xb4] sm:$0xf]
  %v81 = vld [vmem:[%s1 + $0xb8] sm:$0xf]
  %v82 = vld [vmem:[%s1 + $0xbc] sm:$0xf]
  %v83 = vld [vmem:[%s1 + $0xc0] sm:$0xf]
  %v84 = vld [vmem:[%s1 + $0xc4] sm:$0xf]
  %v85 = vld [vmem:[%s1 + $0xc8] sm:$0xf]
  %v86 = vld [vmem:[%s1 + $0xcc] sm:$0xf]
  %v87 = vld [vmem:[%s1 + $0xd0] sm:$0xf]
  %v88 = vld [vmem:[%s1 + $0xd4] sm:$0xf]
  %v89 = vld [vmem:[%s1 + $0xd8] sm:$0xf]
  %v90 = vld [vmem:[%s1 + $0xdc] sm:$0xf]
  %v91 = vld [vmem:[%s1 + $0xe0] sm:$0xf]
  %v92 = vld [vmem:[%s1 + $0xe4] sm:$0xf]
  %v93 = vld [vmem:[%s1 + $0xe8] sm:$0xf]
  %v94 = vld [vmem:[%s1 + $0xec] sm:$0xf]
  %v95 = vld [vmem:[%s1 + $0xf0] sm:$0xf]
  %v96 = vld [vmem:[%s1 + $0xf4] sm:$0xf]
  %v97 = vld [vmem:[%s1 + $0xf8] sm:$0xf]
  %v98 = vld [vmem:[%s1 + $0xfc] sm:$0xf]
  %v107 = vunpack.c.l.b16 %v27
  %v108 = vunpack.c.h.b16 %v27
  %v109 = vunpack.c.l.b16 %v28
  %v110 = vunpack.c.h.b16 %v28
  %v111 = vunpack.c.l.b16 %v29
  %v112 = vunpack.c.h.b16 %v29
  %v113 = vunpack.c.l.b16 %v30
  %v114 = vunpack.c.h.b16 %v30
  %v115 = vunpack.c.l.b16 %v31
  %v116 = vunpack.c.h.b16 %v31
  %v117 = vunpack.c.l.b16 %v32
  %v118 = vunpack.c.h.b16 %v32
  %v119 = vunpack.c.l.b16 %v33
  %v120 = vunpack.c.h.b16 %v33
  %v121 = vunpack.c.l.b16 %v34
  %v122 = vunpack.c.h.b16 %v34
  %v123 = vpack.c.b16 %v111, %v107
  %v124 = vpack.c.b16 %v112, %v108
  %v125 = vpack.c.b16 %v113, %v109
  %v126 = vpack.c.b16 %v114, %v110
  %v127 = vpack.c.b16 %v119, %v115
  %v128 = vpack.c.b16 %v120, %v116
  %v129 = vpack.c.b16 %v121, %v117
  %v130 = vpack.c.b16 %v122, %v118
  %v203 = vunpack.c.l.b16 %v35
  %v204 = vunpack.c.l.b16 %v36
  %v205 = vunpack.c.l.b16 %v37
  %v206 = vunpack.c.l.b16 %v38
  %v207 = vunpack.c.l.b16 %v39
  %v208 = vunpack.c.l.b16 %v40
  %v209 = vunpack.c.l.b16 %v41
  %v210 = vunpack.c.l.b16 %v42
  %v211 = vunpack.c.l.b16 %v43
  %v212 = vunpack.c.l.b16 %v44
  %v213 = vunpack.c.l.b16 %v45
  %v214 = vunpack.c.l.b16 %v46
  %v215 = vunpack.c.l.b16 %v47
  %v216 = vunpack.c.l.b16 %v48
  %v217 = vunpack.c.l.b16 %v49
  %v218 = vunpack.c.l.b16 %v50
  %v219 = vunpack.c.l.b16 %v51
  %v220 = vunpack.c.l.b16 %v52
  %v221 = vunpack.c.l.b16 %v53
  %v222 = vunpack.c.l.b16 %v54
  %v223 = vunpack.c.l.b16 %v55
  %v224 = vunpack.c.l.b16 %v56
  %v225 = vunpack.c.l.b16 %v57
  %v226 = vunpack.c.l.b16 %v58
  %v227 = vunpack.c.l.b16 %v59
  %v228 = vunpack.c.l.b16 %v60
  %v229 = vunpack.c.l.b16 %v61
  %v230 = vunpack.c.l.b16 %v62
  %v231 = vunpack.c.l.b16 %v63
  %v232 = vunpack.c.l.b16 %v64
  %v233 = vunpack.c.l.b16 %v65
  %v234 = vunpack.c.l.b16 %v66
  %v235 = vunpack.c.l.b16 %v67
  %v236 = vunpack.c.l.b16 %v68
  %v237 = vunpack.c.l.b16 %v69
  %v238 = vunpack.c.l.b16 %v70
  %v239 = vunpack.c.l.b16 %v71
  %v240 = vunpack.c.l.b16 %v72
  %v241 = vunpack.c.l.b16 %v73
  %v242 = vunpack.c.l.b16 %v74
  %v243 = vunpack.c.l.b16 %v75
  %v244 = vunpack.c.l.b16 %v76
  %v245 = vunpack.c.l.b16 %v77
  %v246 = vunpack.c.l.b16 %v78
  %v247 = vunpack.c.l.b16 %v79
  %v248 = vunpack.c.l.b16 %v80
  %v249 = vunpack.c.l.b16 %v81
  %v250 = vunpack.c.l.b16 %v82
  %v251 = vunpack.c.l.b16 %v83
  %v252 = vunpack.c.l.b16 %v84
  %v253 = vunpack.c.l.b16 %v85
  %v254 = vunpack.c.l.b16 %v86
  %v255 = vunpack.c.l.b16 %v87
  %v256 = vunpack.c.l.b16 %v88
  %v257 = vunpack.c.l.b16 %v89
  %v258 = vunpack.c.l.b16 %v90
  %v259 = vunpack.c.l.b16 %v91
  %v260 = vunpack.c.l.b16 %v92
  %v261 = vunpack.c.l.b16 %v93
  %v262 = vunpack.c.l.b16 %v94
  %v263 = vunpack.c.l.b16 %v95
  %v264 = vunpack.c.l.b16 %v96
  %v265 = vunpack.c.l.b16 %v97
  %v266 = vunpack.c.l.b16 %v98
  %v267 = vpack.c.b16 %v204, %v203
  %v268 = vpack.c.b16 %v206, %v205
  %v269 = vpack.c.b16 %v208, %v207
  %v270 = vpack.c.b16 %v210, %v209
  %v271 = vpack.c.b16 %v212, %v211
  %v272 = vpack.c.b16 %v214, %v213
  %v273 = vpack.c.b16 %v216, %v215
  %v274 = vpack.c.b16 %v218, %v217
  %v275 = vpack.c.b16 %v220, %v219
  %v276 = vpack.c.b16 %v222, %v221
  %v277 = vpack.c.b16 %v224, %v223
  %v278 = vpack.c.b16 %v226, %v225
  %v279 = vpack.c.b16 %v228, %v227
  %v280 = vpack.c.b16 %v230, %v229
  %v281 = vpack.c.b16 %v232, %v231
  %v282 = vpack.c.b16 %v234, %v233
  %v283 = vpack.c.b16 %v236, %v235
  %v284 = vpack.c.b16 %v238, %v237
  %v285 = vpack.c.b16 %v240, %v239
  %v286 = vpack.c.b16 %v242, %v241
  %v287 = vpack.c.b16 %v244, %v243
  %v288 = vpack.c.b16 %v246, %v245
  %v289 = vpack.c.b16 %v248, %v247
  %v290 = vpack.c.b16 %v250, %v249
  %v291 = vpack.c.b16 %v252, %v251
  %v292 = vpack.c.b16 %v254, %v253
  %v293 = vpack.c.b16 %v256, %v255
  %v294 = vpack.c.b16 %v258, %v257
  %v295 = vpack.c.b16 %v260, %v259
  %v296 = vpack.c.b16 %v262, %v261
  %v297 = vpack.c.b16 %v264, %v263
  %v298 = vpack.c.b16 %v266, %v265
  %331 = vmatprep.subr.bf16.mxu0 0
  %332 = vmatpush1.bf16.msra.mxu0 %v274
  %333 = vmatprep.subr.bf16.mxu0 0
  %334 = vmatpush1.bf16.msra.mxu0 %v273
  %335 = vmatprep.subr.bf16.mxu0 0
  %336 = vmatpush1.bf16.msra.mxu0 %v272
  %337 = vmatprep.subr.bf16.mxu0 0
  %338 = vmatpush1.bf16.msra.mxu0 %v271
  %339 = vmatprep.subr.bf16.mxu0 0
  %340 = vmatpush1.bf16.msra.mxu0 %v270
  %341 = vmatprep.subr.bf16.mxu0 0
  %342 = vmatpush1.bf16.msra.mxu0 %v269
  %343 = vmatprep.subr.bf16.mxu0 0
  %344 = vmatpush1.bf16.msra.mxu0 %v268
  %345 = vmatprep.subr.bf16.mxu0 0
  %346 = vmatpush1.bf16.msra.mxu0 %v267
  %347 = vmatprep.subr.bf16.mxu0 0
  %348 = vmatpush2.bf16.msra.mxu0 %v282
  %349 = vmatprep.subr.bf16.mxu0 0
  %350 = vmatpush2.bf16.msra.mxu0 %v281
  %351 = vmatprep.subr.bf16.mxu0 0
  %352 = vmatpush2.bf16.msra.mxu0 %v280
  %353 = vmatprep.subr.bf16.mxu0 0
  %354 = vmatpush2.bf16.msra.mxu0 %v279
  %355 = vmatprep.subr.bf16.mxu0 0
  %356 = vmatpush2.bf16.msra.mxu0 %v278
  %357 = vmatprep.subr.bf16.mxu0 0
  %358 = vmatpush2.bf16.msra.mxu0 %v277
  %359 = vmatprep.subr.bf16.mxu0 0
  %360 = vmatpush2.bf16.msra.mxu0 %v276
  %361 = vmatprep.subr.bf16.mxu0 0
  %362 = vmatpush2.bf16.msra.mxu0 %v275
  %363 = vmatprep.mubr.bf16.mxu0 %v124
  %364 = vmatmul.mubr.bf16.gmra.mxu0 %v123
  %v365 = vpop.f32.mrf.mxu0
  %v366 = vadd.f32 0.0, %v365
  %v367 = vpop.f32.mrf.mxu0
  %v368 = vpop.f32.mrf.mxu0
  %v369 = vadd.f32 0.0, %v368
  %v370 = vpop.f32.mrf.mxu0
  %371 = vmatprep.mubr.bf16.mxu0 %v128
  %372 = vmatmul.mubr.bf16.gmra.mxu0 %v127
  %v373 = vpop.f32.mrf.mxu0
  %v374 = vadd.f32 0.0, %v373
  %v375 = vpop.f32.mrf.mxu0
  %v376 = vpop.f32.mrf.mxu0
  %v377 = vadd.f32 0.0, %v376
  %v378 = vpop.f32.mrf.mxu0
  %379 = vdwg.mxu0
  %380 = vmatprep.subr.bf16.mxu0 0
  %381 = vmatpush1.bf16.msra.mxu0 %v290
  %382 = vmatprep.subr.bf16.mxu0 0
  %383 = vmatpush1.bf16.msra.mxu0 %v289
  %384 = vmatprep.subr.bf16.mxu0 0
  %385 = vmatpush1.bf16.msra.mxu0 %v288
  %386 = vmatprep.subr.bf16.mxu0 0
  %387 = vmatpush1.bf16.msra.mxu0 %v287
  %388 = vmatprep.subr.bf16.mxu0 0
  %389 = vmatpush1.bf16.msra.mxu0 %v286
  %390 = vmatprep.subr.bf16.mxu0 0
  %391 = vmatpush1.bf16.msra.mxu0 %v285
  %392 = vmatprep.subr.bf16.mxu0 0
  %393 = vmatpush1.bf16.msra.mxu0 %v284
  %394 = vmatprep.subr.bf16.mxu0 0
  %395 = vmatpush1.bf16.msra.mxu0 %v283
  %396 = vmatprep.subr.bf16.mxu0 0
  %397 = vmatpush2.bf16.msra.mxu0 %v298
  %398 = vmatprep.subr.bf16.mxu0 0
  %399 = vmatpush2.bf16.msra.mxu0 %v297
  %400 = vmatprep.subr.bf16.mxu0 0
  %401 = vmatpush2.bf16.msra.mxu0 %v296
  %402 = vmatprep.subr.bf16.mxu0 0
  %403 = vmatpush2.bf16.msra.mxu0 %v295
  %404 = vmatprep.subr.bf16.mxu0 0
  %405 = vmatpush2.bf16.msra.mxu0 %v294
  %406 = vmatprep.subr.bf16.mxu0 0
  %407 = vmatpush2.bf16.msra.mxu0 %v293
  %408 = vmatprep.subr.bf16.mxu0 0
  %409 = vmatpush2.bf16.msra.mxu0 %v292
  %410 = vmatprep.subr.bf16.mxu0 0
  %411 = vmatpush2.bf16.msra.mxu0 %v291
  %412 = vmatprep.mubr.bf16.mxu0 %v126
  %413 = vmatmul.mubr.bf16.gmra.mxu0 %v125
  %v414 = vpop.f32.mrf.mxu0
  %v415 = vadd.f32 %v366, %v414
  %v416 = vpop.f32.mrf.mxu0
  %v417 = vpop.f32.mrf.mxu0
  %v418 = vadd.f32 %v369, %v417
  %v419 = vpop.f32.mrf.mxu0
  %420 = vmatprep.mubr.bf16.mxu0 %v130
  %421 = vmatmul.mubr.bf16.gmra.mxu0 %v129
  %v422 = vpop.f32.mrf.mxu0
  %v423 = vadd.f32 %v374, %v422
  %v424 = vpop.f32.mrf.mxu0
  %v425 = vpop.f32.mrf.mxu0
  %v426 = vadd.f32 %v377, %v425
  %v427 = vpop.f32.mrf.mxu0
  %428 = vdwg.mxu0
  %v429 = vadd.f32 %v23, %v415
  %v430 = vadd.f32 %v24, %v418
  %v431 = vadd.f32 %v25, %v423
  %v432 = vadd.f32 %v26, %v426
  %433 = vst [vmem:[#allocation2] sm:$0xff] %v429
  %434 = vst [vmem:[#allocation2 + $0x8] sm:$0xff] %v430
  %435 = vst [vmem:[#allocation2 + $0x10] sm:$0xff] %v431
  %436 = vst [vmem:[#allocation2 + $0x18] sm:$0xff] %v432
  // Predicated region
  $region18: #{vae_forward.11} parent=0 // pred_check
    %p437 = pneg %p15
  $region19: #{vae_forward.11} parent=0 // pred_check_branch
    %439 = sbr.rel (%p437) target = $region21
  $region20: #{vae_forward.11} parent=0 // pred_region
    %v440 = vld [vmem:[#allocation2] sm:$0xff]
    %v441 = vld [vmem:[#allocation2 + $0x8] sm:$0xff]
    %v442 = vld [vmem:[#allocation2 + $0x10] sm:$0xff]
    %v443 = vld [vmem:[#allocation2 + $0x18] sm:$0xff]
    %v444 = vld [vmem:[%s2] sm:$0x1]
    %v446 = vlaneseq
    %v447 = vshrl.u32 %v446, 7
    %v448 = vsub.s32 0, %v447
    %v449 = vrot.slane %v444, %v448
    %v451 = vadd.f32 %v440, %v449
    %v452 = vadd.f32 %v441, %v449
    %v453 = vadd.f32 %v442, %v449
    %v454 = vadd.f32 %v443, %v449
    %v455 = vmax.f32 %v451, 0.0
    %v456 = vmax.f32 %v452, 0.0
    %v457 = vmax.f32 %v453, 0.0
    %v458 = vmax.f32 %v454, 0.0
    %v459 = vpack.c.bf16 %v456, %v455
    %v460 = vpack.c.bf16 %v458, %v457
    %v463 = vunpack.c.l.b16 %v459
    %v464 = vunpack.c.h.b16 %v459
    %v465 = vunpack.c.l.b16 %v460
    %v466 = vunpack.c.h.b16 %v460
    %v467 = vpack.c.b16 %v463, %v463
    %v468 = vpack.c.b16 %v464, %v464
    %v469 = vpack.c.b16 %v465, %v465
    %v470 = vpack.c.b16 %v466, %v466
    %475 = vst [vmem:[%s3] sm:$0xf] %v467
    %476 = vst [vmem:[%s3 + $0x4] sm:$0xf] %v468
    %477 = vst [vmem:[%s3 + $0x8] sm:$0xf] %v469
    %478 = vst [vmem:[%s3 + $0xc] sm:$0xf] %v470
  $region21: #{vae_forward.11} parent=0 // pred_fallthru
    _
  // Predicated region
  $region22: #{vae_forward.11} parent=0 // pred_check
    _
  $region23: #{vae_forward.11} parent=0 // pred_check_branch
    %480 = sbr.rel (0) target = $region25
  $region24: #{vae_forward.11} parent=0 // pred_region
    _
  $region25: #{vae_forward.11} parent=0 // pred_fallthru
    _
  // Predicated region
  $region26: #{vae_forward.11} parent=0 // pred_check
    _
  $region27: #{vae_forward.11} parent=0 // pred_check_branch
    %482 = sbr.rel (0) target = $region29
  $region28: #{vae_forward.11} parent=0 // pred_region
    _
  $region29: #{vae_forward.11} parent=0 // pred_fallthru
    _

// kernel: vae_forward.13
$region0: #{vae_forward.13}
  #allocation0 [shape = 'u32[]', space=smem, size = 0x4, offset = 0x4, fixed_abs, tag = 'smem constant byte address 0x4 - core index']
  #allocation1 [shape = 'u32[144,128]{1,0:T(1,128)}', space=vmem, size = 0x12000, scoped, tag = 'internal scratch']
  #allocation2 [shape = 'f32[8,256]{1,0:T(8,128)}', space=vmem, size = 0x2000, scoped, tag = 'scratch operand']
  %s0 = inlined_call_operand.vmem [shape: bf16[8,2048], index: 0, kind: input, shape index: {}]
  %s1 = inlined_call_operand.vmem [shape: bf16[2048,256], index: 1, kind: input, shape index: {}]
  %s2 = inlined_call_operand.vmem [shape: f32[1,256], index: 2, kind: input, shape index: {}]
  %s3 = inlined_call_operand.vmem [shape: bf16[8,256], index: 3, kind: output, shape index: {}]
  %s4 = sld [smem:[#allocation0]]
  $region53: #{vae_forward.13} parent=0
    _
  %s6 = ssub.s32 1, %s4
  %s7 = scalar_select 0, %s6, %s4
  loop: start=0, step=1, limit=6
  $region2: #{vae_forward.13} parent=0 // loop_pre_header
    _
  $region3: #{vae_forward.13} parent=0 // loop_header
    %s9 = sphi 0, %s13
    %p10 = scmp.ge.s32.totalorder %s9, 6
    %s16 = sphi 0, %s35
    %s17 = sphi 0, %s31
    %s18 = sphi 0, %s27
    %s19 = sphi 0, %s16
    %s20 = sphi 0, %s17
    %s21 = sphi 0, %s18
    %s22 = sphi 0, %s19
    %s23 = sphi 0, %s20
    %s24 = sphi 0, %s21
    %s40 = sphi 0, %s42
    %s43 = sphi 0, %s40
    %s44 = sphi 0, %s43
    %s60 = sphi 0, %s44
    %s68 = sphi 0, %s70
    %s71 = sphi 0, %s68
    %s72 = sphi 0, %s71
    %s88 = sphi 0, %s72
    %s94 = sphi 0, %s96
    %s97 = sphi 0, %s94
    %s98 = sphi 0, %s97
    %s114 = sphi 0, %s98
    %s122 = sphi 0, %s124
    %s125 = sphi 0, %s122
    %s126 = sphi 0, %s125
    %s142 = sphi 0, %s126
  $region4: #{vae_forward.13} parent=0 // loop_header_branch
    %12 = sbr.rel (%p10) target = $region8
  $region5: #{vae_forward.13} parent=0 // loop_body
    %s14 = ssub.s32 %s9, 1
    %s15 = ssub.s32 %s9, 2
    %s25 = sadd.s32 1, %s18
    %p26 = scmp.ge.s32.totalorder %s25, 4
    %s27 = scalar_select %p26, 0, %s25
    %s28 = sadd.s32 1, %s17
    %s29 = scalar_select %p26, %s28, %s17
    %p30 = scmp.ge.s32.totalorder %s29, 1
    %s31 = scalar_select %p30, 0, %s29
    %s32 = sadd.s32 1, %s16
    %s33 = scalar_select %p30, %s32, %s16
    %p34 = scmp.ge.s32.totalorder %s33, 1
    %s35 = scalar_select %p34, 0, %s33
    %s36 = ssub.s32 %s16, %s35
    %s37 = ssub.s32 %s18, %s27
    %s38 = sor.u32 %s36, %s37
    %p39 = scmp.eq.s32.totalorder %s38, 0
    %s41 = sadd.s32 %s40, 1
    %s42 = scalar_select %p39, %s40, %s41
    %p45 = pneg %p39
    %p46 = scmp.eq.s32.totalorder %s9, 3
    %p47 = por %p45, %p46
    %p48 = scmp.ne.s32.totalorder %s40, %s43
    %p49 = scmp.eq.s32.totalorder %s9, 0
    %p50 = por %p48, %p49
    %p51 = scmp.ne.s32.totalorder %s40, %s43
    %p52 = scmp.eq.s32.totalorder %s14, 3
    %p53 = por %p51, %p52
    %p54 = scmp.ne.s32.totalorder %s43, %s44
    %p55 = scmp.eq.s32.totalorder %s14, 0
    %p56 = por %p54, %p55
    %p57 = scmp.ne.s32.totalorder %s43, %s44
    %p58 = scmp.eq.s32.totalorder %s15, 3
    %p59 = por %p57, %p58
    %p61 = scmp.ne.s32.totalorder %s44, %s60
    %p62 = scmp.eq.s32.totalorder %s15, 0
    %p63 = por %p61, %p62
    %s64 = ssub.s32 %s18, %s27
    %s65 = ssub.s32 %s17, %s31
    %s66 = sor.u32 %s64, %s65
    %p67 = scmp.eq.s32.totalorder %s66, 0
    %s69 = sadd.s32 %s68, 1
    %s70 = scalar_select %p67, %s68, %s69
    %p73 = pneg %p67
    %p74 = scmp.eq.s32.totalorder %s9, 3
    %p75 = por %p73, %p74
    %p76 = scmp.ne.s32.totalorder %s68, %s71
    %p77 = scmp.eq.s32.totalorder %s9, 0
    %p78 = por %p76, %p77
    %p79 = scmp.ne.s32.totalorder %s68, %s71
    %p80 = scmp.eq.s32.totalorder %s14, 3
    %p81 = por %p79, %p80
    %p82 = scmp.ne.s32.totalorder %s71, %s72
    %p83 = scmp.eq.s32.totalorder %s14, 0
    %p84 = por %p82, %p83
    %p85 = scmp.ne.s32.totalorder %s71, %s72
    %p86 = scmp.eq.s32.totalorder %s15, 3
    %p87 = por %p85, %p86
    %p89 = scmp.ne.s32.totalorder %s72, %s88
    %p90 = scmp.eq.s32.totalorder %s15, 0
    %p91 = por %p89, %p90
    %s92 = ssub.s32 %s17, %s31
    %p93 = scmp.eq.s32.totalorder %s92, 0
    %s95 = sadd.s32 %s94, 1
    %s96 = scalar_select %p93, %s94, %s95
    %p99 = pneg %p93
    %p100 = scmp.eq.s32.totalorder %s9, 3
    %p101 = por %p99, %p100
    %p102 = scmp.ne.s32.totalorder %s94, %s97
    %p103 = scmp.eq.s32.totalorder %s9, 0
    %p104 = por %p102, %p103
    %p105 = scmp.ne.s32.totalorder %s94, %s97
    %p106 = scmp.eq.s32.totalorder %s14, 3
    %p107 = por %p105, %p106
    %p108 = scmp.ne.s32.totalorder %s97, %s98
    %p109 = scmp.eq.s32.totalorder %s14, 0
    %p110 = por %p108, %p109
    %p111 = scmp.ne.s32.totalorder %s97, %s98
    %p112 = scmp.eq.s32.totalorder %s15, 3
    %p113 = por %p111, %p112
    %p115 = scmp.ne.s32.totalorder %s98, %s114
    %p116 = scmp.eq.s32.totalorder %s15, 0
    %p117 = por %p115, %p116
    %s118 = ssub.s32 %s16, %s35
    %s119 = ssub.s32 %s17, %s31
    %s120 = sor.u32 %s118, %s119
    %p121 = scmp.eq.s32.totalorder %s120, 0
    %s123 = sadd.s32 %s122, 1
    %s124 = scalar_select %p121, %s122, %s123
    %p127 = pneg %p121
    %p128 = scmp.eq.s32.totalorder %s9, 3
    %p129 = por %p127, %p128
    %p130 = scmp.ne.s32.totalorder %s122, %s125
    %p131 = scmp.eq.s32.totalorder %s9, 0
    %p132 = por %p130, %p131
    %p133 = scmp.ne.s32.totalorder %s122, %s125
    %p134 = scmp.eq.s32.totalorder %s14, 3
    %p135 = por %p133, %p134
    %p136 = scmp.ne.s32.totalorder %s125, %s126
    %p137 = scmp.eq.s32.totalorder %s14, 0
    %p138 = por %p136, %p137
    %p139 = scmp.ne.s32.totalorder %s125, %s126
    %p140 = scmp.eq.s32.totalorder %s15, 3
    %p141 = por %p139, %p140
    %p143 = scmp.ne.s32.totalorder %s126, %s142
    %p144 = scmp.eq.s32.totalorder %s15, 0
    %p145 = por %p143, %p144
    %p146 = scmp.le.s32.totalorder 1, %s9
    %p147 = scmp.lt.s32.totalorder %s9, 5
    %p148 = pnand %p146, %p147
    %p149 = pneg %p148
    // Predicated region
    $region9: #{vae_forward.13} parent=5 // pred_check
      _
    $region10: #{vae_forward.13} parent=5 // pred_check_branch
      %151 = sbr.rel (%p148) target = $region12
    $region11: #{vae_forward.13} parent=5 // pred_region
      %s152 = ssub.s32 %s9, 1
      // Predicated region
      $region13: #{vae_forward.13} parent=11 // pred_check
        %p153 = pneg %p110
      $region14: #{vae_forward.13} parent=11 // pred_check_branch
        %155 = sbr.rel (%p153) target = $region16
      $region15: #{vae_forward.13} parent=11 // pred_region
        %s156 = smul.u32 2, %s20
        %p157 = scmp.lt.s32.totalorder %s156, 1
        %s158 = scalar_select %p157, %s156, 1
        %s159 = scalar_lea.vmem %s2, %s158
        %s160 = smul.u32 2, %s20
      $region16: #{vae_forward.13} parent=11 // pred_fallthru
        _
    $region12: #{vae_forward.13} parent=5 // pred_fallthru
      _
    %p161 = scmp.lt.s32.totalorder %s9, 4
    // Predicated region
    $region17: #{vae_forward.13} parent=5 // pred_check
      %p162 = pneg %p161
    $region18: #{vae_forward.13} parent=5 // pred_check_branch
      %164 = sbr.rel (%p162) target = $region20
    $region19: #{vae_forward.13} parent=5 // pred_region
      // Predicated region
      $region21: #{vae_forward.13} parent=19 // pred_check
        %p165 = pneg %p50
      $region22: #{vae_forward.13} parent=19 // pred_check_branch
        %167 = sbr.rel (%p165) target = $region24
      $region23: #{vae_forward.13} parent=19 // pred_region
        %s168 = smul.u32 4, %s18
        %p169 = scmp.lt.s32.totalorder %s16, 0
        %s170 = scalar_select %p169, %s16, 0
        %p171 = scmp.lt.s32.totalorder %s168, 15
        %s172 = scalar_select %p171, %s168, 15
        %s173 = smul.addr %s170, 16
        %s174 = sadd.s32 %s172, %s173
        %s175 = smul.addr %s174, 4
        %s176 = scalar_lea.vmem %s0, %s175
        %s177 = smul.u32 4, %s18
      $region24: #{vae_forward.13} parent=19 // pred_fallthru
        _
      // Predicated region
      $region25: #{vae_forward.13} parent=19 // pred_check
        %p178 = pneg %p78
      $region26: #{vae_forward.13} parent=19 // pred_check_branch
        %180 = sbr.rel (%p178) target = $region28
      $region27: #{vae_forward.13} parent=19 // pred_region
        %s181 = smul.u32 64, %s18
        %s182 = smul.u32 2, %s17
        %p183 = scmp.lt.s32.totalorder %s181, 255
        %s184 = scalar_select %p183, %s181, 255
        %p185 = scmp.lt.s32.totalorder %s182, 1
        %s186 = scalar_select %p185, %s182, 1
        %s187 = smul.addr %s184, 2
        %s188 = sadd.s32 %s186, %s187
        %s189 = smul.addr %s188, 4
        %s190 = scalar_lea.vmem %s1, %s189
        %s191 = smul.u32 64, %s18
        %s192 = smul.u32 2, %s17
      $region28: #{vae_forward.13} parent=19 // pred_fallthru
        _
    $region20: #{vae_forward.13} parent=5 // pred_fallthru
      _
    %p193 = scmp.le.s32.totalorder 1, %s9
    %p194 = scmp.lt.s32.totalorder %s9, 5
    %p195 = pnand %p193, %p194
    %p196 = pneg %p195
    // Predicated region
    $region29: #{vae_forward.13} parent=5 // pred_check
      _
    $region30: #{vae_forward.13} parent=5 // pred_check_branch
      %198 = sbr.rel (%p195) target = $region32
    $region31: #{vae_forward.13} parent=5 // pred_region
      %s199 = ssub.s32 %s9, 1
      %s200 = smul.u32 4, %s21
      %p201 = scmp.lt.s32.totalorder %s19, 0
      %s202 = scalar_select %p201, %s19, 0
      %p203 = scmp.lt.s32.totalorder %s200, 15
      %s204 = scalar_select %p203, %s200, 15
      %s205 = smul.addr %s202, 16
      %s206 = sadd.s32 %s204, %s205
      %s207 = smul.addr %s206, 4
      %s208 = scalar_lea.vmem %s0, %s207
      %p209 = pneg %p56
      %p210 = pneg %p53
      %s211 = smul.u32 64, %s21
      %s212 = smul.u32 2, %s20
      %p213 = scmp.lt.s32.totalorder %s211, 255
      %s214 = scalar_select %p213, %s211, 255
      %p215 = scmp.lt.s32.totalorder %s212, 1
      %s216 = scalar_select %p215, %s212, 1
      %s217 = smul.addr %s214, 2
      %s218 = sadd.s32 %s216, %s217
      %s219 = smul.addr %s218, 4
      %s220 = scalar_lea.vmem %s1, %s219
      %p221 = pneg %p84
      %p222 = pneg %p81
      %s223 = smul.u32 2, %s20
      %p224 = scmp.lt.s32.totalorder %s223, 1
      %s225 = scalar_select %p224, %s223, 1
      %s226 = scalar_lea.vmem %s2, %s225
      %p227 = pneg %p110
      %p228 = pneg %p107
      %p229 = pneg %p138
      %p230 = pneg %p135
      %s231 = smul.u32 2, %s20
      %p232 = scmp.lt.s32.totalorder %s19, 0
      %s233 = scalar_select %p232, %s19, 0
      %p234 = scmp.lt.s32.totalorder %s231, 1
      %s235 = scalar_select %p234, %s231, 1
      %s236 = smul.addr %s233, 2
      %s237 = sadd.s32 %s235, %s236
      %s238 = smul.addr %s237, 4
      %s239 = scalar_lea.vmem %s3, %s238
      %s240 = smul.u32 4, %s21
      %p241 = scmp.lt.s32.totalorder %s19, 0
      %s242 = scalar_select %p241, %s19, 0
      %p243 = scmp.lt.s32.totalorder %s240, 15
      %s244 = scalar_select %p243, %s240, 15
      %s245 = smul.addr %s242, 16
      %s246 = sadd.s32 %s244, %s245
      %s247 = smul.addr %s246, 4
      %s248 = scalar_lea.vmem %s0, %s247
      %s249 = smul.u32 4, %s21
      %s250 = smul.u32 64, %s21
      %s251 = smul.u32 2, %s20
      %p252 = scmp.lt.s32.totalorder %s250, 255
      %s253 = scalar_select %p252, %s250, 255
      %p254 = scmp.lt.s32.totalorder %s251, 1
      %s255 = scalar_select %p254, %s251, 1
      %s256 = smul.addr %s253, 2
      %s257 = sadd.s32 %s255, %s256
      %s258 = smul.addr %s257, 4
      %s259 = scalar_lea.vmem %s1, %s258
      %s260 = smul.u32 64, %s21
      %s261 = smul.u32 2, %s20
      %s262 = smul.u32 2, %s20
      %p263 = scmp.lt.s32.totalorder %s262, 1
      %s264 = scalar_select %p263, %s262, 1
      %s265 = scalar_lea.vmem %s2, %s264
      %s266 = smul.u32 2, %s20
      %s267 = smul.u32 2, %s20
      %p268 = scmp.lt.s32.totalorder %s19, 0
      %s269 = scalar_select %p268, %s19, 0
      %p270 = scmp.lt.s32.totalorder %s267, 1
      %s271 = scalar_select %p270, %s267, 1
      %s272 = smul.addr %s269, 2
      %s273 = sadd.s32 %s271, %s272
      %s274 = smul.addr %s273, 4
      %s275 = scalar_lea.vmem %s3, %s274
      %s276 = smul.u32 2, %s20
      %p277 = scmp.eq.s32.totalorder %s21, 0
      // Predicated region
      $region33: #{vae_forward.13} parent=31 // pred_check
        %p278 = pneg %p277
      $region34: #{vae_forward.13} parent=31 // pred_check_branch
        %280 = sbr.rel (%p278) target = $region36
      $region35: #{vae_forward.13} parent=31 // pred_region
        %281 = vst [vmem:[#allocation2] sm:$0xff] 0.0
        %282 = vst [vmem:[#allocation2 + $0x8] sm:$0xff] 0.0
      $region36: #{vae_forward.13} parent=31 // pred_fallthru
        _
      %v283 = vld [vmem:[#allocation2] sm:$0xff]
      %v284 = vld [vmem:[#allocation2 + $0x8] sm:$0xff]
      %v285 = vld [vmem:[%s248] sm:$0xff]
      %v286 = vld [vmem:[%s248 + $0x8] sm:$0xff]
      %v287 = vld [vmem:[%s259] sm:$0xff]
      %v288 = vld [vmem:[%s259 + $0x8] sm:$0xff]
      %v289 = vld [vmem:[%s259 + $0x10] sm:$0xff]
      %v290 = vld [vmem:[%s259 + $0x18] sm:$0xff]
      %v291 = vld [vmem:[%s259 + $0x20] sm:$0xff]
      %v292 = vld [vmem:[%s259 + $0x28] sm:$0xff]
      %v293 = vld [vmem:[%s259 + $0x30] sm:$0xff]
      %v294 = vld [vmem:[%s259 + $0x38] sm:$0xff]
      %v295 = vld [vmem:[%s259 + $0x40] sm:$0xff]
      %v296 = vld [vmem:[%s259 + $0x48] sm:$0xff]
      %v297 = vld [vmem:[%s259 + $0x50] sm:$0xff]
      %v298 = vld [vmem:[%s259 + $0x58] sm:$0xff]
      %v299 = vld [vmem:[%s259 + $0x60] sm:$0xff]
      %v300 = vld [vmem:[%s259 + $0x68] sm:$0xff]
      %v301 = vld [vmem:[%s259 + $0x70] sm:$0xff]
      %v302 = vld [vmem:[%s259 + $0x78] sm:$0xff]
      %v303 = vld [vmem:[%s259 + $0x80] sm:$0xff]
      %v304 = vld [vmem:[%s259 + $0x88] sm:$0xff]
      %v305 = vld [vmem:[%s259 + $0x90] sm:$0xff]
      %v306 = vld [vmem:[%s259 + $0x98] sm:$0xff]
      %v307 = vld [vmem:[%s259 + $0xa0] sm:$0xff]
      %v308 = vld [vmem:[%s259 + $0xa8] sm:$0xff]
      %v309 = vld [vmem:[%s259 + $0xb0] sm:$0xff]
      %v310 = vld [vmem:[%s259 + $0xb8] sm:$0xff]
      %v311 = vld [vmem:[%s259 + $0xc0] sm:$0xff]
      %v312 = vld [vmem:[%s259 + $0xc8] sm:$0xff]
      %v313 = vld [vmem:[%s259 + $0xd0] sm:$0xff]
      %v314 = vld [vmem:[%s259 + $0xd8] sm:$0xff]
      %v315 = vld [vmem:[%s259 + $0xe0] sm:$0xff]
      %v316 = vld [vmem:[%s259 + $0xe8] sm:$0xff]
      %v317 = vld [vmem:[%s259 + $0xf0] sm:$0xff]
      %v318 = vld [vmem:[%s259 + $0xf8] sm:$0xff]
      %v319 = vld [vmem:[%s259 + $0x100] sm:$0xff]
      %v320 = vld [vmem:[%s259 + $0x108] sm:$0xff]
      %v321 = vld [vmem:[%s259 + $0x110] sm:$0xff]
      %v322 = vld [vmem:[%s259 + $0x118] sm:$0xff]
      %v323 = vld [vmem:[%s259 + $0x120] sm:$0xff]
      %v324 = vld [vmem:[%s259 + $0x128] sm:$0xff]
      %v325 = vld [vmem:[%s259 + $0x130] sm:$0xff]
      %v326 = vld [vmem:[%s259 + $0x138] sm:$0xff]
      %v327 = vld [vmem:[%s259 + $0x140] sm:$0xff]
      %v328 = vld [vmem:[%s259 + $0x148] sm:$0xff]
      %v329 = vld [vmem:[%s259 + $0x150] sm:$0xff]
      %v330 = vld [vmem:[%s259 + $0x158] sm:$0xff]
      %v331 = vld [vmem:[%s259 + $0x160] sm:$0xff]
      %v332 = vld [vmem:[%s259 + $0x168] sm:$0xff]
      %v333 = vld [vmem:[%s259 + $0x170] sm:$0xff]
      %v334 = vld [vmem:[%s259 + $0x178] sm:$0xff]
      %v335 = vld [vmem:[%s259 + $0x180] sm:$0xff]
      %v336 = vld [vmem:[%s259 + $0x188] sm:$0xff]
      %v337 = vld [vmem:[%s259 + $0x190] sm:$0xff]
      %v338 = vld [vmem:[%s259 + $0x198] sm:$0xff]
      %v339 = vld [vmem:[%s259 + $0x1a0] sm:$0xff]
      %v340 = vld [vmem:[%s259 + $0x1a8] sm:$0xff]
      %v341 = vld [vmem:[%s259 + $0x1b0] sm:$0xff]
      %v342 = vld [vmem:[%s259 + $0x1b8] sm:$0xff]
      %v343 = vld [vmem:[%s259 + $0x1c0] sm:$0xff]
      %v344 = vld [vmem:[%s259 + $0x1c8] sm:$0xff]
      %v345 = vld [vmem:[%s259 + $0x1d0] sm:$0xff]
      %v346 = vld [vmem:[%s259 + $0x1d8] sm:$0xff]
      %v347 = vld [vmem:[%s259 + $0x1e0] sm:$0xff]
      %v348 = vld [vmem:[%s259 + $0x1e8] sm:$0xff]
      %v349 = vld [vmem:[%s259 + $0x1f0] sm:$0xff]
      %v350 = vld [vmem:[%s259 + $0x1f8] sm:$0xff]
      %v353 = vunpack.c.l.b16 %v285
      %v354 = vunpack.c.h.b16 %v285
      %v355 = vunpack.c.l.b16 %v286
      %v356 = vunpack.c.h.b16 %v286
      %v357 = vpack.c.b16 %v353, %v353
      %v358 = vpack.c.b16 %v354, %v354
      %v359 = vpack.c.b16 %v355, %v355
      %v360 = vpack.c.b16 %v356, %v356
      %v429 = vunpack.c.l.b16 %v287
      %v430 = vunpack.c.h.b16 %v287
      %v431 = vunpack.c.l.b16 %v288
      %v432 = vunpack.c.h.b16 %v288
      %v433 = vunpack.c.l.b16 %v289
      %v434 = vunpack.c.h.b16 %v289
      %v435 = vunpack.c.l.b16 %v290
      %v436 = vunpack.c.h.b16 %v290
      %v437 = vunpack.c.l.b16 %v291
      %v438 = vunpack.c.h.b16 %v291
      %v439 = vunpack.c.l.b16 %v292
      %v440 = vunpack.c.h.b16 %v292
      %v441 = vunpack.c.l.b16 %v293
      %v442 = vunpack.c.h.b16 %v293
      %v443 = vunpack.c.l.b16 %v294
      %v444 = vunpack.c.h.b16 %v294
      %v445 = vunpack.c.l.b16 %v295
      %v446 = vunpack.c.h.b16 %v295
      %v447 = vunpack.c.l.b16 %v296
      %v448 = vunpack.c.h.b16 %v296
      %v449 = vunpack.c.l.b16 %v297
      %v450 = vunpack.c.h.b16 %v297
      %v451 = vunpack.c.l.b16 %v298
      %v452 = vunpack.c.h.b16 %v298
      %v453 = vunpack.c.l.b16 %v299
      %v454 = vunpack.c.h.b16 %v299
      %v455 = vunpack.c.l.b16 %v300
      %v456 = vunpack.c.h.b16 %v300
      %v457 = vunpack.c.l.b16 %v301
      %v458 = vunpack.c.h.b16 %v301
      %v459 = vunpack.c.l.b16 %v302
      %v460 = vunpack.c.h.b16 %v302
      %v461 = vunpack.c.l.b16 %v303
      %v462 = vunpack.c.h.b16 %v303
      %v463 = vunpack.c.l.b16 %v304
      %v464 = vunpack.c.h.b16 %v304
      %v465 = vunpack.c.l.b16 %v305
      %v466 = vunpack.c.h.b16 %v305
      %v467 = vunpack.c.l.b16 %v306
      %v468 = vunpack.c.h.b16 %v306
      %v469 = vunpack.c.l.b16 %v307
      %v470 = vunpack.c.h.b16 %v307
      %v471 = vunpack.c.l.b16 %v308
      %v472 = vunpack.c.h.b16 %v308
      %v473 = vunpack.c.l.b16 %v309
      %v474 = vunpack.c.h.b16 %v309
      %v475 = vunpack.c.l.b16 %v310
      %v476 = vunpack.c.h.b16 %v310
      %v477 = vunpack.c.l.b16 %v311
      %v478 = vunpack.c.h.b16 %v311
      %v479 = vunpack.c.l.b16 %v312
      %v480 = vunpack.c.h.b16 %v312
      %v481 = vunpack.c.l.b16 %v313
      %v482 = vunpack.c.h.b16 %v313
      %v483 = vunpack.c.l.b16 %v314
      %v484 = vunpack.c.h.b16 %v314
      %v485 = vunpack.c.l.b16 %v315
      %v486 = vunpack.c.h.b16 %v315
      %v487 = vunpack.c.l.b16 %v316
      %v488 = vunpack.c.h.b16 %v316
      %v489 = vunpack.c.l.b16 %v317
      %v490 = vunpack.c.h.b16 %v317
      %v491 = vunpack.c.l.b16 %v318
      %v492 = vunpack.c.h.b16 %v318
      %v493 = vunpack.c.l.b16 %v319
      %v494 = vunpack.c.h.b16 %v319
      %v495 = vunpack.c.l.b16 %v320
      %v496 = vunpack.c.h.b16 %v320
      %v497 = vunpack.c.l.b16 %v321
      %v498 = vunpack.c.h.b16 %v321
      %v499 = vunpack.c.l.b16 %v322
      %v500 = vunpack.c.h.b16 %v322
      %v501 = vunpack.c.l.b16 %v323
      %v502 = vunpack.c.h.b16 %v323
      %v503 = vunpack.c.l.b16 %v324
      %v504 = vunpack.c.h.b16 %v324
      %v505 = vunpack.c.l.b16 %v325
      %v506 = vunpack.c.h.b16 %v325
      %v507 = vunpack.c.l.b16 %v326
      %v508 = vunpack.c.h.b16 %v326
      %v509 = vunpack.c.l.b16 %v327
      %v510 = vunpack.c.h.b16 %v327
      %v511 = vunpack.c.l.b16 %v328
      %v512 = vunpack.c.h.b16 %v328
      %v513 = vunpack.c.l.b16 %v329
      %v514 = vunpack.c.h.b16 %v329
      %v515 = vunpack.c.l.b16 %v330
      %v516 = vunpack.c.h.b16 %v330
      %v517 = vunpack.c.l.b16 %v331
      %v518 = vunpack.c.h.b16 %v331
      %v519 = vunpack.c.l.b16 %v332
      %v520 = vunpack.c.h.b16 %v332
      %v521 = vunpack.c.l.b16 %v333
      %v522 = vunpack.c.h.b16 %v333
      %v523 = vunpack.c.l.b16 %v334
      %v524 = vunpack.c.h.b16 %v334
      %v525 = vunpack.c.l.b16 %v335
      %v526 = vunpack.c.h.b16 %v335
      %v527 = vunpack.c.l.b16 %v336
      %v528 = vunpack.c.h.b16 %v336
      %v529 = vunpack.c.l.b16 %v337
      %v530 = vunpack.c.h.b16 %v337
      %v531 = vunpack.c.l.b16 %v338
      %v532 = vunpack.c.h.b16 %v338
      %v533 = vunpack.c.l.b16 %v339
      %v534 = vunpack.c.h.b16 %v339
      %v535 = vunpack.c.l.b16 %v340
      %v536 = vunpack.c.h.b16 %v340
      %v537 = vunpack.c.l.b16 %v341
      %v538 = vunpack.c.h.b16 %v341
      %v539 = vunpack.c.l.b16 %v342
      %v540 = vunpack.c.h.b16 %v342
      %v541 = vunpack.c.l.b16 %v343
      %v542 = vunpack.c.h.b16 %v343
      %v543 = vunpack.c.l.b16 %v344
      %v544 = vunpack.c.h.b16 %v344
      %v545 = vunpack.c.l.b16 %v345
      %v546 = vunpack.c.h.b16 %v345
      %v547 = vunpack.c.l.b16 %v346
      %v548 = vunpack.c.h.b16 %v346
      %v549 = vunpack.c.l.b16 %v347
      %v550 = vunpack.c.h.b16 %v347
      %v551 = vunpack.c.l.b16 %v348
      %v552 = vunpack.c.h.b16 %v348
      %v553 = vunpack.c.l.b16 %v349
      %v554 = vunpack.c.h.b16 %v349
      %v555 = vunpack.c.l.b16 %v350
      %v556 = vunpack.c.h.b16 %v350
      %v557 = vpack.c.b16 %v431, %v429
      %v558 = vpack.c.b16 %v432, %v430
      %v559 = vpack.c.b16 %v435, %v433
      %v560 = vpack.c.b16 %v436, %v434
      %v561 = vpack.c.b16 %v439, %v437
      %v562 = vpack.c.b16 %v440, %v438
      %v563 = vpack.c.b16 %v443, %v441
      %v564 = vpack.c.b16 %v444, %v442
      %v565 = vpack.c.b16 %v447, %v445
      %v566 = vpack.c.b16 %v448, %v446
      %v567 = vpack.c.b16 %v451, %v449
      %v568 = vpack.c.b16 %v452, %v450
      %v569 = vpack.c.b16 %v455, %v453
      %v570 = vpack.c.b16 %v456, %v454
      %v571 = vpack.c.b16 %v459, %v457
      %v572 = vpack.c.b16 %v460, %v458
      %v573 = vpack.c.b16 %v463, %v461
      %v574 = vpack.c.b16 %v464, %v462
      %v575 = vpack.c.b16 %v467, %v465
      %v576 = vpack.c.b16 %v468, %v466
      %v577 = vpack.c.b16 %v471, %v469
      %v578 = vpack.c.b16 %v472, %v470
      %v579 = vpack.c.b16 %v475, %v473
      %v580 = vpack.c.b16 %v476, %v474
      %v581 = vpack.c.b16 %v479, %v477
      %v582 = vpack.c.b16 %v480, %v478
      %v583 = vpack.c.b16 %v483, %v481
      %v584 = vpack.c.b16 %v484, %v482
      %v585 = vpack.c.b16 %v487, %v485
      %v586 = vpack.c.b16 %v488, %v486
      %v587 = vpack.c.b16 %v491, %v489
      %v588 = vpack.c.b16 %v492, %v490
      %v589 = vpack.c.b16 %v495, %v493
      %v590 = vpack.c.b16 %v496, %v494
      %v591 = vpack.c.b16 %v499, %v497
      %v592 = vpack.c.b16 %v500, %v498
      %v593 = vpack.c.b16 %v503, %v501
      %v594 = vpack.c.b16 %v504, %v502
      %v595 = vpack.c.b16 %v507, %v505
      %v596 = vpack.c.b16 %v508, %v506
      %v597 = vpack.c.b16 %v511, %v509
      %v598 = vpack.c.b16 %v512, %v510
      %v599 = vpack.c.b16 %v515, %v513
      %v600 = vpack.c.b16 %v516, %v514
      %v601 = vpack.c.b16 %v519, %v517
      %v602 = vpack.c.b16 %v520, %v518
      %v603 = vpack.c.b16 %v523, %v521
      %v604 = vpack.c.b16 %v524, %v522
      %v605 = vpack.c.b16 %v527, %v525
      %v606 = vpack.c.b16 %v528, %v526
      %v607 = vpack.c.b16 %v531, %v529
      %v608 = vpack.c.b16 %v532, %v530
      %v609 = vpack.c.b16 %v535, %v533
      %v610 = vpack.c.b16 %v536, %v534
      %v611 = vpack.c.b16 %v539, %v537
      %v612 = vpack.c.b16 %v540, %v538
      %v613 = vpack.c.b16 %v543, %v541
      %v614 = vpack.c.b16 %v544, %v542
      %v615 = vpack.c.b16 %v547, %v545
      %v616 = vpack.c.b16 %v548, %v546
      %v617 = vpack.c.b16 %v551, %v549
      %v618 = vpack.c.b16 %v552, %v550
      %v619 = vpack.c.b16 %v555, %v553
      %v620 = vpack.c.b16 %v556, %v554
      %685 = vmatprep.subr.bf16.mxu0 %v572
      %686 = vmatpush1.bf16.msra.mxu0 %v571
      %687 = vmatprep.subr.bf16.mxu0 %v570
      %688 = vmatpush1.bf16.msra.mxu0 %v569
      %689 = vmatprep.subr.bf16.mxu0 %v568
      %690 = vmatpush1.bf16.msra.mxu0 %v567
      %691 = vmatprep.subr.bf16.mxu0 %v566
      %692 = vmatpush1.bf16.msra.mxu0 %v565
      %693 = vmatprep.subr.bf16.mxu0 %v564
      %694 = vmatpush1.bf16.msra.mxu0 %v563
      %695 = vmatprep.subr.bf16.mxu0 %v562
      %696 = vmatpush1.bf16.msra.mxu0 %v561
      %697 = vmatprep.subr.bf16.mxu0 %v560
      %698 = vmatpush1.bf16.msra.mxu0 %v559
      %699 = vmatprep.subr.bf16.mxu0 %v558
      %700 = vmatpush1.bf16.msra.mxu0 %v557
      %701 = vmatprep.subr.bf16.mxu0 %v588
      %702 = vmatpush2.bf16.msra.mxu0 %v587
      %703 = vmatprep.subr.bf16.mxu0 %v586
      %704 = vmatpush2.bf16.msra.mxu0 %v585
      %705 = vmatprep.subr.bf16.mxu0 %v584
      %706 = vmatpush2.bf16.msra.mxu0 %v583
      %707 = vmatprep.subr.bf16.mxu0 %v582
      %708 = vmatpush2.bf16.msra.mxu0 %v581
      %709 = vmatprep.subr.bf16.mxu0 %v580
      %710 = vmatpush2.bf16.msra.mxu0 %v579
      %711 = vmatprep.subr.bf16.mxu0 %v578
      %712 = vmatpush2.bf16.msra.mxu0 %v577
      %713 = vmatprep.subr.bf16.mxu0 %v576
      %714 = vmatpush2.bf16.msra.mxu0 %v575
      %715 = vmatprep.subr.bf16.mxu0 %v574
      %716 = vmatpush2.bf16.msra.mxu0 %v573
      %717 = vmatprep.mubr.bf16.mxu0 %v358
      %718 = vmatmul.mubr.bf16.gmra.mxu0 %v357
      %v719 = vpop.f32.mrf.mxu0
      %v720 = vadd.f32 0.0, %v719
      %v721 = vpop.f32.mrf.mxu0
      %v722 = vadd.f32 0.0, %v721
      %v723 = vpop.f32.mrf.mxu0
      %v724 = vpop.f32.mrf.mxu0
      %725 = vdwg.mxu0
      %726 = vmatprep.subr.bf16.mxu0 %v604
      %727 = vmatpush1.bf16.msra.mxu0 %v603
      %728 = vmatprep.subr.bf16.mxu0 %v602
      %729 = vmatpush1.bf16.msra.mxu0 %v601
      %730 = vmatprep.subr.bf16.mxu0 %v600
      %731 = vmatpush1.bf16.msra.mxu0 %v599
      %732 = vmatprep.subr.bf16.mxu0 %v598
      %733 = vmatpush1.bf16.msra.mxu0 %v597
      %734 = vmatprep.subr.bf16.mxu0 %v596
      %735 = vmatpush1.bf16.msra.mxu0 %v595
      %736 = vmatprep.subr.bf16.mxu0 %v594
      %737 = vmatpush1.bf16.msra.mxu0 %v593
      %738 = vmatprep.subr.bf16.mxu0 %v592
      %739 = vmatpush1.bf16.msra.mxu0 %v591
      %740 = vmatprep.subr.bf16.mxu0 %v590
      %741 = vmatpush1.bf16.msra.mxu0 %v589
      %742 = vmatprep.subr.bf16.mxu0 %v620
      %743 = vmatpush2.bf16.msra.mxu0 %v619
      %744 = vmatprep.subr.bf16.mxu0 %v618
      %745 = vmatpush2.bf16.msra.mxu0 %v617
      %746 = vmatprep.subr.bf16.mxu0 %v616
      %747 = vmatpush2.bf16.msra.mxu0 %v615
      %748 = vmatprep.subr.bf16.mxu0 %v614
      %749 = vmatpush2.bf16.msra.mxu0 %v613
      %750 = vmatprep.subr.bf16.mxu0 %v612
      %751 = vmatpush2.bf16.msra.mxu0 %v611
      %752 = vmatprep.subr.bf16.mxu0 %v610
      %753 = vmatpush2.bf16.msra.mxu0 %v609
      %754 = vmatprep.subr.bf16.mxu0 %v608
      %755 = vmatpush2.bf16.msra.mxu0 %v607
      %756 = vmatprep.subr.bf16.mxu0 %v606
      %757 = vmatpush2.bf16.msra.mxu0 %v605
      %758 = vmatprep.mubr.bf16.mxu0 %v360
      %759 = vmatmul.mubr.bf16.gmra.mxu0 %v359
      %v760 = vpop.f32.mrf.mxu0
      %v761 = vadd.f32 %v720, %v760
      %v762 = vpop.f32.mrf.mxu0
      %v763 = vadd.f32 %v722, %v762
      %v764 = vpop.f32.mrf.mxu0
      %v765 = vpop.f32.mrf.mxu0
      %766 = vdwg.mxu0
      %v767 = vadd.f32 %v283, %v761
      %v768 = vadd.f32 %v284, %v763
      %769 = vst [vmem:[#allocation2] sm:$0xff] %v767
      %770 = vst [vmem:[#allocation2 + $0x8] sm:$0xff] %v768
      %p771 = scmp.eq.s32.totalorder %s21, 3
      // Predicated region
      $region37: #{vae_forward.13} parent=31 // pred_check
        %p772 = pneg %p771
      $region38: #{vae_forward.13} parent=31 // pred_check_branch
        %774 = sbr.rel (%p772) target = $region40
      $region39: #{vae_forward.13} parent=31 // pred_region
        %v775 = vld [vmem:[#allocation2] sm:$0xff]
        %v776 = vld [vmem:[#allocation2 + $0x8] sm:$0xff]
        %v777 = vld [vmem:[%s265] sm:$0x3]
        %v779 = vlaneseq
        %v780 = vshrl.u32 %v779, 7
        %v781 = vsub.s32 0, %v780
        %v782 = vrot.slane %v777, %v781
        %v783 = vlaneseq
        %v784 = vshrl.u32 %v783, 7
        %v785 = vsub.s32 1, %v784
        %v786 = vrot.slane %v777, %v785
        %v789 = vadd.f32 %v775, %v782
        %v790 = vadd.f32 %v776, %v786
        %v791 = vmax.f32 %v789, 0.0
        %v792 = vmax.f32 %v790, 0.0
        %v793 = vpack.c.bf16 %v791, %v791
        %v794 = vpack.c.bf16 %v792, %v792
        %v797 = vunpack.c.l.b16 %v793
        %v798 = vunpack.c.l.b16 %v794
        %v799 = vpack.c.b16 %v798, %v797
        %801 = vst [vmem:[%s275] sm:$0xff] %v799
      $region40: #{vae_forward.13} parent=31 // pred_fallthru
        _
      %s802 = smul.u32 2, %s20
      %p803 = scmp.lt.s32.totalorder %s19, 0
      %s804 = scalar_select %p803, %s19, 0
      %p805 = scmp.lt.s32.totalorder %s802, 1
      %s806 = scalar_select %p805, %s802, 1
      %s807 = smul.addr %s804, 2
      %s808 = sadd.s32 %s806, %s807
      %s809 = smul.addr %s808, 4
      %s810 = scalar_lea.vmem %s3, %s809
      // Predicated region
      $region41: #{vae_forward.13} parent=31 // pred_check
        %p811 = pneg %p135
      $region42: #{vae_forward.13} parent=31 // pred_check_branch
        %813 = sbr.rel (%p811) target = $region44
      $region43: #{vae_forward.13} parent=31 // pred_region
        %s814 = smul.u32 2, %s20
      $region44: #{vae_forward.13} parent=31 // pred_fallthru
        _
      // Predicated region
      $region45: #{vae_forward.13} parent=31 // pred_check
        %p815 = pneg %p135
      $region46: #{vae_forward.13} parent=31 // pred_check_branch
        %817 = sbr.rel (%p815) target = $region48
      $region47: #{vae_forward.13} parent=31 // pred_region
        %s818 = smul.u32 2, %s20
        %p819 = scmp.lt.s32.totalorder %s19, 0
        %s820 = scalar_select %p819, %s19, 0
        %p821 = scmp.lt.s32.totalorder %s818, 1
        %s822 = scalar_select %p821, %s818, 1
        %s823 = smul.addr %s820, 2
        %s824 = sadd.s32 %s822, %s823
        %s825 = smul.addr %s824, 4
        %s826 = scalar_lea.vmem %s3, %s825
      $region48: #{vae_forward.13} parent=31 // pred_fallthru
        _
    $region32: #{vae_forward.13} parent=5 // pred_fallthru
      _
    %p827 = scmp.le.s32.totalorder 2, %s9
    // Predicated region
    $region49: #{vae_forward.13} parent=5 // pred_check
      %p828 = pneg %p827
    $region50: #{vae_forward.13} parent=5 // pred_check_branch
      %830 = sbr.rel (%p828) target = $region52
    $region51: #{vae_forward.13} parent=5 // pred_region
      %s831 = ssub.s32 %s9, 2
    $region52: #{vae_forward.13} parent=5 // pred_fallthru
      _
  $region6: #{vae_forward.13} parent=0 // loop_footer
    %s13 = sadd.s32 1, %s9
  $region7: #{vae_forward.13} parent=0 // loop_footer_branch
    %8 = sbr.rel target = $region3
  $region8: #{vae_forward.13} parent=0 // loop_exit
    _

// kernel: vae_forward.14
$region0: #{vae_forward.14}
  #allocation0 [shape = 'u32[]', space=smem, size = 0x4, offset = 0x4, fixed_abs, tag = 'smem constant byte address 0x4 - core index']
  #allocation1 [shape = 'u32[144,128]{1,0:T(1,128)}', space=vmem, size = 0x12000, scoped, tag = 'internal scratch']
  #allocation2 [shape = 'f32[8,256]{1,0:T(8,128)}', space=vmem, size = 0x2000, scoped, tag = 'scratch operand']
  %s0 = inlined_call_operand.vmem [shape: bf16[8,256], index: 0, kind: input, shape index: {}]
  %s1 = inlined_call_operand.vmem [shape: bf16[256,256], index: 1, kind: input, shape index: {}]
  %s2 = inlined_call_operand.vmem [shape: f32[1,256], index: 2, kind: input, shape index: {}]
  %s3 = inlined_call_operand.vmem [shape: f32[8,128], index: 3, kind: input, shape index: {}]
  %s4 = inlined_call_operand.vmem [shape: f32[8,256], index: 4, kind: output, shape index: {0}]
  %s5 = inlined_call_operand.vmem [shape: f32[8,128], index: 5, kind: output, shape index: {1}]
  %6 = xla_tuple %s4, %s5
  %s7 = sld [smem:[#allocation0]]
  $region42: #{vae_forward.14} parent=0
    _
  %s9 = ssub.s32 1, %s7
  %s10 = scalar_select 0, %s9, %s7
  // Predicated region
  $region2: #{vae_forward.14} parent=0 // pred_check
    _
  $region3: #{vae_forward.14} parent=0 // pred_check_branch
    %12 = sbr.rel (0) target = $region5
  $region4: #{vae_forward.14} parent=0 // pred_region
    _
  $region5: #{vae_forward.14} parent=0 // pred_fallthru
    _
  // Predicated region
  $region6: #{vae_forward.14} parent=0 // pred_check
    _
  $region7: #{vae_forward.14} parent=0 // pred_check_branch
    %14 = sbr.rel (0) target = $region9
  $region8: #{vae_forward.14} parent=0 // pred_region
    _
  $region9: #{vae_forward.14} parent=0 // pred_fallthru
    _
  // Predicated region
  $region10: #{vae_forward.14} parent=0 // pred_check
    _
  $region11: #{vae_forward.14} parent=0 // pred_check_branch
    %16 = sbr.rel (0) target = $region13
  $region12: #{vae_forward.14} parent=0 // pred_region
    _
  $region13: #{vae_forward.14} parent=0 // pred_fallthru
    _
  // Predicated region
  $region14: #{vae_forward.14} parent=0 // pred_check
    _
  $region15: #{vae_forward.14} parent=0 // pred_check_branch
    %18 = sbr.rel (0) target = $region17
  $region16: #{vae_forward.14} parent=0 // pred_region
    _
  $region17: #{vae_forward.14} parent=0 // pred_fallthru
    _
  %p19 = scmp.eq.s32.totalorder 0, 0
  // Predicated region
  $region18: #{vae_forward.14} parent=0 // pred_check
    %p20 = pneg %p19
  $region19: #{vae_forward.14} parent=0 // pred_check_branch
    %22 = sbr.rel (%p20) target = $region21
  $region20: #{vae_forward.14} parent=0 // pred_region
    %23 = vst [vmem:[#allocation2] sm:$0xff] 0.0
    %24 = vst [vmem:[#allocation2 + $0x8] sm:$0xff] 0.0
  $region21: #{vae_forward.14} parent=0 // pred_fallthru
    _
  %v25 = vld [vmem:[#allocation2] sm:$0xff]
  %v26 = vld [vmem:[#allocation2 + $0x8] sm:$0xff]
  %v27 = vld [vmem:[%s0] sm:$0xff]
  %v28 = vld [vmem:[%s1] sm:$0xff]
  %v29 = vld [vmem:[%s1 + $0x8] sm:$0xff]
  %v30 = vld [vmem:[%s1 + $0x10] sm:$0xff]
  %v31 = vld [vmem:[%s1 + $0x18] sm:$0xff]
  %v32 = vld [vmem:[%s1 + $0x20] sm:$0xff]
  %v33 = vld [vmem:[%s1 + $0x28] sm:$0xff]
  %v34 = vld [vmem:[%s1 + $0x30] sm:$0xff]
  %v35 = vld [vmem:[%s1 + $0x38] sm:$0xff]
  %v36 = vld [vmem:[%s1 + $0x40] sm:$0xff]
  %v37 = vld [vmem:[%s1 + $0x48] sm:$0xff]
  %v38 = vld [vmem:[%s1 + $0x50] sm:$0xff]
  %v39 = vld [vmem:[%s1 + $0x58] sm:$0xff]
  %v40 = vld [vmem:[%s1 + $0x60] sm:$0xff]
  %v41 = vld [vmem:[%s1 + $0x68] sm:$0xff]
  %v42 = vld [vmem:[%s1 + $0x70] sm:$0xff]
  %v43 = vld [vmem:[%s1 + $0x78] sm:$0xff]
  %v44 = vld [vmem:[%s1 + $0x80] sm:$0xff]
  %v45 = vld [vmem:[%s1 + $0x88] sm:$0xff]
  %v46 = vld [vmem:[%s1 + $0x90] sm:$0xff]
  %v47 = vld [vmem:[%s1 + $0x98] sm:$0xff]
  %v48 = vld [vmem:[%s1 + $0xa0] sm:$0xff]
  %v49 = vld [vmem:[%s1 + $0xa8] sm:$0xff]
  %v50 = vld [vmem:[%s1 + $0xb0] sm:$0xff]
  %v51 = vld [vmem:[%s1 + $0xb8] sm:$0xff]
  %v52 = vld [vmem:[%s1 + $0xc0] sm:$0xff]
  %v53 = vld [vmem:[%s1 + $0xc8] sm:$0xff]
  %v54 = vld [vmem:[%s1 + $0xd0] sm:$0xff]
  %v55 = vld [vmem:[%s1 + $0xd8] sm:$0xff]
  %v56 = vld [vmem:[%s1 + $0xe0] sm:$0xff]
  %v57 = vld [vmem:[%s1 + $0xe8] sm:$0xff]
  %v58 = vld [vmem:[%s1 + $0xf0] sm:$0xff]
  %v59 = vld [vmem:[%s1 + $0xf8] sm:$0xff]
  %v61 = vunpack.c.l.b16 %v27
  %v62 = vunpack.c.h.b16 %v27
  %v63 = vpack.c.b16 %v61, %v61
  %v64 = vpack.c.b16 %v62, %v62
  %v99 = vunpack.c.l.b16 %v28
  %v100 = vunpack.c.h.b16 %v28
  %v101 = vunpack.c.l.b16 %v29
  %v102 = vunpack.c.h.b16 %v29
  %v103 = vunpack.c.l.b16 %v30
  %v104 = vunpack.c.h.b16 %v30
  %v105 = vunpack.c.l.b16 %v31
  %v106 = vunpack.c.h.b16 %v31
  %v107 = vunpack.c.l.b16 %v32
  %v108 = vunpack.c.h.b16 %v32
  %v109 = vunpack.c.l.b16 %v33
  %v110 = vunpack.c.h.b16 %v33
  %v111 = vunpack.c.l.b16 %v34
  %v112 = vunpack.c.h.b16 %v34
  %v113 = vunpack.c.l.b16 %v35
  %v114 = vunpack.c.h.b16 %v35
  %v115 = vunpack.c.l.b16 %v36
  %v116 = vunpack.c.h.b16 %v36
  %v117 = vunpack.c.l.b16 %v37
  %v118 = vunpack.c.h.b16 %v37
  %v119 = vunpack.c.l.b16 %v38
  %v120 = vunpack.c.h.b16 %v38
  %v121 = vunpack.c.l.b16 %v39
  %v122 = vunpack.c.h.b16 %v39
  %v123 = vunpack.c.l.b16 %v40
  %v124 = vunpack.c.h.b16 %v40
  %v125 = vunpack.c.l.b16 %v41
  %v126 = vunpack.c.h.b16 %v41
  %v127 = vunpack.c.l.b16 %v42
  %v128 = vunpack.c.h.b16 %v42
  %v129 = vunpack.c.l.b16 %v43
  %v130 = vunpack.c.h.b16 %v43
  %v131 = vunpack.c.l.b16 %v44
  %v132 = vunpack.c.h.b16 %v44
  %v133 = vunpack.c.l.b16 %v45
  %v134 = vunpack.c.h.b16 %v45
  %v135 = vunpack.c.l.b16 %v46
  %v136 = vunpack.c.h.b16 %v46
  %v137 = vunpack.c.l.b16 %v47
  %v138 = vunpack.c.h.b16 %v47
  %v139 = vunpack.c.l.b16 %v48
  %v140 = vunpack.c.h.b16 %v48
  %v141 = vunpack.c.l.b16 %v49
  %v142 = vunpack.c.h.b16 %v49
  %v143 = vunpack.c.l.b16 %v50
  %v144 = vunpack.c.h.b16 %v50
  %v145 = vunpack.c.l.b16 %v51
  %v146 = vunpack.c.h.b16 %v51
  %v147 = vunpack.c.l.b16 %v52
  %v148 = vunpack.c.h.b16 %v52
  %v149 = vunpack.c.l.b16 %v53
  %v150 = vunpack.c.h.b16 %v53
  %v151 = vunpack.c.l.b16 %v54
  %v152 = vunpack.c.h.b16 %v54
  %v153 = vunpack.c.l.b16 %v55
  %v154 = vunpack.c.h.b16 %v55
  %v155 = vunpack.c.l.b16 %v56
  %v156 = vunpack.c.h.b16 %v56
  %v157 = vunpack.c.l.b16 %v57
  %v158 = vunpack.c.h.b16 %v57
  %v159 = vunpack.c.l.b16 %v58
  %v160 = vunpack.c.h.b16 %v58
  %v161 = vunpack.c.l.b16 %v59
  %v162 = vunpack.c.h.b16 %v59
  %v163 = vpack.c.b16 %v101, %v99
  %v164 = vpack.c.b16 %v102, %v100
  %v165 = vpack.c.b16 %v105, %v103
  %v166 = vpack.c.b16 %v106, %v104
  %v167 = vpack.c.b16 %v109, %v107
  %v168 = vpack.c.b16 %v110, %v108
  %v169 = vpack.c.b16 %v113, %v111
  %v170 = vpack.c.b16 %v114, %v112
  %v171 = vpack.c.b16 %v117, %v115
  %v172 = vpack.c.b16 %v118, %v116
  %v173 = vpack.c.b16 %v121, %v119
  %v174 = vpack.c.b16 %v122, %v120
  %v175 = vpack.c.b16 %v125, %v123
  %v176 = vpack.c.b16 %v126, %v124
  %v177 = vpack.c.b16 %v129, %v127
  %v178 = vpack.c.b16 %v130, %v128
  %v179 = vpack.c.b16 %v133, %v131
  %v180 = vpack.c.b16 %v134, %v132
  %v181 = vpack.c.b16 %v137, %v135
  %v182 = vpack.c.b16 %v138, %v136
  %v183 = vpack.c.b16 %v141, %v139
  %v184 = vpack.c.b16 %v142, %v140
  %v185 = vpack.c.b16 %v145, %v143
  %v186 = vpack.c.b16 %v146, %v144
  %v187 = vpack.c.b16 %v149, %v147
  %v188 = vpack.c.b16 %v150, %v148
  %v189 = vpack.c.b16 %v153, %v151
  %v190 = vpack.c.b16 %v154, %v152
  %v191 = vpack.c.b16 %v157, %v155
  %v192 = vpack.c.b16 %v158, %v156
  %v193 = vpack.c.b16 %v161, %v159
  %v194 = vpack.c.b16 %v162, %v160
  %227 = vmatprep.subr.bf16.mxu0 %v178
  %228 = vmatpush1.bf16.msra.mxu0 %v177
  %229 = vmatprep.subr.bf16.mxu0 %v176
  %230 = vmatpush1.bf16.msra.mxu0 %v175
  %231 = vmatprep.subr.bf16.mxu0 %v174
  %232 = vmatpush1.bf16.msra.mxu0 %v173
  %233 = vmatprep.subr.bf16.mxu0 %v172
  %234 = vmatpush1.bf16.msra.mxu0 %v171
  %235 = vmatprep.subr.bf16.mxu0 %v170
  %236 = vmatpush1.bf16.msra.mxu0 %v169
  %237 = vmatprep.subr.bf16.mxu0 %v168
  %238 = vmatpush1.bf16.msra.mxu0 %v167
  %239 = vmatprep.subr.bf16.mxu0 %v166
  %240 = vmatpush1.bf16.msra.mxu0 %v165
  %241 = vmatprep.subr.bf16.mxu0 %v164
  %242 = vmatpush1.bf16.msra.mxu0 %v163
  %243 = vmatprep.subr.bf16.mxu0 %v194
  %244 = vmatpush2.bf16.msra.mxu0 %v193
  %245 = vmatprep.subr.bf16.mxu0 %v192
  %246 = vmatpush2.bf16.msra.mxu0 %v191
  %247 = vmatprep.subr.bf16.mxu0 %v190
  %248 = vmatpush2.bf16.msra.mxu0 %v189
  %249 = vmatprep.subr.bf16.mxu0 %v188
  %250 = vmatpush2.bf16.msra.mxu0 %v187
  %251 = vmatprep.subr.bf16.mxu0 %v186
  %252 = vmatpush2.bf16.msra.mxu0 %v185
  %253 = vmatprep.subr.bf16.mxu0 %v184
  %254 = vmatpush2.bf16.msra.mxu0 %v183
  %255 = vmatprep.subr.bf16.mxu0 %v182
  %256 = vmatpush2.bf16.msra.mxu0 %v181
  %257 = vmatprep.subr.bf16.mxu0 %v180
  %258 = vmatpush2.bf16.msra.mxu0 %v179
  %259 = vmatprep.mubr.bf16.mxu0 %v64
  %260 = vmatmul.mubr.bf16.gmra.mxu0 %v63
  %v261 = vpop.f32.mrf.mxu0
  %v262 = vadd.f32 0.0, %v261
  %v263 = vpop.f32.mrf.mxu0
  %v264 = vadd.f32 0.0, %v263
  %v265 = vpop.f32.mrf.mxu0
  %v266 = vpop.f32.mrf.mxu0
  %267 = vdwg.mxu0
  %v268 = vadd.f32 %v25, %v262
  %v269 = vadd.f32 %v26, %v264
  %270 = vst [vmem:[#allocation2] sm:$0xff] %v268
  %271 = vst [vmem:[#allocation2 + $0x8] sm:$0xff] %v269
  // Predicated region
  $region22: #{vae_forward.14} parent=0 // pred_check
    %p272 = pneg %p19
  $region23: #{vae_forward.14} parent=0 // pred_check_branch
    %274 = sbr.rel (%p272) target = $region25
  $region24: #{vae_forward.14} parent=0 // pred_region
    %v275 = vld [vmem:[#allocation2] sm:$0xff]
    %v276 = vld [vmem:[#allocation2 + $0x8] sm:$0xff]
    %v277 = vld [vmem:[%s2] sm:$0x3]
    %v279 = vlaneseq
    %v280 = vshrl.u32 %v279, 7
    %v281 = vsub.s32 0, %v280
    %v282 = vrot.slane %v277, %v281
    %v283 = vlaneseq
    %v284 = vshrl.u32 %v283, 7
    %v285 = vsub.s32 1, %v284
    %v286 = vrot.slane %v277, %v285
    %v289 = vadd.f32 %v275, %v282
    %v290 = vadd.f32 %v276, %v286
    %291 = vst [vmem:[%s4] sm:$0xff] %v289
    %292 = vst [vmem:[%s4 + $0x8] sm:$0xff] %v290
    %v293 = vmul.f32 %v290, 0.5
    %v294 = vmul.f32 %v293, 1.442695
    %v295 = vpow.pop %v294
    %v296 = vld [vmem:[%s3] sm:$0xff]
    %v297 = vmul.f32 %v295, %v296
    %v298 = vadd.f32 %v289, %v297
    %299 = vst [vmem:[%s5] sm:$0xff] %v298
  $region25: #{vae_forward.14} parent=0 // pred_fallthru
    _
  // Predicated region
  $region26: #{vae_forward.14} parent=0 // pred_check
    _
  $region27: #{vae_forward.14} parent=0 // pred_check_branch
    %301 = sbr.rel (0) target = $region29
  $region28: #{vae_forward.14} parent=0 // pred_region
    _
  $region29: #{vae_forward.14} parent=0 // pred_fallthru
    _
  // Predicated region
  $region30: #{vae_forward.14} parent=0 // pred_check
    _
  $region31: #{vae_forward.14} parent=0 // pred_check_branch
    %303 = sbr.rel (0) target = $region33
  $region32: #{vae_forward.14} parent=0 // pred_region
    _
  $region33: #{vae_forward.14} parent=0 // pred_fallthru
    _
  // Predicated region
  $region34: #{vae_forward.14} parent=0 // pred_check
    _
  $region35: #{vae_forward.14} parent=0 // pred_check_branch
    %305 = sbr.rel (0) target = $region37
  $region36: #{vae_forward.14} parent=0 // pred_region
    _
  $region37: #{vae_forward.14} parent=0 // pred_fallthru
    _
  // Predicated region
  $region38: #{vae_forward.14} parent=0 // pred_check
    _
  $region39: #{vae_forward.14} parent=0 // pred_check_branch
    %307 = sbr.rel (0) target = $region41
  $region40: #{vae_forward.14} parent=0 // pred_region
    _
  $region41: #{vae_forward.14} parent=0 // pred_fallthru
    _

// kernel: vae_forward.12
$region0: #{vae_forward.12}
  #allocation0 [shape = 'u32[]', space=smem, size = 0x4, offset = 0x4, fixed_abs, tag = 'smem constant byte address 0x4 - core index']
  #allocation1 [shape = 'u32[144,128]{1,0:T(1,128)}', space=vmem, size = 0x12000, scoped, tag = 'internal scratch']
  #allocation2 [shape = 'f32[8,128]{1,0:T(8,128)}', space=vmem, size = 0x1000, scoped, tag = 'scratch operand']
  %s0 = inlined_call_operand.vmem [shape: bf16[8,1024], index: 0, kind: input, shape index: {}]
  %s1 = inlined_call_operand.vmem [shape: bf16[1024,128], index: 1, kind: input, shape index: {}]
  %s2 = inlined_call_operand.vmem [shape: f32[1,128], index: 2, kind: input, shape index: {}]
  %s3 = inlined_call_operand.vmem [shape: bf16[8,128], index: 3, kind: output, shape index: {}]
  %s4 = sld [smem:[#allocation0]]
  $region53: #{vae_forward.12} parent=0
    _
  %s6 = ssub.s32 1, %s4
  %s7 = scalar_select 0, %s6, %s4
  loop: start=0, step=1, limit=4
  $region2: #{vae_forward.12} parent=0 // loop_pre_header
    _
  $region3: #{vae_forward.12} parent=0 // loop_header
    %s9 = sphi 0, %s13
    %p10 = scmp.ge.s32.totalorder %s9, 4
    %s16 = sphi 0, %s35
    %s17 = sphi 0, %s31
    %s18 = sphi 0, %s27
    %s19 = sphi 0, %s16
    %s20 = sphi 0, %s17
    %s21 = sphi 0, %s18
    %s22 = sphi 0, %s19
    %s23 = sphi 0, %s20
    %s24 = sphi 0, %s21
    %s40 = sphi 0, %s42
    %s43 = sphi 0, %s40
    %s44 = sphi 0, %s43
    %s60 = sphi 0, %s44
    %s68 = sphi 0, %s70
    %s71 = sphi 0, %s68
    %s72 = sphi 0, %s71
    %s88 = sphi 0, %s72
    %s94 = sphi 0, %s96
    %s97 = sphi 0, %s94
    %s98 = sphi 0, %s97
    %s114 = sphi 0, %s98
    %s122 = sphi 0, %s124
    %s125 = sphi 0, %s122
    %s126 = sphi 0, %s125
    %s142 = sphi 0, %s126
  $region4: #{vae_forward.12} parent=0 // loop_header_branch
    %12 = sbr.rel (%p10) target = $region8
  $region5: #{vae_forward.12} parent=0 // loop_body
    %s14 = ssub.s32 %s9, 1
    %s15 = ssub.s32 %s9, 2
    %s25 = sadd.s32 1, %s18
    %p26 = scmp.ge.s32.totalorder %s25, 2
    %s27 = scalar_select %p26, 0, %s25
    %s28 = sadd.s32 1, %s17
    %s29 = scalar_select %p26, %s28, %s17
    %p30 = scmp.ge.s32.totalorder %s29, 1
    %s31 = scalar_select %p30, 0, %s29
    %s32 = sadd.s32 1, %s16
    %s33 = scalar_select %p30, %s32, %s16
    %p34 = scmp.ge.s32.totalorder %s33, 1
    %s35 = scalar_select %p34, 0, %s33
    %s36 = ssub.s32 %s16, %s35
    %s37 = ssub.s32 %s18, %s27
    %s38 = sor.u32 %s36, %s37
    %p39 = scmp.eq.s32.totalorder %s38, 0
    %s41 = sadd.s32 %s40, 1
    %s42 = scalar_select %p39, %s40, %s41
    %p45 = pneg %p39
    %p46 = scmp.eq.s32.totalorder %s9, 1
    %p47 = por %p45, %p46
    %p48 = scmp.ne.s32.totalorder %s40, %s43
    %p49 = scmp.eq.s32.totalorder %s9, 0
    %p50 = por %p48, %p49
    %p51 = scmp.ne.s32.totalorder %s40, %s43
    %p52 = scmp.eq.s32.totalorder %s14, 1
    %p53 = por %p51, %p52
    %p54 = scmp.ne.s32.totalorder %s43, %s44
    %p55 = scmp.eq.s32.totalorder %s14, 0
    %p56 = por %p54, %p55
    %p57 = scmp.ne.s32.totalorder %s43, %s44
    %p58 = scmp.eq.s32.totalorder %s15, 1
    %p59 = por %p57, %p58
    %p61 = scmp.ne.s32.totalorder %s44, %s60
    %p62 = scmp.eq.s32.totalorder %s15, 0
    %p63 = por %p61, %p62
    %s64 = ssub.s32 %s18, %s27
    %s65 = ssub.s32 %s17, %s31
    %s66 = sor.u32 %s64, %s65
    %p67 = scmp.eq.s32.totalorder %s66, 0
    %s69 = sadd.s32 %s68, 1
    %s70 = scalar_select %p67, %s68, %s69
    %p73 = pneg %p67
    %p74 = scmp.eq.s32.totalorder %s9, 1
    %p75 = por %p73, %p74
    %p76 = scmp.ne.s32.totalorder %s68, %s71
    %p77 = scmp.eq.s32.totalorder %s9, 0
    %p78 = por %p76, %p77
    %p79 = scmp.ne.s32.totalorder %s68, %s71
    %p80 = scmp.eq.s32.totalorder %s14, 1
    %p81 = por %p79, %p80
    %p82 = scmp.ne.s32.totalorder %s71, %s72
    %p83 = scmp.eq.s32.totalorder %s14, 0
    %p84 = por %p82, %p83
    %p85 = scmp.ne.s32.totalorder %s71, %s72
    %p86 = scmp.eq.s32.totalorder %s15, 1
    %p87 = por %p85, %p86
    %p89 = scmp.ne.s32.totalorder %s72, %s88
    %p90 = scmp.eq.s32.totalorder %s15, 0
    %p91 = por %p89, %p90
    %s92 = ssub.s32 %s17, %s31
    %p93 = scmp.eq.s32.totalorder %s92, 0
    %s95 = sadd.s32 %s94, 1
    %s96 = scalar_select %p93, %s94, %s95
    %p99 = pneg %p93
    %p100 = scmp.eq.s32.totalorder %s9, 1
    %p101 = por %p99, %p100
    %p102 = scmp.ne.s32.totalorder %s94, %s97
    %p103 = scmp.eq.s32.totalorder %s9, 0
    %p104 = por %p102, %p103
    %p105 = scmp.ne.s32.totalorder %s94, %s97
    %p106 = scmp.eq.s32.totalorder %s14, 1
    %p107 = por %p105, %p106
    %p108 = scmp.ne.s32.totalorder %s97, %s98
    %p109 = scmp.eq.s32.totalorder %s14, 0
    %p110 = por %p108, %p109
    %p111 = scmp.ne.s32.totalorder %s97, %s98
    %p112 = scmp.eq.s32.totalorder %s15, 1
    %p113 = por %p111, %p112
    %p115 = scmp.ne.s32.totalorder %s98, %s114
    %p116 = scmp.eq.s32.totalorder %s15, 0
    %p117 = por %p115, %p116
    %s118 = ssub.s32 %s16, %s35
    %s119 = ssub.s32 %s17, %s31
    %s120 = sor.u32 %s118, %s119
    %p121 = scmp.eq.s32.totalorder %s120, 0
    %s123 = sadd.s32 %s122, 1
    %s124 = scalar_select %p121, %s122, %s123
    %p127 = pneg %p121
    %p128 = scmp.eq.s32.totalorder %s9, 1
    %p129 = por %p127, %p128
    %p130 = scmp.ne.s32.totalorder %s122, %s125
    %p131 = scmp.eq.s32.totalorder %s9, 0
    %p132 = por %p130, %p131
    %p133 = scmp.ne.s32.totalorder %s122, %s125
    %p134 = scmp.eq.s32.totalorder %s14, 1
    %p135 = por %p133, %p134
    %p136 = scmp.ne.s32.totalorder %s125, %s126
    %p137 = scmp.eq.s32.totalorder %s14, 0
    %p138 = por %p136, %p137
    %p139 = scmp.ne.s32.totalorder %s125, %s126
    %p140 = scmp.eq.s32.totalorder %s15, 1
    %p141 = por %p139, %p140
    %p143 = scmp.ne.s32.totalorder %s126, %s142
    %p144 = scmp.eq.s32.totalorder %s15, 0
    %p145 = por %p143, %p144
    %p146 = scmp.le.s32.totalorder 1, %s9
    %p147 = scmp.lt.s32.totalorder %s9, 3
    %p148 = pnand %p146, %p147
    %p149 = pneg %p148
    // Predicated region
    $region9: #{vae_forward.12} parent=5 // pred_check
      _
    $region10: #{vae_forward.12} parent=5 // pred_check_branch
      %151 = sbr.rel (%p148) target = $region12
    $region11: #{vae_forward.12} parent=5 // pred_region
      %s152 = ssub.s32 %s9, 1
      // Predicated region
      $region13: #{vae_forward.12} parent=11 // pred_check
        %p153 = pneg %p110
      $region14: #{vae_forward.12} parent=11 // pred_check_branch
        %155 = sbr.rel (%p153) target = $region16
      $region15: #{vae_forward.12} parent=11 // pred_region
        %p156 = scmp.lt.s32.totalorder %s20, 0
        %s157 = scalar_select %p156, %s20, 0
        %s158 = scalar_lea.vmem %s2, %s157
      $region16: #{vae_forward.12} parent=11 // pred_fallthru
        _
    $region12: #{vae_forward.12} parent=5 // pred_fallthru
      _
    %p159 = scmp.lt.s32.totalorder %s9, 2
    // Predicated region
    $region17: #{vae_forward.12} parent=5 // pred_check
      %p160 = pneg %p159
    $region18: #{vae_forward.12} parent=5 // pred_check_branch
      %162 = sbr.rel (%p160) target = $region20
    $region19: #{vae_forward.12} parent=5 // pred_region
      // Predicated region
      $region21: #{vae_forward.12} parent=19 // pred_check
        %p163 = pneg %p50
      $region22: #{vae_forward.12} parent=19 // pred_check_branch
        %165 = sbr.rel (%p163) target = $region24
      $region23: #{vae_forward.12} parent=19 // pred_region
        %s166 = smul.u32 4, %s18
        %p167 = scmp.lt.s32.totalorder %s16, 0
        %s168 = scalar_select %p167, %s16, 0
        %p169 = scmp.lt.s32.totalorder %s166, 7
        %s170 = scalar_select %p169, %s166, 7
        %s171 = smul.addr %s168, 8
        %s172 = sadd.s32 %s170, %s171
        %s173 = smul.addr %s172, 4
        %s174 = scalar_lea.vmem %s0, %s173
        %s175 = smul.u32 4, %s18
      $region24: #{vae_forward.12} parent=19 // pred_fallthru
        _
      // Predicated region
      $region25: #{vae_forward.12} parent=19 // pred_check
        %p176 = pneg %p78
      $region26: #{vae_forward.12} parent=19 // pred_check_branch
        %178 = sbr.rel (%p176) target = $region28
      $region27: #{vae_forward.12} parent=19 // pred_region
        %s179 = smul.u32 64, %s18
        %p180 = scmp.lt.s32.totalorder %s179, 127
        %s181 = scalar_select %p180, %s179, 127
        %p182 = scmp.lt.s32.totalorder %s17, 0
        %s183 = scalar_select %p182, %s17, 0
        %s184 = sadd.s32 %s183, %s181
        %s185 = smul.addr %s184, 4
        %s186 = scalar_lea.vmem %s1, %s185
        %s187 = smul.u32 64, %s18
      $region28: #{vae_forward.12} parent=19 // pred_fallthru
        _
    $region20: #{vae_forward.12} parent=5 // pred_fallthru
      _
    %p188 = scmp.le.s32.totalorder 1, %s9
    %p189 = scmp.lt.s32.totalorder %s9, 3
    %p190 = pnand %p188, %p189
    %p191 = pneg %p190
    // Predicated region
    $region29: #{vae_forward.12} parent=5 // pred_check
      _
    $region30: #{vae_forward.12} parent=5 // pred_check_branch
      %193 = sbr.rel (%p190) target = $region32
    $region31: #{vae_forward.12} parent=5 // pred_region
      %s194 = ssub.s32 %s9, 1
      %s195 = smul.u32 4, %s21
      %p196 = scmp.lt.s32.totalorder %s19, 0
      %s197 = scalar_select %p196, %s19, 0
      %p198 = scmp.lt.s32.totalorder %s195, 7
      %s199 = scalar_select %p198, %s195, 7
      %s200 = smul.addr %s197, 8
      %s201 = sadd.s32 %s199, %s200
      %s202 = smul.addr %s201, 4
      %s203 = scalar_lea.vmem %s0, %s202
      %p204 = pneg %p56
      %p205 = pneg %p53
      %s206 = smul.u32 64, %s21
      %p207 = scmp.lt.s32.totalorder %s206, 127
      %s208 = scalar_select %p207, %s206, 127
      %p209 = scmp.lt.s32.totalorder %s20, 0
      %s210 = scalar_select %p209, %s20, 0
      %s211 = sadd.s32 %s210, %s208
      %s212 = smul.addr %s211, 4
      %s213 = scalar_lea.vmem %s1, %s212
      %p214 = pneg %p84
      %p215 = pneg %p81
      %p216 = scmp.lt.s32.totalorder %s20, 0
      %s217 = scalar_select %p216, %s20, 0
      %s218 = scalar_lea.vmem %s2, %s217
      %p219 = pneg %p110
      %p220 = pneg %p107
      %p221 = pneg %p138
      %p222 = pneg %p135
      %p223 = scmp.lt.s32.totalorder %s19, 0
      %s224 = scalar_select %p223, %s19, 0
      %p225 = scmp.lt.s32.totalorder %s20, 0
      %s226 = scalar_select %p225, %s20, 0
      %s227 = sadd.s32 %s226, %s224
      %s228 = smul.addr %s227, 4
      %s229 = scalar_lea.vmem %s3, %s228
      %s230 = smul.u32 4, %s21
      %p231 = scmp.lt.s32.totalorder %s19, 0
      %s232 = scalar_select %p231, %s19, 0
      %p233 = scmp.lt.s32.totalorder %s230, 7
      %s234 = scalar_select %p233, %s230, 7
      %s235 = smul.addr %s232, 8
      %s236 = sadd.s32 %s234, %s235
      %s237 = smul.addr %s236, 4
      %s238 = scalar_lea.vmem %s0, %s237
      %s239 = smul.u32 4, %s21
      %s240 = smul.u32 64, %s21
      %p241 = scmp.lt.s32.totalorder %s240, 127
      %s242 = scalar_select %p241, %s240, 127
      %p243 = scmp.lt.s32.totalorder %s20, 0
      %s244 = scalar_select %p243, %s20, 0
      %s245 = sadd.s32 %s244, %s242
      %s246 = smul.addr %s245, 4
      %s247 = scalar_lea.vmem %s1, %s246
      %s248 = smul.u32 64, %s21
      %p249 = scmp.lt.s32.totalorder %s20, 0
      %s250 = scalar_select %p249, %s20, 0
      %s251 = scalar_lea.vmem %s2, %s250
      %p252 = scmp.lt.s32.totalorder %s19, 0
      %s253 = scalar_select %p252, %s19, 0
      %p254 = scmp.lt.s32.totalorder %s20, 0
      %s255 = scalar_select %p254, %s20, 0
      %s256 = sadd.s32 %s255, %s253
      %s257 = smul.addr %s256, 4
      %s258 = scalar_lea.vmem %s3, %s257
      %p260 = scmp.eq.s32.totalorder %s21, 0
      // Predicated region
      $region33: #{vae_forward.12} parent=31 // pred_check
        %p261 = pneg %p260
      $region34: #{vae_forward.12} parent=31 // pred_check_branch
        %263 = sbr.rel (%p261) target = $region36
      $region35: #{vae_forward.12} parent=31 // pred_region
        %264 = vst [vmem:[#allocation2] sm:$0xff] 0.0
      $region36: #{vae_forward.12} parent=31 // pred_fallthru
        _
      %v265 = vld [vmem:[#allocation2] sm:$0xff]
      %v266 = vld [vmem:[%s238] sm:$0xff]
      %v267 = vld [vmem:[%s238 + $0x8] sm:$0xff]
      %v268 = vld [vmem:[%s247] sm:$0xf]
      %v269 = vld [vmem:[%s247 + $0x4] sm:$0xf]
      %v270 = vld [vmem:[%s247 + $0x8] sm:$0xf]
      %v271 = vld [vmem:[%s247 + $0xc] sm:$0xf]
      %v272 = vld [vmem:[%s247 + $0x10] sm:$0xf]
      %v273 = vld [vmem:[%s247 + $0x14] sm:$0xf]
      %v274 = vld [vmem:[%s247 + $0x18] sm:$0xf]
      %v275 = vld [vmem:[%s247 + $0x1c] sm:$0xf]
      %v276 = vld [vmem:[%s247 + $0x20] sm:$0xf]
      %v277 = vld [vmem:[%s247 + $0x24] sm:$0xf]
      %v278 = vld [vmem:[%s247 + $0x28] sm:$0xf]
      %v279 = vld [vmem:[%s247 + $0x2c] sm:$0xf]
      %v280 = vld [vmem:[%s247 + $0x30] sm:$0xf]
      %v281 = vld [vmem:[%s247 + $0x34] sm:$0xf]
      %v282 = vld [vmem:[%s247 + $0x38] sm:$0xf]
      %v283 = vld [vmem:[%s247 + $0x3c] sm:$0xf]
      %v284 = vld [vmem:[%s247 + $0x40] sm:$0xf]
      %v285 = vld [vmem:[%s247 + $0x44] sm:$0xf]
      %v286 = vld [vmem:[%s247 + $0x48] sm:$0xf]
      %v287 = vld [vmem:[%s247 + $0x4c] sm:$0xf]
      %v288 = vld [vmem:[%s247 + $0x50] sm:$0xf]
      %v289 = vld [vmem:[%s247 + $0x54] sm:$0xf]
      %v290 = vld [vmem:[%s247 + $0x58] sm:$0xf]
      %v291 = vld [vmem:[%s247 + $0x5c] sm:$0xf]
      %v292 = vld [vmem:[%s247 + $0x60] sm:$0xf]
      %v293 = vld [vmem:[%s247 + $0x64] sm:$0xf]
      %v294 = vld [vmem:[%s247 + $0x68] sm:$0xf]
      %v295 = vld [vmem:[%s247 + $0x6c] sm:$0xf]
      %v296 = vld [vmem:[%s247 + $0x70] sm:$0xf]
      %v297 = vld [vmem:[%s247 + $0x74] sm:$0xf]
      %v298 = vld [vmem:[%s247 + $0x78] sm:$0xf]
      %v299 = vld [vmem:[%s247 + $0x7c] sm:$0xf]
      %v300 = vld [vmem:[%s247 + $0x80] sm:$0xf]
      %v301 = vld [vmem:[%s247 + $0x84] sm:$0xf]
      %v302 = vld [vmem:[%s247 + $0x88] sm:$0xf]
      %v303 = vld [vmem:[%s247 + $0x8c] sm:$0xf]
      %v304 = vld [vmem:[%s247 + $0x90] sm:$0xf]
      %v305 = vld [vmem:[%s247 + $0x94] sm:$0xf]
      %v306 = vld [vmem:[%s247 + $0x98] sm:$0xf]
      %v307 = vld [vmem:[%s247 + $0x9c] sm:$0xf]
      %v308 = vld [vmem:[%s247 + $0xa0] sm:$0xf]
      %v309 = vld [vmem:[%s247 + $0xa4] sm:$0xf]
      %v310 = vld [vmem:[%s247 + $0xa8] sm:$0xf]
      %v311 = vld [vmem:[%s247 + $0xac] sm:$0xf]
      %v312 = vld [vmem:[%s247 + $0xb0] sm:$0xf]
      %v313 = vld [vmem:[%s247 + $0xb4] sm:$0xf]
      %v314 = vld [vmem:[%s247 + $0xb8] sm:$0xf]
      %v315 = vld [vmem:[%s247 + $0xbc] sm:$0xf]
      %v316 = vld [vmem:[%s247 + $0xc0] sm:$0xf]
      %v317 = vld [vmem:[%s247 + $0xc4] sm:$0xf]
      %v318 = vld [vmem:[%s247 + $0xc8] sm:$0xf]
      %v319 = vld [vmem:[%s247 + $0xcc] sm:$0xf]
      %v320 = vld [vmem:[%s247 + $0xd0] sm:$0xf]
      %v321 = vld [vmem:[%s247 + $0xd4] sm:$0xf]
      %v322 = vld [vmem:[%s247 + $0xd8] sm:$0xf]
      %v323 = vld [vmem:[%s247 + $0xdc] sm:$0xf]
      %v324 = vld [vmem:[%s247 + $0xe0] sm:$0xf]
      %v325 = vld [vmem:[%s247 + $0xe4] sm:$0xf]
      %v326 = vld [vmem:[%s247 + $0xe8] sm:$0xf]
      %v327 = vld [vmem:[%s247 + $0xec] sm:$0xf]
      %v328 = vld [vmem:[%s247 + $0xf0] sm:$0xf]
      %v329 = vld [vmem:[%s247 + $0xf4] sm:$0xf]
      %v330 = vld [vmem:[%s247 + $0xf8] sm:$0xf]
      %v331 = vld [vmem:[%s247 + $0xfc] sm:$0xf]
      %v334 = vunpack.c.l.b16 %v266
      %v335 = vunpack.c.h.b16 %v266
      %v336 = vunpack.c.l.b16 %v267
      %v337 = vunpack.c.h.b16 %v267
      %v338 = vpack.c.b16 %v334, %v334
      %v339 = vpack.c.b16 %v335, %v335
      %v340 = vpack.c.b16 %v336, %v336
      %v341 = vpack.c.b16 %v337, %v337
      %v410 = vunpack.c.l.b16 %v268
      %v411 = vunpack.c.l.b16 %v269
      %v412 = vunpack.c.l.b16 %v270
      %v413 = vunpack.c.l.b16 %v271
      %v414 = vunpack.c.l.b16 %v272
      %v415 = vunpack.c.l.b16 %v273
      %v416 = vunpack.c.l.b16 %v274
      %v417 = vunpack.c.l.b16 %v275
      %v418 = vunpack.c.l.b16 %v276
      %v419 = vunpack.c.l.b16 %v277
      %v420 = vunpack.c.l.b16 %v278
      %v421 = vunpack.c.l.b16 %v279
      %v422 = vunpack.c.l.b16 %v280
      %v423 = vunpack.c.l.b16 %v281
      %v424 = vunpack.c.l.b16 %v282
      %v425 = vunpack.c.l.b16 %v283
      %v426 = vunpack.c.l.b16 %v284
      %v427 = vunpack.c.l.b16 %v285
      %v428 = vunpack.c.l.b16 %v286
      %v429 = vunpack.c.l.b16 %v287
      %v430 = vunpack.c.l.b16 %v288
      %v431 = vunpack.c.l.b16 %v289
      %v432 = vunpack.c.l.b16 %v290
      %v433 = vunpack.c.l.b16 %v291
      %v434 = vunpack.c.l.b16 %v292
      %v435 = vunpack.c.l.b16 %v293
      %v436 = vunpack.c.l.b16 %v294
      %v437 = vunpack.c.l.b16 %v295
      %v438 = vunpack.c.l.b16 %v296
      %v439 = vunpack.c.l.b16 %v297
      %v440 = vunpack.c.l.b16 %v298
      %v441 = vunpack.c.l.b16 %v299
      %v442 = vunpack.c.l.b16 %v300
      %v443 = vunpack.c.l.b16 %v301
      %v444 = vunpack.c.l.b16 %v302
      %v445 = vunpack.c.l.b16 %v303
      %v446 = vunpack.c.l.b16 %v304
      %v447 = vunpack.c.l.b16 %v305
      %v448 = vunpack.c.l.b16 %v306
      %v449 = vunpack.c.l.b16 %v307
      %v450 = vunpack.c.l.b16 %v308
      %v451 = vunpack.c.l.b16 %v309
      %v452 = vunpack.c.l.b16 %v310
      %v453 = vunpack.c.l.b16 %v311
      %v454 = vunpack.c.l.b16 %v312
      %v455 = vunpack.c.l.b16 %v313
      %v456 = vunpack.c.l.b16 %v314
      %v457 = vunpack.c.l.b16 %v315
      %v458 = vunpack.c.l.b16 %v316
      %v459 = vunpack.c.l.b16 %v317
      %v460 = vunpack.c.l.b16 %v318
      %v461 = vunpack.c.l.b16 %v319
      %v462 = vunpack.c.l.b16 %v320
      %v463 = vunpack.c.l.b16 %v321
      %v464 = vunpack.c.l.b16 %v322
      %v465 = vunpack.c.l.b16 %v323
      %v466 = vunpack.c.l.b16 %v324
      %v467 = vunpack.c.l.b16 %v325
      %v468 = vunpack.c.l.b16 %v326
      %v469 = vunpack.c.l.b16 %v327
      %v470 = vunpack.c.l.b16 %v328
      %v471 = vunpack.c.l.b16 %v329
      %v472 = vunpack.c.l.b16 %v330
      %v473 = vunpack.c.l.b16 %v331
      %v474 = vpack.c.b16 %v411, %v410
      %v475 = vpack.c.b16 %v413, %v412
      %v476 = vpack.c.b16 %v415, %v414
      %v477 = vpack.c.b16 %v417, %v416
      %v478 = vpack.c.b16 %v419, %v418
      %v479 = vpack.c.b16 %v421, %v420
      %v480 = vpack.c.b16 %v423, %v422
      %v481 = vpack.c.b16 %v425, %v424
      %v482 = vpack.c.b16 %v427, %v426
      %v483 = vpack.c.b16 %v429, %v428
      %v484 = vpack.c.b16 %v431, %v430
      %v485 = vpack.c.b16 %v433, %v432
      %v486 = vpack.c.b16 %v435, %v434
      %v487 = vpack.c.b16 %v437, %v436
      %v488 = vpack.c.b16 %v439, %v438
      %v489 = vpack.c.b16 %v441, %v440
      %v490 = vpack.c.b16 %v443, %v442
      %v491 = vpack.c.b16 %v445, %v444
      %v492 = vpack.c.b16 %v447, %v446
      %v493 = vpack.c.b16 %v449, %v448
      %v494 = vpack.c.b16 %v451, %v450
      %v495 = vpack.c.b16 %v453, %v452
      %v496 = vpack.c.b16 %v455, %v454
      %v497 = vpack.c.b16 %v457, %v456
      %v498 = vpack.c.b16 %v459, %v458
      %v499 = vpack.c.b16 %v461, %v460
      %v500 = vpack.c.b16 %v463, %v462
      %v501 = vpack.c.b16 %v465, %v464
      %v502 = vpack.c.b16 %v467, %v466
      %v503 = vpack.c.b16 %v469, %v468
      %v504 = vpack.c.b16 %v471, %v470
      %v505 = vpack.c.b16 %v473, %v472
      %538 = vmatprep.subr.bf16.mxu0 0
      %539 = vmatpush1.bf16.msra.mxu0 %v481
      %540 = vmatprep.subr.bf16.mxu0 0
      %541 = vmatpush1.bf16.msra.mxu0 %v480
      %542 = vmatprep.subr.bf16.mxu0 0
      %543 = vmatpush1.bf16.msra.mxu0 %v479
      %544 = vmatprep.subr.bf16.mxu0 0
      %545 = vmatpush1.bf16.msra.mxu0 %v478
      %546 = vmatprep.subr.bf16.mxu0 0
      %547 = vmatpush1.bf16.msra.mxu0 %v477
      %548 = vmatprep.subr.bf16.mxu0 0
      %549 = vmatpush1.bf16.msra.mxu0 %v476
      %550 = vmatprep.subr.bf16.mxu0 0
      %551 = vmatpush1.bf16.msra.mxu0 %v475
      %552 = vmatprep.subr.bf16.mxu0 0
      %553 = vmatpush1.bf16.msra.mxu0 %v474
      %554 = vmatprep.subr.bf16.mxu0 0
      %555 = vmatpush2.bf16.msra.mxu0 %v489
      %556 = vmatprep.subr.bf16.mxu0 0
      %557 = vmatpush2.bf16.msra.mxu0 %v488
      %558 = vmatprep.subr.bf16.mxu0 0
      %559 = vmatpush2.bf16.msra.mxu0 %v487
      %560 = vmatprep.subr.bf16.mxu0 0
      %561 = vmatpush2.bf16.msra.mxu0 %v486
      %562 = vmatprep.subr.bf16.mxu0 0
      %563 = vmatpush2.bf16.msra.mxu0 %v485
      %564 = vmatprep.subr.bf16.mxu0 0
      %565 = vmatpush2.bf16.msra.mxu0 %v484
      %566 = vmatprep.subr.bf16.mxu0 0
      %567 = vmatpush2.bf16.msra.mxu0 %v483
      %568 = vmatprep.subr.bf16.mxu0 0
      %569 = vmatpush2.bf16.msra.mxu0 %v482
      %570 = vmatprep.mubr.bf16.mxu0 %v339
      %571 = vmatmul.mubr.bf16.gmra.mxu0 %v338
      %v572 = vpop.f32.mrf.mxu0
      %v573 = vadd.f32 0.0, %v572
      %v574 = vpop.f32.mrf.mxu0
      %v575 = vpop.f32.mrf.mxu0
      %v576 = vpop.f32.mrf.mxu0
      %577 = vdwg.mxu0
      %578 = vmatprep.subr.bf16.mxu0 0
      %579 = vmatpush1.bf16.msra.mxu0 %v497
      %580 = vmatprep.subr.bf16.mxu0 0
      %581 = vmatpush1.bf16.msra.mxu0 %v496
      %582 = vmatprep.subr.bf16.mxu0 0
      %583 = vmatpush1.bf16.msra.mxu0 %v495
      %584 = vmatprep.subr.bf16.mxu0 0
      %585 = vmatpush1.bf16.msra.mxu0 %v494
      %586 = vmatprep.subr.bf16.mxu0 0
      %587 = vmatpush1.bf16.msra.mxu0 %v493
      %588 = vmatprep.subr.bf16.mxu0 0
      %589 = vmatpush1.bf16.msra.mxu0 %v492
      %590 = vmatprep.subr.bf16.mxu0 0
      %591 = vmatpush1.bf16.msra.mxu0 %v491
      %592 = vmatprep.subr.bf16.mxu0 0
      %593 = vmatpush1.bf16.msra.mxu0 %v490
      %594 = vmatprep.subr.bf16.mxu0 0
      %595 = vmatpush2.bf16.msra.mxu0 %v505
      %596 = vmatprep.subr.bf16.mxu0 0
      %597 = vmatpush2.bf16.msra.mxu0 %v504
      %598 = vmatprep.subr.bf16.mxu0 0
      %599 = vmatpush2.bf16.msra.mxu0 %v503
      %600 = vmatprep.subr.bf16.mxu0 0
      %601 = vmatpush2.bf16.msra.mxu0 %v502
      %602 = vmatprep.subr.bf16.mxu0 0
      %603 = vmatpush2.bf16.msra.mxu0 %v501
      %604 = vmatprep.subr.bf16.mxu0 0
      %605 = vmatpush2.bf16.msra.mxu0 %v500
      %606 = vmatprep.subr.bf16.mxu0 0
      %607 = vmatpush2.bf16.msra.mxu0 %v499
      %608 = vmatprep.subr.bf16.mxu0 0
      %609 = vmatpush2.bf16.msra.mxu0 %v498
      %610 = vmatprep.mubr.bf16.mxu0 %v341
      %611 = vmatmul.mubr.bf16.gmra.mxu0 %v340
      %v612 = vpop.f32.mrf.mxu0
      %v613 = vadd.f32 %v573, %v612
      %v614 = vpop.f32.mrf.mxu0
      %v615 = vpop.f32.mrf.mxu0
      %v616 = vpop.f32.mrf.mxu0
      %617 = vdwg.mxu0
      %v618 = vadd.f32 %v265, %v613
      %619 = vst [vmem:[#allocation2] sm:$0xff] %v618
      %p620 = scmp.eq.s32.totalorder %s21, 1
      // Predicated region
      $region37: #{vae_forward.12} parent=31 // pred_check
        %p621 = pneg %p620
      $region38: #{vae_forward.12} parent=31 // pred_check_branch
        %623 = sbr.rel (%p621) target = $region40
      $region39: #{vae_forward.12} parent=31 // pred_region
        %v624 = vld [vmem:[#allocation2] sm:$0xff]
        %v625 = vld [vmem:[%s251] sm:$0x1]
        %v627 = vlaneseq
        %v628 = vshrl.u32 %v627, 7
        %v629 = vsub.s32 0, %v628
        %v630 = vrot.slane %v625, %v629
        %v632 = vadd.f32 %v624, %v630
        %v633 = vmax.f32 %v632, 0.0
        %v634 = vpack.c.bf16 %v633, %v633
        %635 = vst [vmem:[%s258] sm:$0xf] %v634
      $region40: #{vae_forward.12} parent=31 // pred_fallthru
        _
      %p636 = scmp.lt.s32.totalorder %s19, 0
      %s637 = scalar_select %p636, %s19, 0
      %p638 = scmp.lt.s32.totalorder %s20, 0
      %s639 = scalar_select %p638, %s20, 0
      %s640 = sadd.s32 %s639, %s637
      %s641 = smul.addr %s640, 4
      %s642 = scalar_lea.vmem %s3, %s641
      // Predicated region
      $region41: #{vae_forward.12} parent=31 // pred_check
        %p643 = pneg %p135
      $region42: #{vae_forward.12} parent=31 // pred_check_branch
        %645 = sbr.rel (%p643) target = $region44
      $region43: #{vae_forward.12} parent=31 // pred_region
        _
      $region44: #{vae_forward.12} parent=31 // pred_fallthru
        _
      // Predicated region
      $region45: #{vae_forward.12} parent=31 // pred_check
        %p646 = pneg %p135
      $region46: #{vae_forward.12} parent=31 // pred_check_branch
        %648 = sbr.rel (%p646) target = $region48
      $region47: #{vae_forward.12} parent=31 // pred_region
        %p649 = scmp.lt.s32.totalorder %s19, 0
        %s650 = scalar_select %p649, %s19, 0
        %p651 = scmp.lt.s32.totalorder %s20, 0
        %s652 = scalar_select %p651, %s20, 0
        %s653 = sadd.s32 %s652, %s650
        %s654 = smul.addr %s653, 4
        %s655 = scalar_lea.vmem %s3, %s654
      $region48: #{vae_forward.12} parent=31 // pred_fallthru
        _
    $region32: #{vae_forward.12} parent=5 // pred_fallthru
      _
    %p656 = scmp.le.s32.totalorder 2, %s9
    // Predicated region
    $region49: #{vae_forward.12} parent=5 // pred_check
      %p657 = pneg %p656
    $region50: #{vae_forward.12} parent=5 // pred_check_branch
      %659 = sbr.rel (%p657) target = $region52
    $region51: #{vae_forward.12} parent=5 // pred_region
      %s660 = ssub.s32 %s9, 2
    $region52: #{vae_forward.12} parent=5 // pred_fallthru
      _
  $region6: #{vae_forward.12} parent=0 // loop_footer
    %s13 = sadd.s32 1, %s9
  $region7: #{vae_forward.12} parent=0 // loop_footer_branch
    %8 = sbr.rel target = $region3
  $region8: #{vae_forward.12} parent=0 // loop_exit
    _

// kernel: vae_forward.15
$region0: #{vae_forward.15}
  #allocation0 [shape = 'u32[]', space=smem, size = 0x4, offset = 0x4, fixed_abs, tag = 'smem constant byte address 0x4 - core index']
  #allocation1 [shape = 'u32[144,128]{1,0:T(1,128)}', space=vmem, size = 0x12000, scoped, tag = 'internal scratch']
  #allocation2 [shape = 'f32[8,256]{1,0:T(8,128)}', space=vmem, size = 0x2000, scoped, tag = 'scratch operand']
  %s0 = inlined_call_operand.vmem [shape: bf16[8,128], index: 0, kind: input, shape index: {}]
  %s1 = inlined_call_operand.vmem [shape: bf16[128,256], index: 1, kind: input, shape index: {}]
  %s2 = inlined_call_operand.vmem [shape: f32[1,256], index: 2, kind: input, shape index: {}]
  %s3 = inlined_call_operand.vmem [shape: bf16[8,256], index: 3, kind: output, shape index: {}]
  %s4 = sld [smem:[#allocation0]]
  $region30: #{vae_forward.15} parent=0
    _
  %s6 = ssub.s32 1, %s4
  %s7 = scalar_select 0, %s6, %s4
  // Predicated region
  $region2: #{vae_forward.15} parent=0 // pred_check
    _
  $region3: #{vae_forward.15} parent=0 // pred_check_branch
    %9 = sbr.rel (0) target = $region5
  $region4: #{vae_forward.15} parent=0 // pred_region
    _
  $region5: #{vae_forward.15} parent=0 // pred_fallthru
    _
  // Predicated region
  $region6: #{vae_forward.15} parent=0 // pred_check
    _
  $region7: #{vae_forward.15} parent=0 // pred_check_branch
    %11 = sbr.rel (0) target = $region9
  $region8: #{vae_forward.15} parent=0 // pred_region
    _
  $region9: #{vae_forward.15} parent=0 // pred_fallthru
    _
  // Predicated region
  $region10: #{vae_forward.15} parent=0 // pred_check
    _
  $region11: #{vae_forward.15} parent=0 // pred_check_branch
    %13 = sbr.rel (0) target = $region13
  $region12: #{vae_forward.15} parent=0 // pred_region
    _
  $region13: #{vae_forward.15} parent=0 // pred_fallthru
    _
  %p15 = scmp.eq.s32.totalorder 0, 0
  // Predicated region
  $region14: #{vae_forward.15} parent=0 // pred_check
    %p16 = pneg %p15
  $region15: #{vae_forward.15} parent=0 // pred_check_branch
    %18 = sbr.rel (%p16) target = $region17
  $region16: #{vae_forward.15} parent=0 // pred_region
    %19 = vst [vmem:[#allocation2] sm:$0xff] 0.0
    %20 = vst [vmem:[#allocation2 + $0x8] sm:$0xff] 0.0
  $region17: #{vae_forward.15} parent=0 // pred_fallthru
    _
  %v21 = vld [vmem:[#allocation2] sm:$0xff]
  %v22 = vld [vmem:[#allocation2 + $0x8] sm:$0xff]
  %v23 = vld [vmem:[%s0] sm:$0xf]
  %v24 = vld [vmem:[%s1] sm:$0xff]
  %v25 = vld [vmem:[%s1 + $0x8] sm:$0xff]
  %v26 = vld [vmem:[%s1 + $0x10] sm:$0xff]
  %v27 = vld [vmem:[%s1 + $0x18] sm:$0xff]
  %v28 = vld [vmem:[%s1 + $0x20] sm:$0xff]
  %v29 = vld [vmem:[%s1 + $0x28] sm:$0xff]
  %v30 = vld [vmem:[%s1 + $0x30] sm:$0xff]
  %v31 = vld [vmem:[%s1 + $0x38] sm:$0xff]
  %v32 = vld [vmem:[%s1 + $0x40] sm:$0xff]
  %v33 = vld [vmem:[%s1 + $0x48] sm:$0xff]
  %v34 = vld [vmem:[%s1 + $0x50] sm:$0xff]
  %v35 = vld [vmem:[%s1 + $0x58] sm:$0xff]
  %v36 = vld [vmem:[%s1 + $0x60] sm:$0xff]
  %v37 = vld [vmem:[%s1 + $0x68] sm:$0xff]
  %v38 = vld [vmem:[%s1 + $0x70] sm:$0xff]
  %v39 = vld [vmem:[%s1 + $0x78] sm:$0xff]
  %v56 = vunpack.c.l.b16 %v24
  %v57 = vunpack.c.h.b16 %v24
  %v58 = vunpack.c.l.b16 %v25
  %v59 = vunpack.c.h.b16 %v25
  %v60 = vunpack.c.l.b16 %v26
  %v61 = vunpack.c.h.b16 %v26
  %v62 = vunpack.c.l.b16 %v27
  %v63 = vunpack.c.h.b16 %v27
  %v64 = vunpack.c.l.b16 %v28
  %v65 = vunpack.c.h.b16 %v28
  %v66 = vunpack.c.l.b16 %v29
  %v67 = vunpack.c.h.b16 %v29
  %v68 = vunpack.c.l.b16 %v30
  %v69 = vunpack.c.h.b16 %v30
  %v70 = vunpack.c.l.b16 %v31
  %v71 = vunpack.c.h.b16 %v31
  %v72 = vunpack.c.l.b16 %v32
  %v73 = vunpack.c.h.b16 %v32
  %v74 = vunpack.c.l.b16 %v33
  %v75 = vunpack.c.h.b16 %v33
  %v76 = vunpack.c.l.b16 %v34
  %v77 = vunpack.c.h.b16 %v34
  %v78 = vunpack.c.l.b16 %v35
  %v79 = vunpack.c.h.b16 %v35
  %v80 = vunpack.c.l.b16 %v36
  %v81 = vunpack.c.h.b16 %v36
  %v82 = vunpack.c.l.b16 %v37
  %v83 = vunpack.c.h.b16 %v37
  %v84 = vunpack.c.l.b16 %v38
  %v85 = vunpack.c.h.b16 %v38
  %v86 = vunpack.c.l.b16 %v39
  %v87 = vunpack.c.h.b16 %v39
  %v88 = vpack.c.b16 %v58, %v56
  %v89 = vpack.c.b16 %v59, %v57
  %v90 = vpack.c.b16 %v62, %v60
  %v91 = vpack.c.b16 %v63, %v61
  %v92 = vpack.c.b16 %v66, %v64
  %v93 = vpack.c.b16 %v67, %v65
  %v94 = vpack.c.b16 %v70, %v68
  %v95 = vpack.c.b16 %v71, %v69
  %v96 = vpack.c.b16 %v74, %v72
  %v97 = vpack.c.b16 %v75, %v73
  %v98 = vpack.c.b16 %v78, %v76
  %v99 = vpack.c.b16 %v79, %v77
  %v100 = vpack.c.b16 %v82, %v80
  %v101 = vpack.c.b16 %v83, %v81
  %v102 = vpack.c.b16 %v86, %v84
  %v103 = vpack.c.b16 %v87, %v85
  %120 = vmatprep.subr.bf16.mxu0 %v103
  %121 = vmatpush1.bf16.msra.mxu0 %v102
  %122 = vmatprep.subr.bf16.mxu0 %v101
  %123 = vmatpush1.bf16.msra.mxu0 %v100
  %124 = vmatprep.subr.bf16.mxu0 %v99
  %125 = vmatpush1.bf16.msra.mxu0 %v98
  %126 = vmatprep.subr.bf16.mxu0 %v97
  %127 = vmatpush1.bf16.msra.mxu0 %v96
  %128 = vmatprep.subr.bf16.mxu0 %v95
  %129 = vmatpush1.bf16.msra.mxu0 %v94
  %130 = vmatprep.subr.bf16.mxu0 %v93
  %131 = vmatpush1.bf16.msra.mxu0 %v92
  %132 = vmatprep.subr.bf16.mxu0 %v91
  %133 = vmatpush1.bf16.msra.mxu0 %v90
  %134 = vmatprep.subr.bf16.mxu0 %v89
  %135 = vmatpush1.bf16.msra.mxu0 %v88
  %136 = vmatprep.subr.bf16.mxu0 0
  %137 = vmatpush2.bf16.msra.mxu0 0
  %138 = vmatprep.subr.bf16.mxu0 0
  %139 = vmatpush2.bf16.msra.mxu0 0
  %140 = vmatprep.subr.bf16.mxu0 0
  %141 = vmatpush2.bf16.msra.mxu0 0
  %142 = vmatprep.subr.bf16.mxu0 0
  %143 = vmatpush2.bf16.msra.mxu0 0
  %144 = vmatprep.subr.bf16.mxu0 0
  %145 = vmatpush2.bf16.msra.mxu0 0
  %146 = vmatprep.subr.bf16.mxu0 0
  %147 = vmatpush2.bf16.msra.mxu0 0
  %148 = vmatprep.subr.bf16.mxu0 0
  %149 = vmatpush2.bf16.msra.mxu0 0
  %150 = vmatprep.subr.bf16.mxu0 0
  %151 = vmatpush2.bf16.msra.mxu0 0
  %152 = vmatprep.mubr.bf16.mxu0 0
  %153 = vmatmul.mubr.bf16.gmra.mxu0 %v23
  %v154 = vpop.f32.mrf.mxu0
  %v155 = vadd.f32 0.0, %v154
  %v156 = vpop.f32.mrf.mxu0
  %v157 = vadd.f32 0.0, %v156
  %v158 = vpop.f32.mrf.mxu0
  %v159 = vpop.f32.mrf.mxu0
  %160 = vdwg.mxu0
  %v161 = vadd.f32 %v21, %v155
  %v162 = vadd.f32 %v22, %v157
  %163 = vst [vmem:[#allocation2] sm:$0xff] %v161
  %164 = vst [vmem:[#allocation2 + $0x8] sm:$0xff] %v162
  // Predicated region
  $region18: #{vae_forward.15} parent=0 // pred_check
    %p165 = pneg %p15
  $region19: #{vae_forward.15} parent=0 // pred_check_branch
    %167 = sbr.rel (%p165) target = $region21
  $region20: #{vae_forward.15} parent=0 // pred_region
    %v168 = vld [vmem:[#allocation2] sm:$0xff]
    %v169 = vld [vmem:[#allocation2 + $0x8] sm:$0xff]
    %v170 = vld [vmem:[%s2] sm:$0x3]
    %v172 = vlaneseq
    %v173 = vshrl.u32 %v172, 7
    %v174 = vsub.s32 0, %v173
    %v175 = vrot.slane %v170, %v174
    %v176 = vlaneseq
    %v177 = vshrl.u32 %v176, 7
    %v178 = vsub.s32 1, %v177
    %v179 = vrot.slane %v170, %v178
    %v182 = vadd.f32 %v168, %v175
    %v183 = vadd.f32 %v169, %v179
    %v184 = vpack.c.bf16 %v182, %v182
    %v185 = vpack.c.bf16 %v183, %v183
    %v188 = vunpack.c.l.b16 %v184
    %v189 = vunpack.c.l.b16 %v185
    %v190 = vpack.c.b16 %v189, %v188
    %192 = vst [vmem:[%s3] sm:$0xff] %v190
  $region21: #{vae_forward.15} parent=0 // pred_fallthru
    _
  // Predicated region
  $region22: #{vae_forward.15} parent=0 // pred_check
    _
  $region23: #{vae_forward.15} parent=0 // pred_check_branch
    %194 = sbr.rel (0) target = $region25
  $region24: #{vae_forward.15} parent=0 // pred_region
    _
  $region25: #{vae_forward.15} parent=0 // pred_fallthru
    _
  // Predicated region
  $region26: #{vae_forward.15} parent=0 // pred_check
    _
  $region27: #{vae_forward.15} parent=0 // pred_check_branch
    %196 = sbr.rel (0) target = $region29
  $region28: #{vae_forward.15} parent=0 // pred_region
    _
  $region29: #{vae_forward.15} parent=0 // pred_fallthru
    _

// kernel: vae_forward.16
$region0: #{vae_forward.16}
  #allocation0 [shape = 'u32[]', space=smem, size = 0x4, offset = 0x4, fixed_abs, tag = 'smem constant byte address 0x4 - core index']
  #allocation1 [shape = 'u32[144,128]{1,0:T(1,128)}', space=vmem, size = 0x12000, scoped, tag = 'internal scratch']
  #allocation2 [shape = 'f32[8,128]{1,0:T(8,128)}', space=vmem, size = 0x1000, scoped, tag = 'scratch operand']
  %s0 = inlined_call_operand.vmem [shape: bf16[4,8,1024], index: 0, kind: input, shape index: {}]
  %s1 = inlined_call_operand.vmem [shape: bf16[4,1024,128], index: 1, kind: input, shape index: {}]
  %s2 = inlined_call_operand.vmem [shape: f32[1,128], index: 2, kind: input, shape index: {}]
  %s3 = inlined_call_operand.vmem [shape: bf16[4,8,128], index: 3, kind: output, shape index: {}]
  %s4 = sld [smem:[#allocation0]]
  $region53: #{vae_forward.16} parent=0
    _
  %s6 = ssub.s32 1, %s4
  %s7 = scalar_select 0, %s6, %s4
  loop: start=0, step=1, limit=10
  $region2: #{vae_forward.16} parent=0 // loop_pre_header
    _
  $region3: #{vae_forward.16} parent=0 // loop_header
    %s9 = sphi 0, %s13
    %p10 = scmp.ge.s32.totalorder %s9, 10
    %s16 = sphi 0, %s42
    %s17 = sphi 0, %s38
    %s18 = sphi 0, %s34
    %s19 = sphi 0, %s30
    %s20 = sphi 0, %s16
    %s21 = sphi 0, %s17
    %s22 = sphi 0, %s18
    %s23 = sphi 0, %s19
    %s24 = sphi 0, %s20
    %s25 = sphi 0, %s21
    %s26 = sphi 0, %s22
    %s27 = sphi 0, %s23
    %s49 = sphi 0, %s51
    %s52 = sphi 0, %s49
    %s53 = sphi 0, %s52
    %s69 = sphi 0, %s53
    %s79 = sphi 0, %s81
    %s82 = sphi 0, %s79
    %s83 = sphi 0, %s82
    %s99 = sphi 0, %s83
    %s105 = sphi 0, %s107
    %s108 = sphi 0, %s105
    %s109 = sphi 0, %s108
    %s125 = sphi 0, %s109
    %s135 = sphi 0, %s137
    %s138 = sphi 0, %s135
    %s139 = sphi 0, %s138
    %s155 = sphi 0, %s139
  $region4: #{vae_forward.16} parent=0 // loop_header_branch
    %12 = sbr.rel (%p10) target = $region8
  $region5: #{vae_forward.16} parent=0 // loop_body
    %s14 = ssub.s32 %s9, 1
    %s15 = ssub.s32 %s9, 2
    %s28 = sadd.s32 1, %s19
    %p29 = scmp.ge.s32.totalorder %s28, 2
    %s30 = scalar_select %p29, 0, %s28
    %s31 = sadd.s32 1, %s18
    %s32 = scalar_select %p29, %s31, %s18
    %p33 = scmp.ge.s32.totalorder %s32, 1
    %s34 = scalar_select %p33, 0, %s32
    %s35 = sadd.s32 1, %s17
    %s36 = scalar_select %p33, %s35, %s17
    %p37 = scmp.ge.s32.totalorder %s36, 1
    %s38 = scalar_select %p37, 0, %s36
    %s39 = sadd.s32 1, %s16
    %s40 = scalar_select %p37, %s39, %s16
    %p41 = scmp.ge.s32.totalorder %s40, 4
    %s42 = scalar_select %p41, 0, %s40
    %s43 = ssub.s32 %s16, %s42
    %s44 = ssub.s32 %s17, %s38
    %s45 = sor.u32 %s43, %s44
    %s46 = ssub.s32 %s19, %s30
    %s47 = sor.u32 %s45, %s46
    %p48 = scmp.eq.s32.totalorder %s47, 0
    %s50 = sadd.s32 %s49, 1
    %s51 = scalar_select %p48, %s49, %s50
    %p54 = pneg %p48
    %p55 = scmp.eq.s32.totalorder %s9, 7
    %p56 = por %p54, %p55
    %p57 = scmp.ne.s32.totalorder %s49, %s52
    %p58 = scmp.eq.s32.totalorder %s9, 0
    %p59 = por %p57, %p58
    %p60 = scmp.ne.s32.totalorder %s49, %s52
    %p61 = scmp.eq.s32.totalorder %s14, 7
    %p62 = por %p60, %p61
    %p63 = scmp.ne.s32.totalorder %s52, %s53
    %p64 = scmp.eq.s32.totalorder %s14, 0
    %p65 = por %p63, %p64
    %p66 = scmp.ne.s32.totalorder %s52, %s53
    %p67 = scmp.eq.s32.totalorder %s15, 7
    %p68 = por %p66, %p67
    %p70 = scmp.ne.s32.totalorder %s53, %s69
    %p71 = scmp.eq.s32.totalorder %s15, 0
    %p72 = por %p70, %p71
    %s73 = ssub.s32 %s16, %s42
    %s74 = ssub.s32 %s19, %s30
    %s75 = sor.u32 %s73, %s74
    %s76 = ssub.s32 %s18, %s34
    %s77 = sor.u32 %s75, %s76
    %p78 = scmp.eq.s32.totalorder %s77, 0
    %s80 = sadd.s32 %s79, 1
    %s81 = scalar_select %p78, %s79, %s80
    %p84 = pneg %p78
    %p85 = scmp.eq.s32.totalorder %s9, 7
    %p86 = por %p84, %p85
    %p87 = scmp.ne.s32.totalorder %s79, %s82
    %p88 = scmp.eq.s32.totalorder %s9, 0
    %p89 = por %p87, %p88
    %p90 = scmp.ne.s32.totalorder %s79, %s82
    %p91 = scmp.eq.s32.totalorder %s14, 7
    %p92 = por %p90, %p91
    %p93 = scmp.ne.s32.totalorder %s82, %s83
    %p94 = scmp.eq.s32.totalorder %s14, 0
    %p95 = por %p93, %p94
    %p96 = scmp.ne.s32.totalorder %s82, %s83
    %p97 = scmp.eq.s32.totalorder %s15, 7
    %p98 = por %p96, %p97
    %p100 = scmp.ne.s32.totalorder %s83, %s99
    %p101 = scmp.eq.s32.totalorder %s15, 0
    %p102 = por %p100, %p101
    %s103 = ssub.s32 %s18, %s34
    %p104 = scmp.eq.s32.totalorder %s103, 0
    %s106 = sadd.s32 %s105, 1
    %s107 = scalar_select %p104, %s105, %s106
    %p110 = pneg %p104
    %p111 = scmp.eq.s32.totalorder %s9, 7
    %p112 = por %p110, %p111
    %p113 = scmp.ne.s32.totalorder %s105, %s108
    %p114 = scmp.eq.s32.totalorder %s9, 0
    %p115 = por %p113, %p114
    %p116 = scmp.ne.s32.totalorder %s105, %s108
    %p117 = scmp.eq.s32.totalorder %s14, 7
    %p118 = por %p116, %p117
    %p119 = scmp.ne.s32.totalorder %s108, %s109
    %p120 = scmp.eq.s32.totalorder %s14, 0
    %p121 = por %p119, %p120
    %p122 = scmp.ne.s32.totalorder %s108, %s109
    %p123 = scmp.eq.s32.totalorder %s15, 7
    %p124 = por %p122, %p123
    %p126 = scmp.ne.s32.totalorder %s109, %s125
    %p127 = scmp.eq.s32.totalorder %s15, 0
    %p128 = por %p126, %p127
    %s129 = ssub.s32 %s16, %s42
    %s130 = ssub.s32 %s17, %s38
    %s131 = sor.u32 %s129, %s130
    %s132 = ssub.s32 %s18, %s34
    %s133 = sor.u32 %s131, %s132
    %p134 = scmp.eq.s32.totalorder %s133, 0
    %s136 = sadd.s32 %s135, 1
    %s137 = scalar_select %p134, %s135, %s136
    %p140 = pneg %p134
    %p141 = scmp.eq.s32.totalorder %s9, 7
    %p142 = por %p140, %p141
    %p143 = scmp.ne.s32.totalorder %s135, %s138
    %p144 = scmp.eq.s32.totalorder %s9, 0
    %p145 = por %p143, %p144
    %p146 = scmp.ne.s32.totalorder %s135, %s138
    %p147 = scmp.eq.s32.totalorder %s14, 7
    %p148 = por %p146, %p147
    %p149 = scmp.ne.s32.totalorder %s138, %s139
    %p150 = scmp.eq.s32.totalorder %s14, 0
    %p151 = por %p149, %p150
    %p152 = scmp.ne.s32.totalorder %s138, %s139
    %p153 = scmp.eq.s32.totalorder %s15, 7
    %p154 = por %p152, %p153
    %p156 = scmp.ne.s32.totalorder %s139, %s155
    %p157 = scmp.eq.s32.totalorder %s15, 0
    %p158 = por %p156, %p157
    %p159 = scmp.le.s32.totalorder 1, %s9
    %p160 = scmp.lt.s32.totalorder %s9, 9
    %p161 = pnand %p159, %p160
    %p162 = pneg %p161
    // Predicated region
    $region9: #{vae_forward.16} parent=5 // pred_check
      _
    $region10: #{vae_forward.16} parent=5 // pred_check_branch
      %164 = sbr.rel (%p161) target = $region12
    $region11: #{vae_forward.16} parent=5 // pred_region
      %s165 = ssub.s32 %s9, 1
      // Predicated region
      $region13: #{vae_forward.16} parent=11 // pred_check
        %p166 = pneg %p121
      $region14: #{vae_forward.16} parent=11 // pred_check_branch
        %168 = sbr.rel (%p166) target = $region16
      $region15: #{vae_forward.16} parent=11 // pred_region
        %p169 = scmp.lt.s32.totalorder %s22, 0
        %s170 = scalar_select %p169, %s22, 0
        %s171 = scalar_lea.vmem %s2, %s170
      $region16: #{vae_forward.16} parent=11 // pred_fallthru
        _
    $region12: #{vae_forward.16} parent=5 // pred_fallthru
      _
    %p172 = scmp.lt.s32.totalorder %s9, 8
    // Predicated region
    $region17: #{vae_forward.16} parent=5 // pred_check
      %p173 = pneg %p172
    $region18: #{vae_forward.16} parent=5 // pred_check_branch
      %175 = sbr.rel (%p173) target = $region20
    $region19: #{vae_forward.16} parent=5 // pred_region
      // Predicated region
      $region21: #{vae_forward.16} parent=19 // pred_check
        %p176 = pneg %p59
      $region22: #{vae_forward.16} parent=19 // pred_check_branch
        %178 = sbr.rel (%p176) target = $region24
      $region23: #{vae_forward.16} parent=19 // pred_region
        %s179 = smul.u32 4, %s19
        %p180 = scmp.lt.s32.totalorder %s16, 3
        %s181 = scalar_select %p180, %s16, 3
        %p182 = scmp.lt.s32.totalorder %s17, 0
        %s183 = scalar_select %p182, %s17, 0
        %p184 = scmp.lt.s32.totalorder %s179, 7
        %s185 = scalar_select %p184, %s179, 7
        %s186 = smul.addr %s183, 8
        %s187 = sadd.s32 %s185, %s186
        %s188 = smul.addr %s181, 8
        %s189 = sadd.s32 %s187, %s188
        %s190 = smul.addr %s189, 4
        %s191 = scalar_lea.vmem %s0, %s190
        %s192 = smul.u32 4, %s19
      $region24: #{vae_forward.16} parent=19 // pred_fallthru
        _
      // Predicated region
      $region25: #{vae_forward.16} parent=19 // pred_check
        %p193 = pneg %p89
      $region26: #{vae_forward.16} parent=19 // pred_check_branch
        %195 = sbr.rel (%p193) target = $region28
      $region27: #{vae_forward.16} parent=19 // pred_region
        %s196 = smul.u32 64, %s19
        %p197 = scmp.lt.s32.totalorder %s16, 3
        %s198 = scalar_select %p197, %s16, 3
        %p199 = scmp.lt.s32.totalorder %s196, 127
        %s200 = scalar_select %p199, %s196, 127
        %p201 = scmp.lt.s32.totalorder %s18, 0
        %s202 = scalar_select %p201, %s18, 0
        %s203 = sadd.s32 %s202, %s200
        %s204 = smul.addr %s198, 128
        %s205 = sadd.s32 %s203, %s204
        %s206 = smul.addr %s205, 4
        %s207 = scalar_lea.vmem %s1, %s206
        %s208 = smul.u32 64, %s19
      $region28: #{vae_forward.16} parent=19 // pred_fallthru
        _
    $region20: #{vae_forward.16} parent=5 // pred_fallthru
      _
    %p209 = scmp.le.s32.totalorder 1, %s9
    %p210 = scmp.lt.s32.totalorder %s9, 9
    %p211 = pnand %p209, %p210
    %p212 = pneg %p211
    // Predicated region
    $region29: #{vae_forward.16} parent=5 // pred_check
      _
    $region30: #{vae_forward.16} parent=5 // pred_check_branch
      %214 = sbr.rel (%p211) target = $region32
    $region31: #{vae_forward.16} parent=5 // pred_region
      %s215 = ssub.s32 %s9, 1
      %s216 = smul.u32 4, %s23
      %p217 = scmp.lt.s32.totalorder %s20, 3
      %s218 = scalar_select %p217, %s20, 3
      %p219 = scmp.lt.s32.totalorder %s21, 0
      %s220 = scalar_select %p219, %s21, 0
      %p221 = scmp.lt.s32.totalorder %s216, 7
      %s222 = scalar_select %p221, %s216, 7
      %s223 = smul.addr %s220, 8
      %s224 = sadd.s32 %s222, %s223
      %s225 = smul.addr %s218, 8
      %s226 = sadd.s32 %s224, %s225
      %s227 = smul.addr %s226, 4
      %s228 = scalar_lea.vmem %s0, %s227
      %p229 = pneg %p65
      %p230 = pneg %p62
      %s231 = smul.u32 64, %s23
      %p232 = scmp.lt.s32.totalorder %s20, 3
      %s233 = scalar_select %p232, %s20, 3
      %p234 = scmp.lt.s32.totalorder %s231, 127
      %s235 = scalar_select %p234, %s231, 127
      %p236 = scmp.lt.s32.totalorder %s22, 0
      %s237 = scalar_select %p236, %s22, 0
      %s238 = sadd.s32 %s237, %s235
      %s239 = smul.addr %s233, 128
      %s240 = sadd.s32 %s238, %s239
      %s241 = smul.addr %s240, 4
      %s242 = scalar_lea.vmem %s1, %s241
      %p243 = pneg %p95
      %p244 = pneg %p92
      %p245 = scmp.lt.s32.totalorder %s22, 0
      %s246 = scalar_select %p245, %s22, 0
      %s247 = scalar_lea.vmem %s2, %s246
      %p248 = pneg %p121
      %p249 = pneg %p118
      %p250 = pneg %p151
      %p251 = pneg %p148
      %p252 = scmp.lt.s32.totalorder %s20, 3
      %s253 = scalar_select %p252, %s20, 3
      %p254 = scmp.lt.s32.totalorder %s21, 0
      %s255 = scalar_select %p254, %s21, 0
      %p256 = scmp.lt.s32.totalorder %s22, 0
      %s257 = scalar_select %p256, %s22, 0
      %s258 = sadd.s32 %s257, %s255
      %s259 = sadd.s32 %s258, %s253
      %s260 = smul.addr %s259, 4
      %s261 = scalar_lea.vmem %s3, %s260
      %s262 = smul.u32 4, %s23
      %p263 = scmp.lt.s32.totalorder %s20, 3
      %s264 = scalar_select %p263, %s20, 3
      %p265 = scmp.lt.s32.totalorder %s21, 0
      %s266 = scalar_select %p265, %s21, 0
      %p267 = scmp.lt.s32.totalorder %s262, 7
      %s268 = scalar_select %p267, %s262, 7
      %s269 = smul.addr %s266, 8
      %s270 = sadd.s32 %s268, %s269
      %s271 = smul.addr %s264, 8
      %s272 = sadd.s32 %s270, %s271
      %s273 = smul.addr %s272, 4
      %s274 = scalar_lea.vmem %s0, %s273
      %s275 = smul.u32 4, %s23
      %s276 = smul.u32 64, %s23
      %p277 = scmp.lt.s32.totalorder %s20, 3
      %s278 = scalar_select %p277, %s20, 3
      %p279 = scmp.lt.s32.totalorder %s276, 127
      %s280 = scalar_select %p279, %s276, 127
      %p281 = scmp.lt.s32.totalorder %s22, 0
      %s282 = scalar_select %p281, %s22, 0
      %s283 = sadd.s32 %s282, %s280
      %s284 = smul.addr %s278, 128
      %s285 = sadd.s32 %s283, %s284
      %s286 = smul.addr %s285, 4
      %s287 = scalar_lea.vmem %s1, %s286
      %s288 = smul.u32 64, %s23
      %p289 = scmp.lt.s32.totalorder %s22, 0
      %s290 = scalar_select %p289, %s22, 0
      %s291 = scalar_lea.vmem %s2, %s290
      %p292 = scmp.lt.s32.totalorder %s20, 3
      %s293 = scalar_select %p292, %s20, 3
      %p294 = scmp.lt.s32.totalorder %s21, 0
      %s295 = scalar_select %p294, %s21, 0
      %p296 = scmp.lt.s32.totalorder %s22, 0
      %s297 = scalar_select %p296, %s22, 0
      %s298 = sadd.s32 %s297, %s295
      %s299 = sadd.s32 %s298, %s293
      %s300 = smul.addr %s299, 4
      %s301 = scalar_lea.vmem %s3, %s300
      %p303 = scmp.eq.s32.totalorder %s23, 0
      // Predicated region
      $region33: #{vae_forward.16} parent=31 // pred_check
        %p304 = pneg %p303
      $region34: #{vae_forward.16} parent=31 // pred_check_branch
        %306 = sbr.rel (%p304) target = $region36
      $region35: #{vae_forward.16} parent=31 // pred_region
        %307 = vst [vmem:[#allocation2] sm:$0xff] 0.0
      $region36: #{vae_forward.16} parent=31 // pred_fallthru
        _
      %v308 = vld [vmem:[#allocation2] sm:$0xff]
      %v309 = vld [vmem:[%s274] sm:$0xff]
      %v310 = vld [vmem:[%s274 + $0x8] sm:$0xff]
      %v311 = vld [vmem:[%s287] sm:$0xf]
      %v312 = vld [vmem:[%s287 + $0x4] sm:$0xf]
      %v313 = vld [vmem:[%s287 + $0x8] sm:$0xf]
      %v314 = vld [vmem:[%s287 + $0xc] sm:$0xf]
      %v315 = vld [vmem:[%s287 + $0x10] sm:$0xf]
      %v316 = vld [vmem:[%s287 + $0x14] sm:$0xf]
      %v317 = vld [vmem:[%s287 + $0x18] sm:$0xf]
      %v318 = vld [vmem:[%s287 + $0x1c] sm:$0xf]
      %v319 = vld [vmem:[%s287 + $0x20] sm:$0xf]
      %v320 = vld [vmem:[%s287 + $0x24] sm:$0xf]
      %v321 = vld [vmem:[%s287 + $0x28] sm:$0xf]
      %v322 = vld [vmem:[%s287 + $0x2c] sm:$0xf]
      %v323 = vld [vmem:[%s287 + $0x30] sm:$0xf]
      %v324 = vld [vmem:[%s287 + $0x34] sm:$0xf]
      %v325 = vld [vmem:[%s287 + $0x38] sm:$0xf]
      %v326 = vld [vmem:[%s287 + $0x3c] sm:$0xf]
      %v327 = vld [vmem:[%s287 + $0x40] sm:$0xf]
      %v328 = vld [vmem:[%s287 + $0x44] sm:$0xf]
      %v329 = vld [vmem:[%s287 + $0x48] sm:$0xf]
      %v330 = vld [vmem:[%s287 + $0x4c] sm:$0xf]
      %v331 = vld [vmem:[%s287 + $0x50] sm:$0xf]
      %v332 = vld [vmem:[%s287 + $0x54] sm:$0xf]
      %v333 = vld [vmem:[%s287 + $0x58] sm:$0xf]
      %v334 = vld [vmem:[%s287 + $0x5c] sm:$0xf]
      %v335 = vld [vmem:[%s287 + $0x60] sm:$0xf]
      %v336 = vld [vmem:[%s287 + $0x64] sm:$0xf]
      %v337 = vld [vmem:[%s287 + $0x68] sm:$0xf]
      %v338 = vld [vmem:[%s287 + $0x6c] sm:$0xf]
      %v339 = vld [vmem:[%s287 + $0x70] sm:$0xf]
      %v340 = vld [vmem:[%s287 + $0x74] sm:$0xf]
      %v341 = vld [vmem:[%s287 + $0x78] sm:$0xf]
      %v342 = vld [vmem:[%s287 + $0x7c] sm:$0xf]
      %v343 = vld [vmem:[%s287 + $0x80] sm:$0xf]
      %v344 = vld [vmem:[%s287 + $0x84] sm:$0xf]
      %v345 = vld [vmem:[%s287 + $0x88] sm:$0xf]
      %v346 = vld [vmem:[%s287 + $0x8c] sm:$0xf]
      %v347 = vld [vmem:[%s287 + $0x90] sm:$0xf]
      %v348 = vld [vmem:[%s287 + $0x94] sm:$0xf]
      %v349 = vld [vmem:[%s287 + $0x98] sm:$0xf]
      %v350 = vld [vmem:[%s287 + $0x9c] sm:$0xf]
      %v351 = vld [vmem:[%s287 + $0xa0] sm:$0xf]
      %v352 = vld [vmem:[%s287 + $0xa4] sm:$0xf]
      %v353 = vld [vmem:[%s287 + $0xa8] sm:$0xf]
      %v354 = vld [vmem:[%s287 + $0xac] sm:$0xf]
      %v355 = vld [vmem:[%s287 + $0xb0] sm:$0xf]
      %v356 = vld [vmem:[%s287 + $0xb4] sm:$0xf]
      %v357 = vld [vmem:[%s287 + $0xb8] sm:$0xf]
      %v358 = vld [vmem:[%s287 + $0xbc] sm:$0xf]
      %v359 = vld [vmem:[%s287 + $0xc0] sm:$0xf]
      %v360 = vld [vmem:[%s287 + $0xc4] sm:$0xf]
      %v361 = vld [vmem:[%s287 + $0xc8] sm:$0xf]
      %v362 = vld [vmem:[%s287 + $0xcc] sm:$0xf]
      %v363 = vld [vmem:[%s287 + $0xd0] sm:$0xf]
      %v364 = vld [vmem:[%s287 + $0xd4] sm:$0xf]
      %v365 = vld [vmem:[%s287 + $0xd8] sm:$0xf]
      %v366 = vld [vmem:[%s287 + $0xdc] sm:$0xf]
      %v367 = vld [vmem:[%s287 + $0xe0] sm:$0xf]
      %v368 = vld [vmem:[%s287 + $0xe4] sm:$0xf]
      %v369 = vld [vmem:[%s287 + $0xe8] sm:$0xf]
      %v370 = vld [vmem:[%s287 + $0xec] sm:$0xf]
      %v371 = vld [vmem:[%s287 + $0xf0] sm:$0xf]
      %v372 = vld [vmem:[%s287 + $0xf4] sm:$0xf]
      %v373 = vld [vmem:[%s287 + $0xf8] sm:$0xf]
      %v374 = vld [vmem:[%s287 + $0xfc] sm:$0xf]
      %v377 = vunpack.c.l.b16 %v309
      %v378 = vunpack.c.h.b16 %v309
      %v379 = vunpack.c.l.b16 %v310
      %v380 = vunpack.c.h.b16 %v310
      %v381 = vpack.c.b16 %v377, %v377
      %v382 = vpack.c.b16 %v378, %v378
      %v383 = vpack.c.b16 %v379, %v379
      %v384 = vpack.c.b16 %v380, %v380
      %v453 = vunpack.c.l.b16 %v311
      %v454 = vunpack.c.l.b16 %v312
      %v455 = vunpack.c.l.b16 %v313
      %v456 = vunpack.c.l.b16 %v314
      %v457 = vunpack.c.l.b16 %v315
      %v458 = vunpack.c.l.b16 %v316
      %v459 = vunpack.c.l.b16 %v317
      %v460 = vunpack.c.l.b16 %v318
      %v461 = vunpack.c.l.b16 %v319
      %v462 = vunpack.c.l.b16 %v320
      %v463 = vunpack.c.l.b16 %v321
      %v464 = vunpack.c.l.b16 %v322
      %v465 = vunpack.c.l.b16 %v323
      %v466 = vunpack.c.l.b16 %v324
      %v467 = vunpack.c.l.b16 %v325
      %v468 = vunpack.c.l.b16 %v326
      %v469 = vunpack.c.l.b16 %v327
      %v470 = vunpack.c.l.b16 %v328
      %v471 = vunpack.c.l.b16 %v329
      %v472 = vunpack.c.l.b16 %v330
      %v473 = vunpack.c.l.b16 %v331
      %v474 = vunpack.c.l.b16 %v332
      %v475 = vunpack.c.l.b16 %v333
      %v476 = vunpack.c.l.b16 %v334
      %v477 = vunpack.c.l.b16 %v335
      %v478 = vunpack.c.l.b16 %v336
      %v479 = vunpack.c.l.b16 %v337
      %v480 = vunpack.c.l.b16 %v338
      %v481 = vunpack.c.l.b16 %v339
      %v482 = vunpack.c.l.b16 %v340
      %v483 = vunpack.c.l.b16 %v341
      %v484 = vunpack.c.l.b16 %v342
      %v485 = vunpack.c.l.b16 %v343
      %v486 = vunpack.c.l.b16 %v344
      %v487 = vunpack.c.l.b16 %v345
      %v488 = vunpack.c.l.b16 %v346
      %v489 = vunpack.c.l.b16 %v347
      %v490 = vunpack.c.l.b16 %v348
      %v491 = vunpack.c.l.b16 %v349
      %v492 = vunpack.c.l.b16 %v350
      %v493 = vunpack.c.l.b16 %v351
      %v494 = vunpack.c.l.b16 %v352
      %v495 = vunpack.c.l.b16 %v353
      %v496 = vunpack.c.l.b16 %v354
      %v497 = vunpack.c.l.b16 %v355
      %v498 = vunpack.c.l.b16 %v356
      %v499 = vunpack.c.l.b16 %v357
      %v500 = vunpack.c.l.b16 %v358
      %v501 = vunpack.c.l.b16 %v359
      %v502 = vunpack.c.l.b16 %v360
      %v503 = vunpack.c.l.b16 %v361
      %v504 = vunpack.c.l.b16 %v362
      %v505 = vunpack.c.l.b16 %v363
      %v506 = vunpack.c.l.b16 %v364
      %v507 = vunpack.c.l.b16 %v365
      %v508 = vunpack.c.l.b16 %v366
      %v509 = vunpack.c.l.b16 %v367
      %v510 = vunpack.c.l.b16 %v368
      %v511 = vunpack.c.l.b16 %v369
      %v512 = vunpack.c.l.b16 %v370
      %v513 = vunpack.c.l.b16 %v371
      %v514 = vunpack.c.l.b16 %v372
      %v515 = vunpack.c.l.b16 %v373
      %v516 = vunpack.c.l.b16 %v374
      %v517 = vpack.c.b16 %v454, %v453
      %v518 = vpack.c.b16 %v456, %v455
      %v519 = vpack.c.b16 %v458, %v457
      %v520 = vpack.c.b16 %v460, %v459
      %v521 = vpack.c.b16 %v462, %v461
      %v522 = vpack.c.b16 %v464, %v463
      %v523 = vpack.c.b16 %v466, %v465
      %v524 = vpack.c.b16 %v468, %v467
      %v525 = vpack.c.b16 %v470, %v469
      %v526 = vpack.c.b16 %v472, %v471
      %v527 = vpack.c.b16 %v474, %v473
      %v528 = vpack.c.b16 %v476, %v475
      %v529 = vpack.c.b16 %v478, %v477
      %v530 = vpack.c.b16 %v480, %v479
      %v531 = vpack.c.b16 %v482, %v481
      %v532 = vpack.c.b16 %v484, %v483
      %v533 = vpack.c.b16 %v486, %v485
      %v534 = vpack.c.b16 %v488, %v487
      %v535 = vpack.c.b16 %v490, %v489
      %v536 = vpack.c.b16 %v492, %v491
      %v537 = vpack.c.b16 %v494, %v493
      %v538 = vpack.c.b16 %v496, %v495
      %v539 = vpack.c.b16 %v498, %v497
      %v540 = vpack.c.b16 %v500, %v499
      %v541 = vpack.c.b16 %v502, %v501
      %v542 = vpack.c.b16 %v504, %v503
      %v543 = vpack.c.b16 %v506, %v505
      %v544 = vpack.c.b16 %v508, %v507
      %v545 = vpack.c.b16 %v510, %v509
      %v546 = vpack.c.b16 %v512, %v511
      %v547 = vpack.c.b16 %v514, %v513
      %v548 = vpack.c.b16 %v516, %v515
      %581 = vmatprep.subr.bf16.mxu0 0
      %582 = vmatpush1.bf16.msra.mxu0 %v524
      %583 = vmatprep.subr.bf16.mxu0 0
      %584 = vmatpush1.bf16.msra.mxu0 %v523
      %585 = vmatprep.subr.bf16.mxu0 0
      %586 = vmatpush1.bf16.msra.mxu0 %v522
      %587 = vmatprep.subr.bf16.mxu0 0
      %588 = vmatpush1.bf16.msra.mxu0 %v521
      %589 = vmatprep.subr.bf16.mxu0 0
      %590 = vmatpush1.bf16.msra.mxu0 %v520
      %591 = vmatprep.subr.bf16.mxu0 0
      %592 = vmatpush1.bf16.msra.mxu0 %v519
      %593 = vmatprep.subr.bf16.mxu0 0
      %594 = vmatpush1.bf16.msra.mxu0 %v518
      %595 = vmatprep.subr.bf16.mxu0 0
      %596 = vmatpush1.bf16.msra.mxu0 %v517
      %597 = vmatprep.subr.bf16.mxu0 0
      %598 = vmatpush2.bf16.msra.mxu0 %v532
      %599 = vmatprep.subr.bf16.mxu0 0
      %600 = vmatpush2.bf16.msra.mxu0 %v531
      %601 = vmatprep.subr.bf16.mxu0 0
      %602 = vmatpush2.bf16.msra.mxu0 %v530
      %603 = vmatprep.subr.bf16.mxu0 0
      %604 = vmatpush2.bf16.msra.mxu0 %v529
      %605 = vmatprep.subr.bf16.mxu0 0
      %606 = vmatpush2.bf16.msra.mxu0 %v528
      %607 = vmatprep.subr.bf16.mxu0 0
      %608 = vmatpush2.bf16.msra.mxu0 %v527
      %609 = vmatprep.subr.bf16.mxu0 0
      %610 = vmatpush2.bf16.msra.mxu0 %v526
      %611 = vmatprep.subr.bf16.mxu0 0
      %612 = vmatpush2.bf16.msra.mxu0 %v525
      %613 = vmatprep.mubr.bf16.mxu0 %v382
      %614 = vmatmul.mubr.bf16.gmra.mxu0 %v381
      %v615 = vpop.f32.mrf.mxu0
      %v616 = vadd.f32 0.0, %v615
      %v617 = vpop.f32.mrf.mxu0
      %v618 = vpop.f32.mrf.mxu0
      %v619 = vpop.f32.mrf.mxu0
      %620 = vdwg.mxu0
      %621 = vmatprep.subr.bf16.mxu0 0
      %622 = vmatpush1.bf16.msra.mxu0 %v540
      %623 = vmatprep.subr.bf16.mxu0 0
      %624 = vmatpush1.bf16.msra.mxu0 %v539
      %625 = vmatprep.subr.bf16.mxu0 0
      %626 = vmatpush1.bf16.msra.mxu0 %v538
      %627 = vmatprep.subr.bf16.mxu0 0
      %628 = vmatpush1.bf16.msra.mxu0 %v537
      %629 = vmatprep.subr.bf16.mxu0 0
      %630 = vmatpush1.bf16.msra.mxu0 %v536
      %631 = vmatprep.subr.bf16.mxu0 0
      %632 = vmatpush1.bf16.msra.mxu0 %v535
      %633 = vmatprep.subr.bf16.mxu0 0
      %634 = vmatpush1.bf16.msra.mxu0 %v534
      %635 = vmatprep.subr.bf16.mxu0 0
      %636 = vmatpush1.bf16.msra.mxu0 %v533
      %637 = vmatprep.subr.bf16.mxu0 0
      %638 = vmatpush2.bf16.msra.mxu0 %v548
      %639 = vmatprep.subr.bf16.mxu0 0
      %640 = vmatpush2.bf16.msra.mxu0 %v547
      %641 = vmatprep.subr.bf16.mxu0 0
      %642 = vmatpush2.bf16.msra.mxu0 %v546
      %643 = vmatprep.subr.bf16.mxu0 0
      %644 = vmatpush2.bf16.msra.mxu0 %v545
      %645 = vmatprep.subr.bf16.mxu0 0
      %646 = vmatpush2.bf16.msra.mxu0 %v544
      %647 = vmatprep.subr.bf16.mxu0 0
      %648 = vmatpush2.bf16.msra.mxu0 %v543
      %649 = vmatprep.subr.bf16.mxu0 0
      %650 = vmatpush2.bf16.msra.mxu0 %v542
      %651 = vmatprep.subr.bf16.mxu0 0
      %652 = vmatpush2.bf16.msra.mxu0 %v541
      %653 = vmatprep.mubr.bf16.mxu0 %v384
      %654 = vmatmul.mubr.bf16.gmra.mxu0 %v383
      %v655 = vpop.f32.mrf.mxu0
      %v656 = vadd.f32 %v616, %v655
      %v657 = vpop.f32.mrf.mxu0
      %v658 = vpop.f32.mrf.mxu0
      %v659 = vpop.f32.mrf.mxu0
      %660 = vdwg.mxu0
      %v661 = vadd.f32 %v308, %v656
      %662 = vst [vmem:[#allocation2] sm:$0xff] %v661
      %p663 = scmp.eq.s32.totalorder %s23, 1
      // Predicated region
      $region37: #{vae_forward.16} parent=31 // pred_check
        %p664 = pneg %p663
      $region38: #{vae_forward.16} parent=31 // pred_check_branch
        %666 = sbr.rel (%p664) target = $region40
      $region39: #{vae_forward.16} parent=31 // pred_region
        %v667 = vld [vmem:[#allocation2] sm:$0xff]
        %v668 = vld [vmem:[%s291] sm:$0x1]
        %v670 = vlaneseq
        %v671 = vshrl.u32 %v670, 7
        %v672 = vsub.s32 0, %v671
        %v673 = vrot.slane %v668, %v672
        %v675 = vadd.f32 %v667, %v673
        %v676 = vmax.f32 %v675, 0.0
        %v677 = vpack.c.bf16 %v676, %v676
        %678 = vst [vmem:[%s301] sm:$0xf] %v677
      $region40: #{vae_forward.16} parent=31 // pred_fallthru
        _
      %p679 = scmp.lt.s32.totalorder %s20, 3
      %s680 = scalar_select %p679, %s20, 3
      %p681 = scmp.lt.s32.totalorder %s21, 0
      %s682 = scalar_select %p681, %s21, 0
      %p683 = scmp.lt.s32.totalorder %s22, 0
      %s684 = scalar_select %p683, %s22, 0
      %s685 = sadd.s32 %s684, %s682
      %s686 = sadd.s32 %s685, %s680
      %s687 = smul.addr %s686, 4
      %s688 = scalar_lea.vmem %s3, %s687
      // Predicated region
      $region41: #{vae_forward.16} parent=31 // pred_check
        %p689 = pneg %p148
      $region42: #{vae_forward.16} parent=31 // pred_check_branch
        %691 = sbr.rel (%p689) target = $region44
      $region43: #{vae_forward.16} parent=31 // pred_region
        _
      $region44: #{vae_forward.16} parent=31 // pred_fallthru
        _
    $region32: #{vae_forward.16} parent=5 // pred_fallthru
      _
    %p692 = scmp.le.s32.totalorder 2, %s9
    // Predicated region
    $region45: #{vae_forward.16} parent=5 // pred_check
      %p693 = pneg %p692
    $region46: #{vae_forward.16} parent=5 // pred_check_branch
      %695 = sbr.rel (%p693) target = $region48
    $region47: #{vae_forward.16} parent=5 // pred_region
      %s696 = ssub.s32 %s9, 2
      // Predicated region
      $region49: #{vae_forward.16} parent=47 // pred_check
        %p697 = pneg %p154
      $region50: #{vae_forward.16} parent=47 // pred_check_branch
        %699 = sbr.rel (%p697) target = $region52
      $region51: #{vae_forward.16} parent=47 // pred_region
        %p700 = scmp.lt.s32.totalorder %s24, 3
        %s701 = scalar_select %p700, %s24, 3
        %p702 = scmp.lt.s32.totalorder %s25, 0
        %s703 = scalar_select %p702, %s25, 0
        %p704 = scmp.lt.s32.totalorder %s26, 0
        %s705 = scalar_select %p704, %s26, 0
        %s706 = sadd.s32 %s705, %s703
        %s707 = sadd.s32 %s706, %s701
        %s708 = smul.addr %s707, 4
        %s709 = scalar_lea.vmem %s3, %s708
      $region52: #{vae_forward.16} parent=47 // pred_fallthru
        _
    $region48: #{vae_forward.16} parent=5 // pred_fallthru
      _
  $region6: #{vae_forward.16} parent=0 // loop_footer
    %s13 = sadd.s32 1, %s9
  $region7: #{vae_forward.16} parent=0 // loop_footer_branch
    %8 = sbr.rel target = $region3
  $region8: #{vae_forward.16} parent=0 // loop_exit
    _

// kernel: vae_forward.17
$region0: #{vae_forward.17}
  #allocation0 [shape = 'u32[]', space=smem, size = 0x4, offset = 0x4, fixed_abs, tag = 'smem constant byte address 0x4 - core index']
  #allocation1 [shape = 'u32[144,128]{1,0:T(1,128)}', space=vmem, size = 0x12000, scoped, tag = 'internal scratch']
  #allocation2 [shape = 'f32[8,128]{1,0:T(8,128)}', space=vmem, size = 0x1000, scoped, tag = 'scratch operand']
  %s0 = inlined_call_operand.vmem [shape: bf16[4,8,512], index: 0, kind: input, shape index: {}]
  %s1 = inlined_call_operand.vmem [shape: bf16[4,512,128], index: 1, kind: input, shape index: {}]
  %s2 = inlined_call_operand.vmem [shape: f32[1,128], index: 2, kind: input, shape index: {}]
  %s3 = inlined_call_operand.vmem [shape: bf16[4,8,128], index: 3, kind: output, shape index: {}]
  %s4 = sld [smem:[#allocation0]]
  $region53: #{vae_forward.17} parent=0
    _
  %s6 = ssub.s32 1, %s4
  %s7 = scalar_select 0, %s6, %s4
  loop: start=0, step=1, limit=6
  $region2: #{vae_forward.17} parent=0 // loop_pre_header
    _
  $region3: #{vae_forward.17} parent=0 // loop_header
    %s9 = sphi 0, %s13
    %p10 = scmp.ge.s32.totalorder %s9, 6
    %s16 = sphi 0, %s42
    %s17 = sphi 0, %s38
    %s18 = sphi 0, %s34
    %s19 = sphi 0, %s30
    %s20 = sphi 0, %s16
    %s21 = sphi 0, %s17
    %s22 = sphi 0, %s18
    %s23 = sphi 0, %s19
    %s24 = sphi 0, %s20
    %s25 = sphi 0, %s21
    %s26 = sphi 0, %s22
    %s27 = sphi 0, %s23
    %s49 = sphi 0, %s51
    %s52 = sphi 0, %s49
    %s53 = sphi 0, %s52
    %s69 = sphi 0, %s53
    %s79 = sphi 0, %s81
    %s82 = sphi 0, %s79
    %s83 = sphi 0, %s82
    %s99 = sphi 0, %s83
    %s105 = sphi 0, %s107
    %s108 = sphi 0, %s105
    %s109 = sphi 0, %s108
    %s125 = sphi 0, %s109
    %s135 = sphi 0, %s137
    %s138 = sphi 0, %s135
    %s139 = sphi 0, %s138
    %s155 = sphi 0, %s139
  $region4: #{vae_forward.17} parent=0 // loop_header_branch
    %12 = sbr.rel (%p10) target = $region8
  $region5: #{vae_forward.17} parent=0 // loop_body
    %s14 = ssub.s32 %s9, 1
    %s15 = ssub.s32 %s9, 2
    %s28 = sadd.s32 1, %s19
    %p29 = scmp.ge.s32.totalorder %s28, 1
    %s30 = scalar_select %p29, 0, %s28
    %s31 = sadd.s32 1, %s18
    %s32 = scalar_select %p29, %s31, %s18
    %p33 = scmp.ge.s32.totalorder %s32, 1
    %s34 = scalar_select %p33, 0, %s32
    %s35 = sadd.s32 1, %s17
    %s36 = scalar_select %p33, %s35, %s17
    %p37 = scmp.ge.s32.totalorder %s36, 1
    %s38 = scalar_select %p37, 0, %s36
    %s39 = sadd.s32 1, %s16
    %s40 = scalar_select %p37, %s39, %s16
    %p41 = scmp.ge.s32.totalorder %s40, 4
    %s42 = scalar_select %p41, 0, %s40
    %s43 = ssub.s32 %s16, %s42
    %s44 = ssub.s32 %s17, %s38
    %s45 = sor.u32 %s43, %s44
    %s46 = ssub.s32 %s19, %s30
    %s47 = sor.u32 %s45, %s46
    %p48 = scmp.eq.s32.totalorder %s47, 0
    %s50 = sadd.s32 %s49, 1
    %s51 = scalar_select %p48, %s49, %s50
    %p54 = pneg %p48
    %p55 = scmp.eq.s32.totalorder %s9, 3
    %p56 = por %p54, %p55
    %p57 = scmp.ne.s32.totalorder %s49, %s52
    %p58 = scmp.eq.s32.totalorder %s9, 0
    %p59 = por %p57, %p58
    %p60 = scmp.ne.s32.totalorder %s49, %s52
    %p61 = scmp.eq.s32.totalorder %s14, 3
    %p62 = por %p60, %p61
    %p63 = scmp.ne.s32.totalorder %s52, %s53
    %p64 = scmp.eq.s32.totalorder %s14, 0
    %p65 = por %p63, %p64
    %p66 = scmp.ne.s32.totalorder %s52, %s53
    %p67 = scmp.eq.s32.totalorder %s15, 3
    %p68 = por %p66, %p67
    %p70 = scmp.ne.s32.totalorder %s53, %s69
    %p71 = scmp.eq.s32.totalorder %s15, 0
    %p72 = por %p70, %p71
    %s73 = ssub.s32 %s16, %s42
    %s74 = ssub.s32 %s19, %s30
    %s75 = sor.u32 %s73, %s74
    %s76 = ssub.s32 %s18, %s34
    %s77 = sor.u32 %s75, %s76
    %p78 = scmp.eq.s32.totalorder %s77, 0
    %s80 = sadd.s32 %s79, 1
    %s81 = scalar_select %p78, %s79, %s80
    %p84 = pneg %p78
    %p85 = scmp.eq.s32.totalorder %s9, 3
    %p86 = por %p84, %p85
    %p87 = scmp.ne.s32.totalorder %s79, %s82
    %p88 = scmp.eq.s32.totalorder %s9, 0
    %p89 = por %p87, %p88
    %p90 = scmp.ne.s32.totalorder %s79, %s82
    %p91 = scmp.eq.s32.totalorder %s14, 3
    %p92 = por %p90, %p91
    %p93 = scmp.ne.s32.totalorder %s82, %s83
    %p94 = scmp.eq.s32.totalorder %s14, 0
    %p95 = por %p93, %p94
    %p96 = scmp.ne.s32.totalorder %s82, %s83
    %p97 = scmp.eq.s32.totalorder %s15, 3
    %p98 = por %p96, %p97
    %p100 = scmp.ne.s32.totalorder %s83, %s99
    %p101 = scmp.eq.s32.totalorder %s15, 0
    %p102 = por %p100, %p101
    %s103 = ssub.s32 %s18, %s34
    %p104 = scmp.eq.s32.totalorder %s103, 0
    %s106 = sadd.s32 %s105, 1
    %s107 = scalar_select %p104, %s105, %s106
    %p110 = pneg %p104
    %p111 = scmp.eq.s32.totalorder %s9, 3
    %p112 = por %p110, %p111
    %p113 = scmp.ne.s32.totalorder %s105, %s108
    %p114 = scmp.eq.s32.totalorder %s9, 0
    %p115 = por %p113, %p114
    %p116 = scmp.ne.s32.totalorder %s105, %s108
    %p117 = scmp.eq.s32.totalorder %s14, 3
    %p118 = por %p116, %p117
    %p119 = scmp.ne.s32.totalorder %s108, %s109
    %p120 = scmp.eq.s32.totalorder %s14, 0
    %p121 = por %p119, %p120
    %p122 = scmp.ne.s32.totalorder %s108, %s109
    %p123 = scmp.eq.s32.totalorder %s15, 3
    %p124 = por %p122, %p123
    %p126 = scmp.ne.s32.totalorder %s109, %s125
    %p127 = scmp.eq.s32.totalorder %s15, 0
    %p128 = por %p126, %p127
    %s129 = ssub.s32 %s16, %s42
    %s130 = ssub.s32 %s17, %s38
    %s131 = sor.u32 %s129, %s130
    %s132 = ssub.s32 %s18, %s34
    %s133 = sor.u32 %s131, %s132
    %p134 = scmp.eq.s32.totalorder %s133, 0
    %s136 = sadd.s32 %s135, 1
    %s137 = scalar_select %p134, %s135, %s136
    %p140 = pneg %p134
    %p141 = scmp.eq.s32.totalorder %s9, 3
    %p142 = por %p140, %p141
    %p143 = scmp.ne.s32.totalorder %s135, %s138
    %p144 = scmp.eq.s32.totalorder %s9, 0
    %p145 = por %p143, %p144
    %p146 = scmp.ne.s32.totalorder %s135, %s138
    %p147 = scmp.eq.s32.totalorder %s14, 3
    %p148 = por %p146, %p147
    %p149 = scmp.ne.s32.totalorder %s138, %s139
    %p150 = scmp.eq.s32.totalorder %s14, 0
    %p151 = por %p149, %p150
    %p152 = scmp.ne.s32.totalorder %s138, %s139
    %p153 = scmp.eq.s32.totalorder %s15, 3
    %p154 = por %p152, %p153
    %p156 = scmp.ne.s32.totalorder %s139, %s155
    %p157 = scmp.eq.s32.totalorder %s15, 0
    %p158 = por %p156, %p157
    %p159 = scmp.le.s32.totalorder 1, %s9
    %p160 = scmp.lt.s32.totalorder %s9, 5
    %p161 = pnand %p159, %p160
    %p162 = pneg %p161
    // Predicated region
    $region9: #{vae_forward.17} parent=5 // pred_check
      _
    $region10: #{vae_forward.17} parent=5 // pred_check_branch
      %164 = sbr.rel (%p161) target = $region12
    $region11: #{vae_forward.17} parent=5 // pred_region
      %s165 = ssub.s32 %s9, 1
      // Predicated region
      $region13: #{vae_forward.17} parent=11 // pred_check
        %p166 = pneg %p121
      $region14: #{vae_forward.17} parent=11 // pred_check_branch
        %168 = sbr.rel (%p166) target = $region16
      $region15: #{vae_forward.17} parent=11 // pred_region
        %p169 = scmp.lt.s32.totalorder %s22, 0
        %s170 = scalar_select %p169, %s22, 0
        %s171 = scalar_lea.vmem %s2, %s170
      $region16: #{vae_forward.17} parent=11 // pred_fallthru
        _
    $region12: #{vae_forward.17} parent=5 // pred_fallthru
      _
    %p172 = scmp.lt.s32.totalorder %s9, 4
    // Predicated region
    $region17: #{vae_forward.17} parent=5 // pred_check
      %p173 = pneg %p172
    $region18: #{vae_forward.17} parent=5 // pred_check_branch
      %175 = sbr.rel (%p173) target = $region20
    $region19: #{vae_forward.17} parent=5 // pred_region
      // Predicated region
      $region21: #{vae_forward.17} parent=19 // pred_check
        %p176 = pneg %p59
      $region22: #{vae_forward.17} parent=19 // pred_check_branch
        %178 = sbr.rel (%p176) target = $region24
      $region23: #{vae_forward.17} parent=19 // pred_region
        %s179 = smul.u32 4, %s19
        %p180 = scmp.lt.s32.totalorder %s16, 3
        %s181 = scalar_select %p180, %s16, 3
        %p182 = scmp.lt.s32.totalorder %s17, 0
        %s183 = scalar_select %p182, %s17, 0
        %p184 = scmp.lt.s32.totalorder %s179, 3
        %s185 = scalar_select %p184, %s179, 3
        %s186 = smul.addr %s183, 4
        %s187 = sadd.s32 %s185, %s186
        %s188 = smul.addr %s181, 4
        %s189 = sadd.s32 %s187, %s188
        %s190 = smul.addr %s189, 4
        %s191 = scalar_lea.vmem %s0, %s190
        %s192 = smul.u32 4, %s19
      $region24: #{vae_forward.17} parent=19 // pred_fallthru
        _
      // Predicated region
      $region25: #{vae_forward.17} parent=19 // pred_check
        %p193 = pneg %p89
      $region26: #{vae_forward.17} parent=19 // pred_check_branch
        %195 = sbr.rel (%p193) target = $region28
      $region27: #{vae_forward.17} parent=19 // pred_region
        %s196 = smul.u32 64, %s19
        %p197 = scmp.lt.s32.totalorder %s16, 3
        %s198 = scalar_select %p197, %s16, 3
        %p199 = scmp.lt.s32.totalorder %s196, 63
        %s200 = scalar_select %p199, %s196, 63
        %p201 = scmp.lt.s32.totalorder %s18, 0
        %s202 = scalar_select %p201, %s18, 0
        %s203 = sadd.s32 %s202, %s200
        %s204 = smul.addr %s198, 64
        %s205 = sadd.s32 %s203, %s204
        %s206 = smul.addr %s205, 4
        %s207 = scalar_lea.vmem %s1, %s206
        %s208 = smul.u32 64, %s19
      $region28: #{vae_forward.17} parent=19 // pred_fallthru
        _
    $region20: #{vae_forward.17} parent=5 // pred_fallthru
      _
    %p209 = scmp.le.s32.totalorder 1, %s9
    %p210 = scmp.lt.s32.totalorder %s9, 5
    %p211 = pnand %p209, %p210
    %p212 = pneg %p211
    // Predicated region
    $region29: #{vae_forward.17} parent=5 // pred_check
      _
    $region30: #{vae_forward.17} parent=5 // pred_check_branch
      %214 = sbr.rel (%p211) target = $region32
    $region31: #{vae_forward.17} parent=5 // pred_region
      %s215 = ssub.s32 %s9, 1
      %s216 = smul.u32 4, %s23
      %p217 = scmp.lt.s32.totalorder %s20, 3
      %s218 = scalar_select %p217, %s20, 3
      %p219 = scmp.lt.s32.totalorder %s21, 0
      %s220 = scalar_select %p219, %s21, 0
      %p221 = scmp.lt.s32.totalorder %s216, 3
      %s222 = scalar_select %p221, %s216, 3
      %s223 = smul.addr %s220, 4
      %s224 = sadd.s32 %s222, %s223
      %s225 = smul.addr %s218, 4
      %s226 = sadd.s32 %s224, %s225
      %s227 = smul.addr %s226, 4
      %s228 = scalar_lea.vmem %s0, %s227
      %p229 = pneg %p65
      %p230 = pneg %p62
      %s231 = smul.u32 64, %s23
      %p232 = scmp.lt.s32.totalorder %s20, 3
      %s233 = scalar_select %p232, %s20, 3
      %p234 = scmp.lt.s32.totalorder %s231, 63
      %s235 = scalar_select %p234, %s231, 63
      %p236 = scmp.lt.s32.totalorder %s22, 0
      %s237 = scalar_select %p236, %s22, 0
      %s238 = sadd.s32 %s237, %s235
      %s239 = smul.addr %s233, 64
      %s240 = sadd.s32 %s238, %s239
      %s241 = smul.addr %s240, 4
      %s242 = scalar_lea.vmem %s1, %s241
      %p243 = pneg %p95
      %p244 = pneg %p92
      %p245 = scmp.lt.s32.totalorder %s22, 0
      %s246 = scalar_select %p245, %s22, 0
      %s247 = scalar_lea.vmem %s2, %s246
      %p248 = pneg %p121
      %p249 = pneg %p118
      %p250 = pneg %p151
      %p251 = pneg %p148
      %p252 = scmp.lt.s32.totalorder %s20, 3
      %s253 = scalar_select %p252, %s20, 3
      %p254 = scmp.lt.s32.totalorder %s21, 0
      %s255 = scalar_select %p254, %s21, 0
      %p256 = scmp.lt.s32.totalorder %s22, 0
      %s257 = scalar_select %p256, %s22, 0
      %s258 = sadd.s32 %s257, %s255
      %s259 = sadd.s32 %s258, %s253
      %s260 = smul.addr %s259, 4
      %s261 = scalar_lea.vmem %s3, %s260
      %s262 = smul.u32 4, %s23
      %p263 = scmp.lt.s32.totalorder %s20, 3
      %s264 = scalar_select %p263, %s20, 3
      %p265 = scmp.lt.s32.totalorder %s21, 0
      %s266 = scalar_select %p265, %s21, 0
      %p267 = scmp.lt.s32.totalorder %s262, 3
      %s268 = scalar_select %p267, %s262, 3
      %s269 = smul.addr %s266, 4
      %s270 = sadd.s32 %s268, %s269
      %s271 = smul.addr %s264, 4
      %s272 = sadd.s32 %s270, %s271
      %s273 = smul.addr %s272, 4
      %s274 = scalar_lea.vmem %s0, %s273
      %s275 = smul.u32 4, %s23
      %s276 = smul.u32 64, %s23
      %p277 = scmp.lt.s32.totalorder %s20, 3
      %s278 = scalar_select %p277, %s20, 3
      %p279 = scmp.lt.s32.totalorder %s276, 63
      %s280 = scalar_select %p279, %s276, 63
      %p281 = scmp.lt.s32.totalorder %s22, 0
      %s282 = scalar_select %p281, %s22, 0
      %s283 = sadd.s32 %s282, %s280
      %s284 = smul.addr %s278, 64
      %s285 = sadd.s32 %s283, %s284
      %s286 = smul.addr %s285, 4
      %s287 = scalar_lea.vmem %s1, %s286
      %s288 = smul.u32 64, %s23
      %p289 = scmp.lt.s32.totalorder %s22, 0
      %s290 = scalar_select %p289, %s22, 0
      %s291 = scalar_lea.vmem %s2, %s290
      %p292 = scmp.lt.s32.totalorder %s20, 3
      %s293 = scalar_select %p292, %s20, 3
      %p294 = scmp.lt.s32.totalorder %s21, 0
      %s295 = scalar_select %p294, %s21, 0
      %p296 = scmp.lt.s32.totalorder %s22, 0
      %s297 = scalar_select %p296, %s22, 0
      %s298 = sadd.s32 %s297, %s295
      %s299 = sadd.s32 %s298, %s293
      %s300 = smul.addr %s299, 4
      %s301 = scalar_lea.vmem %s3, %s300
      %p303 = scmp.eq.s32.totalorder %s23, 0
      // Predicated region
      $region33: #{vae_forward.17} parent=31 // pred_check
        %p304 = pneg %p303
      $region34: #{vae_forward.17} parent=31 // pred_check_branch
        %306 = sbr.rel (%p304) target = $region36
      $region35: #{vae_forward.17} parent=31 // pred_region
        %307 = vst [vmem:[#allocation2] sm:$0xff] 0.0
      $region36: #{vae_forward.17} parent=31 // pred_fallthru
        _
      %v308 = vld [vmem:[#allocation2] sm:$0xff]
      %v309 = vld [vmem:[%s274] sm:$0xff]
      %v310 = vld [vmem:[%s274 + $0x8] sm:$0xff]
      %v311 = vld [vmem:[%s287] sm:$0xf]
      %v312 = vld [vmem:[%s287 + $0x4] sm:$0xf]
      %v313 = vld [vmem:[%s287 + $0x8] sm:$0xf]
      %v314 = vld [vmem:[%s287 + $0xc] sm:$0xf]
      %v315 = vld [vmem:[%s287 + $0x10] sm:$0xf]
      %v316 = vld [vmem:[%s287 + $0x14] sm:$0xf]
      %v317 = vld [vmem:[%s287 + $0x18] sm:$0xf]
      %v318 = vld [vmem:[%s287 + $0x1c] sm:$0xf]
      %v319 = vld [vmem:[%s287 + $0x20] sm:$0xf]
      %v320 = vld [vmem:[%s287 + $0x24] sm:$0xf]
      %v321 = vld [vmem:[%s287 + $0x28] sm:$0xf]
      %v322 = vld [vmem:[%s287 + $0x2c] sm:$0xf]
      %v323 = vld [vmem:[%s287 + $0x30] sm:$0xf]
      %v324 = vld [vmem:[%s287 + $0x34] sm:$0xf]
      %v325 = vld [vmem:[%s287 + $0x38] sm:$0xf]
      %v326 = vld [vmem:[%s287 + $0x3c] sm:$0xf]
      %v327 = vld [vmem:[%s287 + $0x40] sm:$0xf]
      %v328 = vld [vmem:[%s287 + $0x44] sm:$0xf]
      %v329 = vld [vmem:[%s287 + $0x48] sm:$0xf]
      %v330 = vld [vmem:[%s287 + $0x4c] sm:$0xf]
      %v331 = vld [vmem:[%s287 + $0x50] sm:$0xf]
      %v332 = vld [vmem:[%s287 + $0x54] sm:$0xf]
      %v333 = vld [vmem:[%s287 + $0x58] sm:$0xf]
      %v334 = vld [vmem:[%s287 + $0x5c] sm:$0xf]
      %v335 = vld [vmem:[%s287 + $0x60] sm:$0xf]
      %v336 = vld [vmem:[%s287 + $0x64] sm:$0xf]
      %v337 = vld [vmem:[%s287 + $0x68] sm:$0xf]
      %v338 = vld [vmem:[%s287 + $0x6c] sm:$0xf]
      %v339 = vld [vmem:[%s287 + $0x70] sm:$0xf]
      %v340 = vld [vmem:[%s287 + $0x74] sm:$0xf]
      %v341 = vld [vmem:[%s287 + $0x78] sm:$0xf]
      %v342 = vld [vmem:[%s287 + $0x7c] sm:$0xf]
      %v343 = vld [vmem:[%s287 + $0x80] sm:$0xf]
      %v344 = vld [vmem:[%s287 + $0x84] sm:$0xf]
      %v345 = vld [vmem:[%s287 + $0x88] sm:$0xf]
      %v346 = vld [vmem:[%s287 + $0x8c] sm:$0xf]
      %v347 = vld [vmem:[%s287 + $0x90] sm:$0xf]
      %v348 = vld [vmem:[%s287 + $0x94] sm:$0xf]
      %v349 = vld [vmem:[%s287 + $0x98] sm:$0xf]
      %v350 = vld [vmem:[%s287 + $0x9c] sm:$0xf]
      %v351 = vld [vmem:[%s287 + $0xa0] sm:$0xf]
      %v352 = vld [vmem:[%s287 + $0xa4] sm:$0xf]
      %v353 = vld [vmem:[%s287 + $0xa8] sm:$0xf]
      %v354 = vld [vmem:[%s287 + $0xac] sm:$0xf]
      %v355 = vld [vmem:[%s287 + $0xb0] sm:$0xf]
      %v356 = vld [vmem:[%s287 + $0xb4] sm:$0xf]
      %v357 = vld [vmem:[%s287 + $0xb8] sm:$0xf]
      %v358 = vld [vmem:[%s287 + $0xbc] sm:$0xf]
      %v359 = vld [vmem:[%s287 + $0xc0] sm:$0xf]
      %v360 = vld [vmem:[%s287 + $0xc4] sm:$0xf]
      %v361 = vld [vmem:[%s287 + $0xc8] sm:$0xf]
      %v362 = vld [vmem:[%s287 + $0xcc] sm:$0xf]
      %v363 = vld [vmem:[%s287 + $0xd0] sm:$0xf]
      %v364 = vld [vmem:[%s287 + $0xd4] sm:$0xf]
      %v365 = vld [vmem:[%s287 + $0xd8] sm:$0xf]
      %v366 = vld [vmem:[%s287 + $0xdc] sm:$0xf]
      %v367 = vld [vmem:[%s287 + $0xe0] sm:$0xf]
      %v368 = vld [vmem:[%s287 + $0xe4] sm:$0xf]
      %v369 = vld [vmem:[%s287 + $0xe8] sm:$0xf]
      %v370 = vld [vmem:[%s287 + $0xec] sm:$0xf]
      %v371 = vld [vmem:[%s287 + $0xf0] sm:$0xf]
      %v372 = vld [vmem:[%s287 + $0xf4] sm:$0xf]
      %v373 = vld [vmem:[%s287 + $0xf8] sm:$0xf]
      %v374 = vld [vmem:[%s287 + $0xfc] sm:$0xf]
      %v377 = vunpack.c.l.b16 %v309
      %v378 = vunpack.c.h.b16 %v309
      %v379 = vunpack.c.l.b16 %v310
      %v380 = vunpack.c.h.b16 %v310
      %v381 = vpack.c.b16 %v377, %v377
      %v382 = vpack.c.b16 %v378, %v378
      %v383 = vpack.c.b16 %v379, %v379
      %v384 = vpack.c.b16 %v380, %v380
      %v453 = vunpack.c.l.b16 %v311
      %v454 = vunpack.c.l.b16 %v312
      %v455 = vunpack.c.l.b16 %v313
      %v456 = vunpack.c.l.b16 %v314
      %v457 = vunpack.c.l.b16 %v315
      %v458 = vunpack.c.l.b16 %v316
      %v459 = vunpack.c.l.b16 %v317
      %v460 = vunpack.c.l.b16 %v318
      %v461 = vunpack.c.l.b16 %v319
      %v462 = vunpack.c.l.b16 %v320
      %v463 = vunpack.c.l.b16 %v321
      %v464 = vunpack.c.l.b16 %v322
      %v465 = vunpack.c.l.b16 %v323
      %v466 = vunpack.c.l.b16 %v324
      %v467 = vunpack.c.l.b16 %v325
      %v468 = vunpack.c.l.b16 %v326
      %v469 = vunpack.c.l.b16 %v327
      %v470 = vunpack.c.l.b16 %v328
      %v471 = vunpack.c.l.b16 %v329
      %v472 = vunpack.c.l.b16 %v330
      %v473 = vunpack.c.l.b16 %v331
      %v474 = vunpack.c.l.b16 %v332
      %v475 = vunpack.c.l.b16 %v333
      %v476 = vunpack.c.l.b16 %v334
      %v477 = vunpack.c.l.b16 %v335
      %v478 = vunpack.c.l.b16 %v336
      %v479 = vunpack.c.l.b16 %v337
      %v480 = vunpack.c.l.b16 %v338
      %v481 = vunpack.c.l.b16 %v339
      %v482 = vunpack.c.l.b16 %v340
      %v483 = vunpack.c.l.b16 %v341
      %v484 = vunpack.c.l.b16 %v342
      %v485 = vunpack.c.l.b16 %v343
      %v486 = vunpack.c.l.b16 %v344
      %v487 = vunpack.c.l.b16 %v345
      %v488 = vunpack.c.l.b16 %v346
      %v489 = vunpack.c.l.b16 %v347
      %v490 = vunpack.c.l.b16 %v348
      %v491 = vunpack.c.l.b16 %v349
      %v492 = vunpack.c.l.b16 %v350
      %v493 = vunpack.c.l.b16 %v351
      %v494 = vunpack.c.l.b16 %v352
      %v495 = vunpack.c.l.b16 %v353
      %v496 = vunpack.c.l.b16 %v354
      %v497 = vunpack.c.l.b16 %v355
      %v498 = vunpack.c.l.b16 %v356
      %v499 = vunpack.c.l.b16 %v357
      %v500 = vunpack.c.l.b16 %v358
      %v501 = vunpack.c.l.b16 %v359
      %v502 = vunpack.c.l.b16 %v360
      %v503 = vunpack.c.l.b16 %v361
      %v504 = vunpack.c.l.b16 %v362
      %v505 = vunpack.c.l.b16 %v363
      %v506 = vunpack.c.l.b16 %v364
      %v507 = vunpack.c.l.b16 %v365
      %v508 = vunpack.c.l.b16 %v366
      %v509 = vunpack.c.l.b16 %v367
      %v510 = vunpack.c.l.b16 %v368
      %v511 = vunpack.c.l.b16 %v369
      %v512 = vunpack.c.l.b16 %v370
      %v513 = vunpack.c.l.b16 %v371
      %v514 = vunpack.c.l.b16 %v372
      %v515 = vunpack.c.l.b16 %v373
      %v516 = vunpack.c.l.b16 %v374
      %v517 = vpack.c.b16 %v454, %v453
      %v518 = vpack.c.b16 %v456, %v455
      %v519 = vpack.c.b16 %v458, %v457
      %v520 = vpack.c.b16 %v460, %v459
      %v521 = vpack.c.b16 %v462, %v461
      %v522 = vpack.c.b16 %v464, %v463
      %v523 = vpack.c.b16 %v466, %v465
      %v524 = vpack.c.b16 %v468, %v467
      %v525 = vpack.c.b16 %v470, %v469
      %v526 = vpack.c.b16 %v472, %v471
      %v527 = vpack.c.b16 %v474, %v473
      %v528 = vpack.c.b16 %v476, %v475
      %v529 = vpack.c.b16 %v478, %v477
      %v530 = vpack.c.b16 %v480, %v479
      %v531 = vpack.c.b16 %v482, %v481
      %v532 = vpack.c.b16 %v484, %v483
      %v533 = vpack.c.b16 %v486, %v485
      %v534 = vpack.c.b16 %v488, %v487
      %v535 = vpack.c.b16 %v490, %v489
      %v536 = vpack.c.b16 %v492, %v491
      %v537 = vpack.c.b16 %v494, %v493
      %v538 = vpack.c.b16 %v496, %v495
      %v539 = vpack.c.b16 %v498, %v497
      %v540 = vpack.c.b16 %v500, %v499
      %v541 = vpack.c.b16 %v502, %v501
      %v542 = vpack.c.b16 %v504, %v503
      %v543 = vpack.c.b16 %v506, %v505
      %v544 = vpack.c.b16 %v508, %v507
      %v545 = vpack.c.b16 %v510, %v509
      %v546 = vpack.c.b16 %v512, %v511
      %v547 = vpack.c.b16 %v514, %v513
      %v548 = vpack.c.b16 %v516, %v515
      %581 = vmatprep.subr.bf16.mxu0 0
      %582 = vmatpush1.bf16.msra.mxu0 %v524
      %583 = vmatprep.subr.bf16.mxu0 0
      %584 = vmatpush1.bf16.msra.mxu0 %v523
      %585 = vmatprep.subr.bf16.mxu0 0
      %586 = vmatpush1.bf16.msra.mxu0 %v522
      %587 = vmatprep.subr.bf16.mxu0 0
      %588 = vmatpush1.bf16.msra.mxu0 %v521
      %589 = vmatprep.subr.bf16.mxu0 0
      %590 = vmatpush1.bf16.msra.mxu0 %v520
      %591 = vmatprep.subr.bf16.mxu0 0
      %592 = vmatpush1.bf16.msra.mxu0 %v519
      %593 = vmatprep.subr.bf16.mxu0 0
      %594 = vmatpush1.bf16.msra.mxu0 %v518
      %595 = vmatprep.subr.bf16.mxu0 0
      %596 = vmatpush1.bf16.msra.mxu0 %v517
      %597 = vmatprep.subr.bf16.mxu0 0
      %598 = vmatpush2.bf16.msra.mxu0 %v532
      %599 = vmatprep.subr.bf16.mxu0 0
      %600 = vmatpush2.bf16.msra.mxu0 %v531
      %601 = vmatprep.subr.bf16.mxu0 0
      %602 = vmatpush2.bf16.msra.mxu0 %v530
      %603 = vmatprep.subr.bf16.mxu0 0
      %604 = vmatpush2.bf16.msra.mxu0 %v529
      %605 = vmatprep.subr.bf16.mxu0 0
      %606 = vmatpush2.bf16.msra.mxu0 %v528
      %607 = vmatprep.subr.bf16.mxu0 0
      %608 = vmatpush2.bf16.msra.mxu0 %v527
      %609 = vmatprep.subr.bf16.mxu0 0
      %610 = vmatpush2.bf16.msra.mxu0 %v526
      %611 = vmatprep.subr.bf16.mxu0 0
      %612 = vmatpush2.bf16.msra.mxu0 %v525
      %613 = vmatprep.mubr.bf16.mxu0 %v382
      %614 = vmatmul.mubr.bf16.gmra.mxu0 %v381
      %v615 = vpop.f32.mrf.mxu0
      %v616 = vadd.f32 0.0, %v615
      %v617 = vpop.f32.mrf.mxu0
      %v618 = vpop.f32.mrf.mxu0
      %v619 = vpop.f32.mrf.mxu0
      %620 = vdwg.mxu0
      %621 = vmatprep.subr.bf16.mxu0 0
      %622 = vmatpush1.bf16.msra.mxu0 %v540
      %623 = vmatprep.subr.bf16.mxu0 0
      %624 = vmatpush1.bf16.msra.mxu0 %v539
      %625 = vmatprep.subr.bf16.mxu0 0
      %626 = vmatpush1.bf16.msra.mxu0 %v538
      %627 = vmatprep.subr.bf16.mxu0 0
      %628 = vmatpush1.bf16.msra.mxu0 %v537
      %629 = vmatprep.subr.bf16.mxu0 0
      %630 = vmatpush1.bf16.msra.mxu0 %v536
      %631 = vmatprep.subr.bf16.mxu0 0
      %632 = vmatpush1.bf16.msra.mxu0 %v535
      %633 = vmatprep.subr.bf16.mxu0 0
      %634 = vmatpush1.bf16.msra.mxu0 %v534
      %635 = vmatprep.subr.bf16.mxu0 0
      %636 = vmatpush1.bf16.msra.mxu0 %v533
      %637 = vmatprep.subr.bf16.mxu0 0
      %638 = vmatpush2.bf16.msra.mxu0 %v548
      %639 = vmatprep.subr.bf16.mxu0 0
      %640 = vmatpush2.bf16.msra.mxu0 %v547
      %641 = vmatprep.subr.bf16.mxu0 0
      %642 = vmatpush2.bf16.msra.mxu0 %v546
      %643 = vmatprep.subr.bf16.mxu0 0
      %644 = vmatpush2.bf16.msra.mxu0 %v545
      %645 = vmatprep.subr.bf16.mxu0 0
      %646 = vmatpush2.bf16.msra.mxu0 %v544
      %647 = vmatprep.subr.bf16.mxu0 0
      %648 = vmatpush2.bf16.msra.mxu0 %v543
      %649 = vmatprep.subr.bf16.mxu0 0
      %650 = vmatpush2.bf16.msra.mxu0 %v542
      %651 = vmatprep.subr.bf16.mxu0 0
      %652 = vmatpush2.bf16.msra.mxu0 %v541
      %653 = vmatprep.mubr.bf16.mxu0 %v384
      %654 = vmatmul.mubr.bf16.gmra.mxu0 %v383
      %v655 = vpop.f32.mrf.mxu0
      %v656 = vadd.f32 %v616, %v655
      %v657 = vpop.f32.mrf.mxu0
      %v658 = vpop.f32.mrf.mxu0
      %v659 = vpop.f32.mrf.mxu0
      %660 = vdwg.mxu0
      %v661 = vadd.f32 %v308, %v656
      %662 = vst [vmem:[#allocation2] sm:$0xff] %v661
      // Predicated region
      $region37: #{vae_forward.17} parent=31 // pred_check
        %p663 = pneg %p303
      $region38: #{vae_forward.17} parent=31 // pred_check_branch
        %665 = sbr.rel (%p663) target = $region40
      $region39: #{vae_forward.17} parent=31 // pred_region
        %v666 = vld [vmem:[#allocation2] sm:$0xff]
        %v667 = vld [vmem:[%s291] sm:$0x1]
        %v669 = vlaneseq
        %v670 = vshrl.u32 %v669, 7
        %v671 = vsub.s32 0, %v670
        %v672 = vrot.slane %v667, %v671
        %v674 = vadd.f32 %v666, %v672
        %v675 = vmax.f32 %v674, 0.0
        %v676 = vpack.c.bf16 %v675, %v675
        %677 = vst [vmem:[%s301] sm:$0xf] %v676
      $region40: #{vae_forward.17} parent=31 // pred_fallthru
        _
      %p678 = scmp.lt.s32.totalorder %s20, 3
      %s679 = scalar_select %p678, %s20, 3
      %p680 = scmp.lt.s32.totalorder %s21, 0
      %s681 = scalar_select %p680, %s21, 0
      %p682 = scmp.lt.s32.totalorder %s22, 0
      %s683 = scalar_select %p682, %s22, 0
      %s684 = sadd.s32 %s683, %s681
      %s685 = sadd.s32 %s684, %s679
      %s686 = smul.addr %s685, 4
      %s687 = scalar_lea.vmem %s3, %s686
      // Predicated region
      $region41: #{vae_forward.17} parent=31 // pred_check
        %p688 = pneg %p148
      $region42: #{vae_forward.17} parent=31 // pred_check_branch
        %690 = sbr.rel (%p688) target = $region44
      $region43: #{vae_forward.17} parent=31 // pred_region
        _
      $region44: #{vae_forward.17} parent=31 // pred_fallthru
        _
    $region32: #{vae_forward.17} parent=5 // pred_fallthru
      _
    %p691 = scmp.le.s32.totalorder 2, %s9
    // Predicated region
    $region45: #{vae_forward.17} parent=5 // pred_check
      %p692 = pneg %p691
    $region46: #{vae_forward.17} parent=5 // pred_check_branch
      %694 = sbr.rel (%p692) target = $region48
    $region47: #{vae_forward.17} parent=5 // pred_region
      %s695 = ssub.s32 %s9, 2
      // Predicated region
      $region49: #{vae_forward.17} parent=47 // pred_check
        %p696 = pneg %p154
      $region50: #{vae_forward.17} parent=47 // pred_check_branch
        %698 = sbr.rel (%p696) target = $region52
      $region51: #{vae_forward.17} parent=47 // pred_region
        %p699 = scmp.lt.s32.totalorder %s24, 3
        %s700 = scalar_select %p699, %s24, 3
        %p701 = scmp.lt.s32.totalorder %s25, 0
        %s702 = scalar_select %p701, %s25, 0
        %p703 = scmp.lt.s32.totalorder %s26, 0
        %s704 = scalar_select %p703, %s26, 0
        %s705 = sadd.s32 %s704, %s702
        %s706 = sadd.s32 %s705, %s700
        %s707 = smul.addr %s706, 4
        %s708 = scalar_lea.vmem %s3, %s707
      $region52: #{vae_forward.17} parent=47 // pred_fallthru
        _
    $region48: #{vae_forward.17} parent=5 // pred_fallthru
      _
  $region6: #{vae_forward.17} parent=0 // loop_footer
    %s13 = sadd.s32 1, %s9
  $region7: #{vae_forward.17} parent=0 // loop_footer_branch
    %8 = sbr.rel target = $region3
  $region8: #{vae_forward.17} parent=0 // loop_exit
    _

// kernel: vae_forward.18
$region0: #{vae_forward.18}
  #allocation0 [shape = 'u32[]', space=smem, size = 0x4, offset = 0x4, fixed_abs, tag = 'smem constant byte address 0x4 - core index']
  #allocation1 [shape = 'u32[144,128]{1,0:T(1,128)}', space=vmem, size = 0x12000, scoped, tag = 'internal scratch']
  #allocation2 [shape = 'f32[32,128]{1,0:T(8,128)}', space=vmem, size = 0x4000, scoped, tag = 'scratch operand']
  %s0 = inlined_call_operand.vmem [shape: bf16[4,32,256], index: 0, kind: input, shape index: {}]
  %s1 = inlined_call_operand.vmem [shape: bf16[4,256,128], index: 1, kind: input, shape index: {}]
  %s2 = inlined_call_operand.vmem [shape: f32[1,128], index: 2, kind: input, shape index: {}]
  %s3 = inlined_call_operand.vmem [shape: bf16[4,32,128], index: 3, kind: output, shape index: {}]
  %s4 = sld [smem:[#allocation0]]
  $region53: #{vae_forward.18} parent=0
    _
  %s6 = ssub.s32 1, %s4
  %s7 = scalar_select 0, %s6, %s4
  loop: start=0, step=1, limit=6
  $region2: #{vae_forward.18} parent=0 // loop_pre_header
    _
  $region3: #{vae_forward.18} parent=0 // loop_header
    %s9 = sphi 0, %s13
    %p10 = scmp.ge.s32.totalorder %s9, 6
    %s16 = sphi 0, %s42
    %s17 = sphi 0, %s38
    %s18 = sphi 0, %s34
    %s19 = sphi 0, %s30
    %s20 = sphi 0, %s16
    %s21 = sphi 0, %s17
    %s22 = sphi 0, %s18
    %s23 = sphi 0, %s19
    %s24 = sphi 0, %s20
    %s25 = sphi 0, %s21
    %s26 = sphi 0, %s22
    %s27 = sphi 0, %s23
    %s49 = sphi 0, %s51
    %s52 = sphi 0, %s49
    %s53 = sphi 0, %s52
    %s69 = sphi 0, %s53
    %s79 = sphi 0, %s81
    %s82 = sphi 0, %s79
    %s83 = sphi 0, %s82
    %s99 = sphi 0, %s83
    %s105 = sphi 0, %s107
    %s108 = sphi 0, %s105
    %s109 = sphi 0, %s108
    %s125 = sphi 0, %s109
    %s135 = sphi 0, %s137
    %s138 = sphi 0, %s135
    %s139 = sphi 0, %s138
    %s155 = sphi 0, %s139
  $region4: #{vae_forward.18} parent=0 // loop_header_branch
    %12 = sbr.rel (%p10) target = $region8
  $region5: #{vae_forward.18} parent=0 // loop_body
    %s14 = ssub.s32 %s9, 1
    %s15 = ssub.s32 %s9, 2
    %s28 = sadd.s32 1, %s19
    %p29 = scmp.ge.s32.totalorder %s28, 1
    %s30 = scalar_select %p29, 0, %s28
    %s31 = sadd.s32 1, %s18
    %s32 = scalar_select %p29, %s31, %s18
    %p33 = scmp.ge.s32.totalorder %s32, 1
    %s34 = scalar_select %p33, 0, %s32
    %s35 = sadd.s32 1, %s17
    %s36 = scalar_select %p33, %s35, %s17
    %p37 = scmp.ge.s32.totalorder %s36, 1
    %s38 = scalar_select %p37, 0, %s36
    %s39 = sadd.s32 1, %s16
    %s40 = scalar_select %p37, %s39, %s16
    %p41 = scmp.ge.s32.totalorder %s40, 4
    %s42 = scalar_select %p41, 0, %s40
    %s43 = ssub.s32 %s16, %s42
    %s44 = ssub.s32 %s17, %s38
    %s45 = sor.u32 %s43, %s44
    %s46 = ssub.s32 %s19, %s30
    %s47 = sor.u32 %s45, %s46
    %p48 = scmp.eq.s32.totalorder %s47, 0
    %s50 = sadd.s32 %s49, 1
    %s51 = scalar_select %p48, %s49, %s50
    %p54 = pneg %p48
    %p55 = scmp.eq.s32.totalorder %s9, 3
    %p56 = por %p54, %p55
    %p57 = scmp.ne.s32.totalorder %s49, %s52
    %p58 = scmp.eq.s32.totalorder %s9, 0
    %p59 = por %p57, %p58
    %p60 = scmp.ne.s32.totalorder %s49, %s52
    %p61 = scmp.eq.s32.totalorder %s14, 3
    %p62 = por %p60, %p61
    %p63 = scmp.ne.s32.totalorder %s52, %s53
    %p64 = scmp.eq.s32.totalorder %s14, 0
    %p65 = por %p63, %p64
    %p66 = scmp.ne.s32.totalorder %s52, %s53
    %p67 = scmp.eq.s32.totalorder %s15, 3
    %p68 = por %p66, %p67
    %p70 = scmp.ne.s32.totalorder %s53, %s69
    %p71 = scmp.eq.s32.totalorder %s15, 0
    %p72 = por %p70, %p71
    %s73 = ssub.s32 %s16, %s42
    %s74 = ssub.s32 %s19, %s30
    %s75 = sor.u32 %s73, %s74
    %s76 = ssub.s32 %s18, %s34
    %s77 = sor.u32 %s75, %s76
    %p78 = scmp.eq.s32.totalorder %s77, 0
    %s80 = sadd.s32 %s79, 1
    %s81 = scalar_select %p78, %s79, %s80
    %p84 = pneg %p78
    %p85 = scmp.eq.s32.totalorder %s9, 3
    %p86 = por %p84, %p85
    %p87 = scmp.ne.s32.totalorder %s79, %s82
    %p88 = scmp.eq.s32.totalorder %s9, 0
    %p89 = por %p87, %p88
    %p90 = scmp.ne.s32.totalorder %s79, %s82
    %p91 = scmp.eq.s32.totalorder %s14, 3
    %p92 = por %p90, %p91
    %p93 = scmp.ne.s32.totalorder %s82, %s83
    %p94 = scmp.eq.s32.totalorder %s14, 0
    %p95 = por %p93, %p94
    %p96 = scmp.ne.s32.totalorder %s82, %s83
    %p97 = scmp.eq.s32.totalorder %s15, 3
    %p98 = por %p96, %p97
    %p100 = scmp.ne.s32.totalorder %s83, %s99
    %p101 = scmp.eq.s32.totalorder %s15, 0
    %p102 = por %p100, %p101
    %s103 = ssub.s32 %s18, %s34
    %p104 = scmp.eq.s32.totalorder %s103, 0
    %s106 = sadd.s32 %s105, 1
    %s107 = scalar_select %p104, %s105, %s106
    %p110 = pneg %p104
    %p111 = scmp.eq.s32.totalorder %s9, 3
    %p112 = por %p110, %p111
    %p113 = scmp.ne.s32.totalorder %s105, %s108
    %p114 = scmp.eq.s32.totalorder %s9, 0
    %p115 = por %p113, %p114
    %p116 = scmp.ne.s32.totalorder %s105, %s108
    %p117 = scmp.eq.s32.totalorder %s14, 3
    %p118 = por %p116, %p117
    %p119 = scmp.ne.s32.totalorder %s108, %s109
    %p120 = scmp.eq.s32.totalorder %s14, 0
    %p121 = por %p119, %p120
    %p122 = scmp.ne.s32.totalorder %s108, %s109
    %p123 = scmp.eq.s32.totalorder %s15, 3
    %p124 = por %p122, %p123
    %p126 = scmp.ne.s32.totalorder %s109, %s125
    %p127 = scmp.eq.s32.totalorder %s15, 0
    %p128 = por %p126, %p127
    %s129 = ssub.s32 %s16, %s42
    %s130 = ssub.s32 %s17, %s38
    %s131 = sor.u32 %s129, %s130
    %s132 = ssub.s32 %s18, %s34
    %s133 = sor.u32 %s131, %s132
    %p134 = scmp.eq.s32.totalorder %s133, 0
    %s136 = sadd.s32 %s135, 1
    %s137 = scalar_select %p134, %s135, %s136
    %p140 = pneg %p134
    %p141 = scmp.eq.s32.totalorder %s9, 3
    %p142 = por %p140, %p141
    %p143 = scmp.ne.s32.totalorder %s135, %s138
    %p144 = scmp.eq.s32.totalorder %s9, 0
    %p145 = por %p143, %p144
    %p146 = scmp.ne.s32.totalorder %s135, %s138
    %p147 = scmp.eq.s32.totalorder %s14, 3
    %p148 = por %p146, %p147
    %p149 = scmp.ne.s32.totalorder %s138, %s139
    %p150 = scmp.eq.s32.totalorder %s14, 0
    %p151 = por %p149, %p150
    %p152 = scmp.ne.s32.totalorder %s138, %s139
    %p153 = scmp.eq.s32.totalorder %s15, 3
    %p154 = por %p152, %p153
    %p156 = scmp.ne.s32.totalorder %s139, %s155
    %p157 = scmp.eq.s32.totalorder %s15, 0
    %p158 = por %p156, %p157
    %p159 = scmp.le.s32.totalorder 1, %s9
    %p160 = scmp.lt.s32.totalorder %s9, 5
    %p161 = pnand %p159, %p160
    %p162 = pneg %p161
    // Predicated region
    $region9: #{vae_forward.18} parent=5 // pred_check
      _
    $region10: #{vae_forward.18} parent=5 // pred_check_branch
      %164 = sbr.rel (%p161) target = $region12
    $region11: #{vae_forward.18} parent=5 // pred_region
      %s165 = ssub.s32 %s9, 1
      // Predicated region
      $region13: #{vae_forward.18} parent=11 // pred_check
        %p166 = pneg %p121
      $region14: #{vae_forward.18} parent=11 // pred_check_branch
        %168 = sbr.rel (%p166) target = $region16
      $region15: #{vae_forward.18} parent=11 // pred_region
        %p169 = scmp.lt.s32.totalorder %s22, 0
        %s170 = scalar_select %p169, %s22, 0
        %s171 = scalar_lea.vmem %s2, %s170
      $region16: #{vae_forward.18} parent=11 // pred_fallthru
        _
    $region12: #{vae_forward.18} parent=5 // pred_fallthru
      _
    %p172 = scmp.lt.s32.totalorder %s9, 4
    // Predicated region
    $region17: #{vae_forward.18} parent=5 // pred_check
      %p173 = pneg %p172
    $region18: #{vae_forward.18} parent=5 // pred_check_branch
      %175 = sbr.rel (%p173) target = $region20
    $region19: #{vae_forward.18} parent=5 // pred_region
      // Predicated region
      $region21: #{vae_forward.18} parent=19 // pred_check
        %p176 = pneg %p59
      $region22: #{vae_forward.18} parent=19 // pred_check_branch
        %178 = sbr.rel (%p176) target = $region24
      $region23: #{vae_forward.18} parent=19 // pred_region
        %s179 = smul.u32 4, %s17
        %s180 = smul.u32 2, %s19
        %p181 = scmp.lt.s32.totalorder %s16, 3
        %s182 = scalar_select %p181, %s16, 3
        %p183 = scmp.lt.s32.totalorder %s179, 3
        %s184 = scalar_select %p183, %s179, 3
        %p185 = scmp.lt.s32.totalorder %s180, 1
        %s186 = scalar_select %p185, %s180, 1
        %s187 = smul.addr %s184, 2
        %s188 = sadd.s32 %s186, %s187
        %s189 = smul.addr %s182, 8
        %s190 = sadd.s32 %s188, %s189
        %s191 = smul.addr %s190, 4
        %s192 = scalar_lea.vmem %s0, %s191
        %s193 = smul.u32 4, %s17
        %s194 = smul.u32 2, %s19
      $region24: #{vae_forward.18} parent=19 // pred_fallthru
        _
      // Predicated region
      $region25: #{vae_forward.18} parent=19 // pred_check
        %p195 = pneg %p89
      $region26: #{vae_forward.18} parent=19 // pred_check_branch
        %197 = sbr.rel (%p195) target = $region28
      $region27: #{vae_forward.18} parent=19 // pred_region
        %s198 = smul.u32 32, %s19
        %p199 = scmp.lt.s32.totalorder %s16, 3
        %s200 = scalar_select %p199, %s16, 3
        %p201 = scmp.lt.s32.totalorder %s198, 31
        %s202 = scalar_select %p201, %s198, 31
        %p203 = scmp.lt.s32.totalorder %s18, 0
        %s204 = scalar_select %p203, %s18, 0
        %s205 = sadd.s32 %s204, %s202
        %s206 = smul.addr %s200, 32
        %s207 = sadd.s32 %s205, %s206
        %s208 = smul.addr %s207, 4
        %s209 = scalar_lea.vmem %s1, %s208
        %s210 = smul.u32 32, %s19
      $region28: #{vae_forward.18} parent=19 // pred_fallthru
        _
    $region20: #{vae_forward.18} parent=5 // pred_fallthru
      _
    %p211 = scmp.le.s32.totalorder 1, %s9
    %p212 = scmp.lt.s32.totalorder %s9, 5
    %p213 = pnand %p211, %p212
    %p214 = pneg %p213
    // Predicated region
    $region29: #{vae_forward.18} parent=5 // pred_check
      _
    $region30: #{vae_forward.18} parent=5 // pred_check_branch
      %216 = sbr.rel (%p213) target = $region32
    $region31: #{vae_forward.18} parent=5 // pred_region
      %s217 = ssub.s32 %s9, 1
      %s218 = smul.u32 4, %s21
      %s219 = smul.u32 2, %s23
      %p220 = scmp.lt.s32.totalorder %s20, 3
      %s221 = scalar_select %p220, %s20, 3
      %p222 = scmp.lt.s32.totalorder %s218, 3
      %s223 = scalar_select %p222, %s218, 3
      %p224 = scmp.lt.s32.totalorder %s219, 1
      %s225 = scalar_select %p224, %s219, 1
      %s226 = smul.addr %s223, 2
      %s227 = sadd.s32 %s225, %s226
      %s228 = smul.addr %s221, 8
      %s229 = sadd.s32 %s227, %s228
      %s230 = smul.addr %s229, 4
      %s231 = scalar_lea.vmem %s0, %s230
      %p232 = pneg %p65
      %p233 = pneg %p62
      %s234 = smul.u32 32, %s23
      %p235 = scmp.lt.s32.totalorder %s20, 3
      %s236 = scalar_select %p235, %s20, 3
      %p237 = scmp.lt.s32.totalorder %s234, 31
      %s238 = scalar_select %p237, %s234, 31
      %p239 = scmp.lt.s32.totalorder %s22, 0
      %s240 = scalar_select %p239, %s22, 0
      %s241 = sadd.s32 %s240, %s238
      %s242 = smul.addr %s236, 32
      %s243 = sadd.s32 %s241, %s242
      %s244 = smul.addr %s243, 4
      %s245 = scalar_lea.vmem %s1, %s244
      %p246 = pneg %p95
      %p247 = pneg %p92
      %p248 = scmp.lt.s32.totalorder %s22, 0
      %s249 = scalar_select %p248, %s22, 0
      %s250 = scalar_lea.vmem %s2, %s249
      %p251 = pneg %p121
      %p252 = pneg %p118
      %p253 = pneg %p151
      %p254 = pneg %p148
      %s255 = smul.u32 4, %s21
      %p256 = scmp.lt.s32.totalorder %s20, 3
      %s257 = scalar_select %p256, %s20, 3
      %p258 = scmp.lt.s32.totalorder %s255, 3
      %s259 = scalar_select %p258, %s255, 3
      %p260 = scmp.lt.s32.totalorder %s22, 0
      %s261 = scalar_select %p260, %s22, 0
      %s262 = sadd.s32 %s261, %s259
      %s263 = smul.addr %s257, 4
      %s264 = sadd.s32 %s262, %s263
      %s265 = smul.addr %s264, 4
      %s266 = scalar_lea.vmem %s3, %s265
      %s267 = smul.u32 4, %s21
      %s268 = smul.u32 2, %s23
      %p269 = scmp.lt.s32.totalorder %s20, 3
      %s270 = scalar_select %p269, %s20, 3
      %p271 = scmp.lt.s32.totalorder %s267, 3
      %s272 = scalar_select %p271, %s267, 3
      %p273 = scmp.lt.s32.totalorder %s268, 1
      %s274 = scalar_select %p273, %s268, 1
      %s275 = smul.addr %s272, 2
      %s276 = sadd.s32 %s274, %s275
      %s277 = smul.addr %s270, 8
      %s278 = sadd.s32 %s276, %s277
      %s279 = smul.addr %s278, 4
      %s280 = scalar_lea.vmem %s0, %s279
      %s281 = smul.u32 4, %s21
      %s282 = smul.u32 2, %s23
      %s283 = smul.u32 32, %s23
      %p284 = scmp.lt.s32.totalorder %s20, 3
      %s285 = scalar_select %p284, %s20, 3
      %p286 = scmp.lt.s32.totalorder %s283, 31
      %s287 = scalar_select %p286, %s283, 31
      %p288 = scmp.lt.s32.totalorder %s22, 0
      %s289 = scalar_select %p288, %s22, 0
      %s290 = sadd.s32 %s289, %s287
      %s291 = smul.addr %s285, 32
      %s292 = sadd.s32 %s290, %s291
      %s293 = smul.addr %s292, 4
      %s294 = scalar_lea.vmem %s1, %s293
      %s295 = smul.u32 32, %s23
      %p296 = scmp.lt.s32.totalorder %s22, 0
      %s297 = scalar_select %p296, %s22, 0
      %s298 = scalar_lea.vmem %s2, %s297
      %s299 = smul.u32 4, %s21
      %p300 = scmp.lt.s32.totalorder %s20, 3
      %s301 = scalar_select %p300, %s20, 3
      %p302 = scmp.lt.s32.totalorder %s299, 3
      %s303 = scalar_select %p302, %s299, 3
      %p304 = scmp.lt.s32.totalorder %s22, 0
      %s305 = scalar_select %p304, %s22, 0
      %s306 = sadd.s32 %s305, %s303
      %s307 = smul.addr %s301, 4
      %s308 = sadd.s32 %s306, %s307
      %s309 = smul.addr %s308, 4
      %s310 = scalar_lea.vmem %s3, %s309
      %s311 = smul.u32 4, %s21
      %p313 = scmp.eq.s32.totalorder %s23, 0
      // Predicated region
      $region33: #{vae_forward.18} parent=31 // pred_check
        %p314 = pneg %p313
      $region34: #{vae_forward.18} parent=31 // pred_check_branch
        %316 = sbr.rel (%p314) target = $region36
      $region35: #{vae_forward.18} parent=31 // pred_region
        %317 = vst [vmem:[#allocation2] sm:$0xff] 0.0
        %318 = vst [vmem:[#allocation2 + $0x8] sm:$0xff] 0.0
        %319 = vst [vmem:[#allocation2 + $0x10] sm:$0xff] 0.0
        %320 = vst [vmem:[#allocation2 + $0x18] sm:$0xff] 0.0
      $region36: #{vae_forward.18} parent=31 // pred_fallthru
        _
      %v321 = vld [vmem:[#allocation2] sm:$0xff]
      %v322 = vld [vmem:[#allocation2 + $0x8] sm:$0xff]
      %v323 = vld [vmem:[#allocation2 + $0x10] sm:$0xff]
      %v324 = vld [vmem:[#allocation2 + $0x18] sm:$0xff]
      %v325 = vld [vmem:[%s280] sm:$0xff]
      %v326 = vld [vmem:[%s280 + $0x8] sm:$0xff]
      %v327 = vld [vmem:[%s280 + $0x10] sm:$0xff]
      %v328 = vld [vmem:[%s280 + $0x18] sm:$0xff]
      %v329 = vld [vmem:[%s294] sm:$0xf]
      %v330 = vld [vmem:[%s294 + $0x4] sm:$0xf]
      %v331 = vld [vmem:[%s294 + $0x8] sm:$0xf]
      %v332 = vld [vmem:[%s294 + $0xc] sm:$0xf]
      %v333 = vld [vmem:[%s294 + $0x10] sm:$0xf]
      %v334 = vld [vmem:[%s294 + $0x14] sm:$0xf]
      %v335 = vld [vmem:[%s294 + $0x18] sm:$0xf]
      %v336 = vld [vmem:[%s294 + $0x1c] sm:$0xf]
      %v337 = vld [vmem:[%s294 + $0x20] sm:$0xf]
      %v338 = vld [vmem:[%s294 + $0x24] sm:$0xf]
      %v339 = vld [vmem:[%s294 + $0x28] sm:$0xf]
      %v340 = vld [vmem:[%s294 + $0x2c] sm:$0xf]
      %v341 = vld [vmem:[%s294 + $0x30] sm:$0xf]
      %v342 = vld [vmem:[%s294 + $0x34] sm:$0xf]
      %v343 = vld [vmem:[%s294 + $0x38] sm:$0xf]
      %v344 = vld [vmem:[%s294 + $0x3c] sm:$0xf]
      %v345 = vld [vmem:[%s294 + $0x40] sm:$0xf]
      %v346 = vld [vmem:[%s294 + $0x44] sm:$0xf]
      %v347 = vld [vmem:[%s294 + $0x48] sm:$0xf]
      %v348 = vld [vmem:[%s294 + $0x4c] sm:$0xf]
      %v349 = vld [vmem:[%s294 + $0x50] sm:$0xf]
      %v350 = vld [vmem:[%s294 + $0x54] sm:$0xf]
      %v351 = vld [vmem:[%s294 + $0x58] sm:$0xf]
      %v352 = vld [vmem:[%s294 + $0x5c] sm:$0xf]
      %v353 = vld [vmem:[%s294 + $0x60] sm:$0xf]
      %v354 = vld [vmem:[%s294 + $0x64] sm:$0xf]
      %v355 = vld [vmem:[%s294 + $0x68] sm:$0xf]
      %v356 = vld [vmem:[%s294 + $0x6c] sm:$0xf]
      %v357 = vld [vmem:[%s294 + $0x70] sm:$0xf]
      %v358 = vld [vmem:[%s294 + $0x74] sm:$0xf]
      %v359 = vld [vmem:[%s294 + $0x78] sm:$0xf]
      %v360 = vld [vmem:[%s294 + $0x7c] sm:$0xf]
      %v365 = vunpack.c.l.b16 %v325
      %v366 = vunpack.c.h.b16 %v325
      %v367 = vunpack.c.l.b16 %v326
      %v368 = vunpack.c.h.b16 %v326
      %v369 = vunpack.c.l.b16 %v327
      %v370 = vunpack.c.h.b16 %v327
      %v371 = vunpack.c.l.b16 %v328
      %v372 = vunpack.c.h.b16 %v328
      %v373 = vpack.c.b16 %v367, %v365
      %v374 = vpack.c.b16 %v368, %v366
      %v375 = vpack.c.b16 %v371, %v369
      %v376 = vpack.c.b16 %v372, %v370
      %v413 = vunpack.c.l.b16 %v329
      %v414 = vunpack.c.l.b16 %v330
      %v415 = vunpack.c.l.b16 %v331
      %v416 = vunpack.c.l.b16 %v332
      %v417 = vunpack.c.l.b16 %v333
      %v418 = vunpack.c.l.b16 %v334
      %v419 = vunpack.c.l.b16 %v335
      %v420 = vunpack.c.l.b16 %v336
      %v421 = vunpack.c.l.b16 %v337
      %v422 = vunpack.c.l.b16 %v338
      %v423 = vunpack.c.l.b16 %v339
      %v424 = vunpack.c.l.b16 %v340
      %v425 = vunpack.c.l.b16 %v341
      %v426 = vunpack.c.l.b16 %v342
      %v427 = vunpack.c.l.b16 %v343
      %v428 = vunpack.c.l.b16 %v344
      %v429 = vunpack.c.l.b16 %v345
      %v430 = vunpack.c.l.b16 %v346
      %v431 = vunpack.c.l.b16 %v347
      %v432 = vunpack.c.l.b16 %v348
      %v433 = vunpack.c.l.b16 %v349
      %v434 = vunpack.c.l.b16 %v350
      %v435 = vunpack.c.l.b16 %v351
      %v436 = vunpack.c.l.b16 %v352
      %v437 = vunpack.c.l.b16 %v353
      %v438 = vunpack.c.l.b16 %v354
      %v439 = vunpack.c.l.b16 %v355
      %v440 = vunpack.c.l.b16 %v356
      %v441 = vunpack.c.l.b16 %v357
      %v442 = vunpack.c.l.b16 %v358
      %v443 = vunpack.c.l.b16 %v359
      %v444 = vunpack.c.l.b16 %v360
      %v445 = vpack.c.b16 %v414, %v413
      %v446 = vpack.c.b16 %v416, %v415
      %v447 = vpack.c.b16 %v418, %v417
      %v448 = vpack.c.b16 %v420, %v419
      %v449 = vpack.c.b16 %v422, %v421
      %v450 = vpack.c.b16 %v424, %v423
      %v451 = vpack.c.b16 %v426, %v425
      %v452 = vpack.c.b16 %v428, %v427
      %v453 = vpack.c.b16 %v430, %v429
      %v454 = vpack.c.b16 %v432, %v431
      %v455 = vpack.c.b16 %v434, %v433
      %v456 = vpack.c.b16 %v436, %v435
      %v457 = vpack.c.b16 %v438, %v437
      %v458 = vpack.c.b16 %v440, %v439
      %v459 = vpack.c.b16 %v442, %v441
      %v460 = vpack.c.b16 %v444, %v443
      %477 = vmatprep.subr.bf16.mxu0 0
      %478 = vmatpush1.bf16.msra.mxu0 %v452
      %479 = vmatprep.subr.bf16.mxu0 0
      %480 = vmatpush1.bf16.msra.mxu0 %v451
      %481 = vmatprep.subr.bf16.mxu0 0
      %482 = vmatpush1.bf16.msra.mxu0 %v450
      %483 = vmatprep.subr.bf16.mxu0 0
      %484 = vmatpush1.bf16.msra.mxu0 %v449
      %485 = vmatprep.subr.bf16.mxu0 0
      %486 = vmatpush1.bf16.msra.mxu0 %v448
      %487 = vmatprep.subr.bf16.mxu0 0
      %488 = vmatpush1.bf16.msra.mxu0 %v447
      %489 = vmatprep.subr.bf16.mxu0 0
      %490 = vmatpush1.bf16.msra.mxu0 %v446
      %491 = vmatprep.subr.bf16.mxu0 0
      %492 = vmatpush1.bf16.msra.mxu0 %v445
      %493 = vmatprep.subr.bf16.mxu0 0
      %494 = vmatpush2.bf16.msra.mxu0 %v460
      %495 = vmatprep.subr.bf16.mxu0 0
      %496 = vmatpush2.bf16.msra.mxu0 %v459
      %497 = vmatprep.subr.bf16.mxu0 0
      %498 = vmatpush2.bf16.msra.mxu0 %v458
      %499 = vmatprep.subr.bf16.mxu0 0
      %500 = vmatpush2.bf16.msra.mxu0 %v457
      %501 = vmatprep.subr.bf16.mxu0 0
      %502 = vmatpush2.bf16.msra.mxu0 %v456
      %503 = vmatprep.subr.bf16.mxu0 0
      %504 = vmatpush2.bf16.msra.mxu0 %v455
      %505 = vmatprep.subr.bf16.mxu0 0
      %506 = vmatpush2.bf16.msra.mxu0 %v454
      %507 = vmatprep.subr.bf16.mxu0 0
      %508 = vmatpush2.bf16.msra.mxu0 %v453
      %509 = vmatprep.mubr.bf16.mxu0 %v374
      %510 = vmatmul.mubr.bf16.gmra.mxu0 %v373
      %v511 = vpop.f32.mrf.mxu0
      %v512 = vadd.f32 0.0, %v511
      %v513 = vpop.f32.mrf.mxu0
      %v514 = vpop.f32.mrf.mxu0
      %v515 = vadd.f32 0.0, %v514
      %v516 = vpop.f32.mrf.mxu0
      %517 = vmatprep.mubr.bf16.mxu0 %v376
      %518 = vmatmul.mubr.bf16.gmra.mxu0 %v375
      %v519 = vpop.f32.mrf.mxu0
      %v520 = vadd.f32 0.0, %v519
      %v521 = vpop.f32.mrf.mxu0
      %v522 = vpop.f32.mrf.mxu0
      %v523 = vadd.f32 0.0, %v522
      %v524 = vpop.f32.mrf.mxu0
      %525 = vdwg.mxu0
      %v526 = vadd.f32 %v321, %v512
      %v527 = vadd.f32 %v322, %v515
      %v528 = vadd.f32 %v323, %v520
      %v529 = vadd.f32 %v324, %v523
      %530 = vst [vmem:[#allocation2] sm:$0xff] %v526
      %531 = vst [vmem:[#allocation2 + $0x8] sm:$0xff] %v527
      %532 = vst [vmem:[#allocation2 + $0x10] sm:$0xff] %v528
      %533 = vst [vmem:[#allocation2 + $0x18] sm:$0xff] %v529
      // Predicated region
      $region37: #{vae_forward.18} parent=31 // pred_check
        %p534 = pneg %p313
      $region38: #{vae_forward.18} parent=31 // pred_check_branch
        %536 = sbr.rel (%p534) target = $region40
      $region39: #{vae_forward.18} parent=31 // pred_region
        %v537 = vld [vmem:[#allocation2] sm:$0xff]
        %v538 = vld [vmem:[#allocation2 + $0x8] sm:$0xff]
        %v539 = vld [vmem:[#allocation2 + $0x10] sm:$0xff]
        %v540 = vld [vmem:[#allocation2 + $0x18] sm:$0xff]
        %v541 = vld [vmem:[%s298] sm:$0x1]
        %v543 = vlaneseq
        %v544 = vshrl.u32 %v543, 7
        %v545 = vsub.s32 0, %v544
        %v546 = vrot.slane %v541, %v545
        %v548 = vadd.f32 %v537, %v546
        %v549 = vadd.f32 %v538, %v546
        %v550 = vadd.f32 %v539, %v546
        %v551 = vadd.f32 %v540, %v546
        %v552 = vmax.f32 %v548, 0.0
        %v553 = vmax.f32 %v549, 0.0
        %v554 = vmax.f32 %v550, 0.0
        %v555 = vmax.f32 %v551, 0.0
        %v556 = vpack.c.bf16 %v553, %v552
        %v557 = vpack.c.bf16 %v555, %v554
        %v560 = vunpack.c.l.b16 %v556
        %v561 = vunpack.c.h.b16 %v556
        %v562 = vunpack.c.l.b16 %v557
        %v563 = vunpack.c.h.b16 %v557
        %v564 = vpack.c.b16 %v560, %v560
        %v565 = vpack.c.b16 %v561, %v561
        %v566 = vpack.c.b16 %v562, %v562
        %v567 = vpack.c.b16 %v563, %v563
        %572 = vst [vmem:[%s310] sm:$0xf] %v564
        %573 = vst [vmem:[%s310 + $0x4] sm:$0xf] %v565
        %574 = vst [vmem:[%s310 + $0x8] sm:$0xf] %v566
        %575 = vst [vmem:[%s310 + $0xc] sm:$0xf] %v567
      $region40: #{vae_forward.18} parent=31 // pred_fallthru
        _
      %s576 = smul.u32 4, %s21
      %p577 = scmp.lt.s32.totalorder %s20, 3
      %s578 = scalar_select %p577, %s20, 3
      %p579 = scmp.lt.s32.totalorder %s576, 3
      %s580 = scalar_select %p579, %s576, 3
      %p581 = scmp.lt.s32.totalorder %s22, 0
      %s582 = scalar_select %p581, %s22, 0
      %s583 = sadd.s32 %s582, %s580
      %s584 = smul.addr %s578, 4
      %s585 = sadd.s32 %s583, %s584
      %s586 = smul.addr %s585, 4
      %s587 = scalar_lea.vmem %s3, %s586
      // Predicated region
      $region41: #{vae_forward.18} parent=31 // pred_check
        %p588 = pneg %p148
      $region42: #{vae_forward.18} parent=31 // pred_check_branch
        %590 = sbr.rel (%p588) target = $region44
      $region43: #{vae_forward.18} parent=31 // pred_region
        %s591 = smul.u32 4, %s21
      $region44: #{vae_forward.18} parent=31 // pred_fallthru
        _
    $region32: #{vae_forward.18} parent=5 // pred_fallthru
      _
    %p592 = scmp.le.s32.totalorder 2, %s9
    // Predicated region
    $region45: #{vae_forward.18} parent=5 // pred_check
      %p593 = pneg %p592
    $region46: #{vae_forward.18} parent=5 // pred_check_branch
      %595 = sbr.rel (%p593) target = $region48
    $region47: #{vae_forward.18} parent=5 // pred_region
      %s596 = ssub.s32 %s9, 2
      // Predicated region
      $region49: #{vae_forward.18} parent=47 // pred_check
        %p597 = pneg %p154
      $region50: #{vae_forward.18} parent=47 // pred_check_branch
        %599 = sbr.rel (%p597) target = $region52
      $region51: #{vae_forward.18} parent=47 // pred_region
        %s600 = smul.u32 4, %s25
        %p601 = scmp.lt.s32.totalorder %s24, 3
        %s602 = scalar_select %p601, %s24, 3
        %p603 = scmp.lt.s32.totalorder %s600, 3
        %s604 = scalar_select %p603, %s600, 3
        %p605 = scmp.lt.s32.totalorder %s26, 0
        %s606 = scalar_select %p605, %s26, 0
        %s607 = sadd.s32 %s606, %s604
        %s608 = smul.addr %s602, 4
        %s609 = sadd.s32 %s607, %s608
        %s610 = smul.addr %s609, 4
        %s611 = scalar_lea.vmem %s3, %s610
      $region52: #{vae_forward.18} parent=47 // pred_fallthru
        _
    $region48: #{vae_forward.18} parent=5 // pred_fallthru
      _
  $region6: #{vae_forward.18} parent=0 // loop_footer
    %s13 = sadd.s32 1, %s9
  $region7: #{vae_forward.18} parent=0 // loop_footer_branch
    %8 = sbr.rel target = $region3
  $region8: #{vae_forward.18} parent=0 // loop_exit
    _

// kernel: vae_forward.19
$region0: #{vae_forward.19}
  #allocation0 [shape = 'u32[]', space=smem, size = 0x4, offset = 0x4, fixed_abs, tag = 'smem constant byte address 0x4 - core index']
  #allocation1 [shape = 'u32[144,128]{1,0:T(1,128)}', space=vmem, size = 0x12000, scoped, tag = 'internal scratch']
  #allocation2 [shape = 'f32[128,128]{1,0:T(8,128)}', space=vmem, size = 0x10000, scoped, tag = 'scratch operand']
  %s0 = inlined_call_operand.vmem [shape: bf16[4,128,128], index: 0, kind: input, shape index: {}]
  %s1 = inlined_call_operand.vmem [shape: bf16[4,128,128], index: 1, kind: input, shape index: {}]
  %s2 = inlined_call_operand.vmem [shape: f32[1,128], index: 2, kind: input, shape index: {}]
  %s3 = inlined_call_operand.vmem [shape: f32[4,128,128], index: 3, kind: output, shape index: {}]
  %s4 = sld [smem:[#allocation0]]
  $region53: #{vae_forward.19} parent=0
    _
  %s6 = ssub.s32 1, %s4
  %s7 = scalar_select 0, %s6, %s4
  loop: start=0, step=1, limit=6
  $region2: #{vae_forward.19} parent=0 // loop_pre_header
    _
  $region3: #{vae_forward.19} parent=0 // loop_header
    %s9 = sphi 0, %s13
    %p10 = scmp.ge.s32.totalorder %s9, 6
    %s16 = sphi 0, %s42
    %s17 = sphi 0, %s38
    %s18 = sphi 0, %s34
    %s19 = sphi 0, %s30
    %s20 = sphi 0, %s16
    %s21 = sphi 0, %s17
    %s22 = sphi 0, %s18
    %s23 = sphi 0, %s19
    %s24 = sphi 0, %s20
    %s25 = sphi 0, %s21
    %s26 = sphi 0, %s22
    %s27 = sphi 0, %s23
    %s49 = sphi 0, %s51
    %s52 = sphi 0, %s49
    %s53 = sphi 0, %s52
    %s69 = sphi 0, %s53
    %s79 = sphi 0, %s81
    %s82 = sphi 0, %s79
    %s83 = sphi 0, %s82
    %s99 = sphi 0, %s83
    %s105 = sphi 0, %s107
    %s108 = sphi 0, %s105
    %s109 = sphi 0, %s108
    %s125 = sphi 0, %s109
    %s135 = sphi 0, %s137
    %s138 = sphi 0, %s135
    %s139 = sphi 0, %s138
    %s155 = sphi 0, %s139
  $region4: #{vae_forward.19} parent=0 // loop_header_branch
    %12 = sbr.rel (%p10) target = $region8
  $region5: #{vae_forward.19} parent=0 // loop_body
    %s14 = ssub.s32 %s9, 1
    %s15 = ssub.s32 %s9, 2
    %s28 = sadd.s32 1, %s19
    %p29 = scmp.ge.s32.totalorder %s28, 1
    %s30 = scalar_select %p29, 0, %s28
    %s31 = sadd.s32 1, %s18
    %s32 = scalar_select %p29, %s31, %s18
    %p33 = scmp.ge.s32.totalorder %s32, 1
    %s34 = scalar_select %p33, 0, %s32
    %s35 = sadd.s32 1, %s17
    %s36 = scalar_select %p33, %s35, %s17
    %p37 = scmp.ge.s32.totalorder %s36, 1
    %s38 = scalar_select %p37, 0, %s36
    %s39 = sadd.s32 1, %s16
    %s40 = scalar_select %p37, %s39, %s16
    %p41 = scmp.ge.s32.totalorder %s40, 4
    %s42 = scalar_select %p41, 0, %s40
    %s43 = ssub.s32 %s16, %s42
    %s44 = ssub.s32 %s17, %s38
    %s45 = sor.u32 %s43, %s44
    %s46 = ssub.s32 %s19, %s30
    %s47 = sor.u32 %s45, %s46
    %p48 = scmp.eq.s32.totalorder %s47, 0
    %s50 = sadd.s32 %s49, 1
    %s51 = scalar_select %p48, %s49, %s50
    %p54 = pneg %p48
    %p55 = scmp.eq.s32.totalorder %s9, 3
    %p56 = por %p54, %p55
    %p57 = scmp.ne.s32.totalorder %s49, %s52
    %p58 = scmp.eq.s32.totalorder %s9, 0
    %p59 = por %p57, %p58
    %p60 = scmp.ne.s32.totalorder %s49, %s52
    %p61 = scmp.eq.s32.totalorder %s14, 3
    %p62 = por %p60, %p61
    %p63 = scmp.ne.s32.totalorder %s52, %s53
    %p64 = scmp.eq.s32.totalorder %s14, 0
    %p65 = por %p63, %p64
    %p66 = scmp.ne.s32.totalorder %s52, %s53
    %p67 = scmp.eq.s32.totalorder %s15, 3
    %p68 = por %p66, %p67
    %p70 = scmp.ne.s32.totalorder %s53, %s69
    %p71 = scmp.eq.s32.totalorder %s15, 0
    %p72 = por %p70, %p71
    %s73 = ssub.s32 %s16, %s42
    %s74 = ssub.s32 %s19, %s30
    %s75 = sor.u32 %s73, %s74
    %s76 = ssub.s32 %s18, %s34
    %s77 = sor.u32 %s75, %s76
    %p78 = scmp.eq.s32.totalorder %s77, 0
    %s80 = sadd.s32 %s79, 1
    %s81 = scalar_select %p78, %s79, %s80
    %p84 = pneg %p78
    %p85 = scmp.eq.s32.totalorder %s9, 3
    %p86 = por %p84, %p85
    %p87 = scmp.ne.s32.totalorder %s79, %s82
    %p88 = scmp.eq.s32.totalorder %s9, 0
    %p89 = por %p87, %p88
    %p90 = scmp.ne.s32.totalorder %s79, %s82
    %p91 = scmp.eq.s32.totalorder %s14, 3
    %p92 = por %p90, %p91
    %p93 = scmp.ne.s32.totalorder %s82, %s83
    %p94 = scmp.eq.s32.totalorder %s14, 0
    %p95 = por %p93, %p94
    %p96 = scmp.ne.s32.totalorder %s82, %s83
    %p97 = scmp.eq.s32.totalorder %s15, 3
    %p98 = por %p96, %p97
    %p100 = scmp.ne.s32.totalorder %s83, %s99
    %p101 = scmp.eq.s32.totalorder %s15, 0
    %p102 = por %p100, %p101
    %s103 = ssub.s32 %s18, %s34
    %p104 = scmp.eq.s32.totalorder %s103, 0
    %s106 = sadd.s32 %s105, 1
    %s107 = scalar_select %p104, %s105, %s106
    %p110 = pneg %p104
    %p111 = scmp.eq.s32.totalorder %s9, 3
    %p112 = por %p110, %p111
    %p113 = scmp.ne.s32.totalorder %s105, %s108
    %p114 = scmp.eq.s32.totalorder %s9, 0
    %p115 = por %p113, %p114
    %p116 = scmp.ne.s32.totalorder %s105, %s108
    %p117 = scmp.eq.s32.totalorder %s14, 3
    %p118 = por %p116, %p117
    %p119 = scmp.ne.s32.totalorder %s108, %s109
    %p120 = scmp.eq.s32.totalorder %s14, 0
    %p121 = por %p119, %p120
    %p122 = scmp.ne.s32.totalorder %s108, %s109
    %p123 = scmp.eq.s32.totalorder %s15, 3
    %p124 = por %p122, %p123
    %p126 = scmp.ne.s32.totalorder %s109, %s125
    %p127 = scmp.eq.s32.totalorder %s15, 0
    %p128 = por %p126, %p127
    %s129 = ssub.s32 %s16, %s42
    %s130 = ssub.s32 %s17, %s38
    %s131 = sor.u32 %s129, %s130
    %s132 = ssub.s32 %s18, %s34
    %s133 = sor.u32 %s131, %s132
    %p134 = scmp.eq.s32.totalorder %s133, 0
    %s136 = sadd.s32 %s135, 1
    %s137 = scalar_select %p134, %s135, %s136
    %p140 = pneg %p134
    %p141 = scmp.eq.s32.totalorder %s9, 3
    %p142 = por %p140, %p141
    %p143 = scmp.ne.s32.totalorder %s135, %s138
    %p144 = scmp.eq.s32.totalorder %s9, 0
    %p145 = por %p143, %p144
    %p146 = scmp.ne.s32.totalorder %s135, %s138
    %p147 = scmp.eq.s32.totalorder %s14, 3
    %p148 = por %p146, %p147
    %p149 = scmp.ne.s32.totalorder %s138, %s139
    %p150 = scmp.eq.s32.totalorder %s14, 0
    %p151 = por %p149, %p150
    %p152 = scmp.ne.s32.totalorder %s138, %s139
    %p153 = scmp.eq.s32.totalorder %s15, 3
    %p154 = por %p152, %p153
    %p156 = scmp.ne.s32.totalorder %s139, %s155
    %p157 = scmp.eq.s32.totalorder %s15, 0
    %p158 = por %p156, %p157
    %p159 = scmp.le.s32.totalorder 1, %s9
    %p160 = scmp.lt.s32.totalorder %s9, 5
    %p161 = pnand %p159, %p160
    %p162 = pneg %p161
    // Predicated region
    $region9: #{vae_forward.19} parent=5 // pred_check
      _
    $region10: #{vae_forward.19} parent=5 // pred_check_branch
      %164 = sbr.rel (%p161) target = $region12
    $region11: #{vae_forward.19} parent=5 // pred_region
      %s165 = ssub.s32 %s9, 1
      // Predicated region
      $region13: #{vae_forward.19} parent=11 // pred_check
        %p166 = pneg %p121
      $region14: #{vae_forward.19} parent=11 // pred_check_branch
        %168 = sbr.rel (%p166) target = $region16
      $region15: #{vae_forward.19} parent=11 // pred_region
        %p169 = scmp.lt.s32.totalorder %s22, 0
        %s170 = scalar_select %p169, %s22, 0
        %s171 = scalar_lea.vmem %s2, %s170
      $region16: #{vae_forward.19} parent=11 // pred_fallthru
        _
    $region12: #{vae_forward.19} parent=5 // pred_fallthru
      _
    %p172 = scmp.lt.s32.totalorder %s9, 4
    // Predicated region
    $region17: #{vae_forward.19} parent=5 // pred_check
      %p173 = pneg %p172
    $region18: #{vae_forward.19} parent=5 // pred_check_branch
      %175 = sbr.rel (%p173) target = $region20
    $region19: #{vae_forward.19} parent=5 // pred_region
      // Predicated region
      $region21: #{vae_forward.19} parent=19 // pred_check
        %p176 = pneg %p59
      $region22: #{vae_forward.19} parent=19 // pred_check_branch
        %178 = sbr.rel (%p176) target = $region24
      $region23: #{vae_forward.19} parent=19 // pred_region
        %s179 = smul.u32 16, %s17
        %p180 = scmp.lt.s32.totalorder %s16, 3
        %s181 = scalar_select %p180, %s16, 3
        %p182 = scmp.lt.s32.totalorder %s179, 15
        %s183 = scalar_select %p182, %s179, 15
        %p184 = scmp.lt.s32.totalorder %s19, 0
        %s185 = scalar_select %p184, %s19, 0
        %s186 = sadd.s32 %s185, %s183
        %s187 = smul.addr %s181, 16
        %s188 = sadd.s32 %s186, %s187
        %s189 = smul.addr %s188, 4
        %s190 = scalar_lea.vmem %s0, %s189
        %s191 = smul.u32 16, %s17
      $region24: #{vae_forward.19} parent=19 // pred_fallthru
        _
      // Predicated region
      $region25: #{vae_forward.19} parent=19 // pred_check
        %p192 = pneg %p89
      $region26: #{vae_forward.19} parent=19 // pred_check_branch
        %194 = sbr.rel (%p192) target = $region28
      $region27: #{vae_forward.19} parent=19 // pred_region
        %s195 = smul.u32 16, %s19
        %p196 = scmp.lt.s32.totalorder %s16, 3
        %s197 = scalar_select %p196, %s16, 3
        %p198 = scmp.lt.s32.totalorder %s195, 15
        %s199 = scalar_select %p198, %s195, 15
        %p200 = scmp.lt.s32.totalorder %s18, 0
        %s201 = scalar_select %p200, %s18, 0
        %s202 = sadd.s32 %s201, %s199
        %s203 = smul.addr %s197, 16
        %s204 = sadd.s32 %s202, %s203
        %s205 = smul.addr %s204, 4
        %s206 = scalar_lea.vmem %s1, %s205
        %s207 = smul.u32 16, %s19
      $region28: #{vae_forward.19} parent=19 // pred_fallthru
        _
    $region20: #{vae_forward.19} parent=5 // pred_fallthru
      _
    %p208 = scmp.le.s32.totalorder 1, %s9
    %p209 = scmp.lt.s32.totalorder %s9, 5
    %p210 = pnand %p208, %p209
    %p211 = pneg %p210
    // Predicated region
    $region29: #{vae_forward.19} parent=5 // pred_check
      _
    $region30: #{vae_forward.19} parent=5 // pred_check_branch
      %213 = sbr.rel (%p210) target = $region32
    $region31: #{vae_forward.19} parent=5 // pred_region
      %s214 = ssub.s32 %s9, 1
      %s215 = smul.u32 16, %s21
      %p216 = scmp.lt.s32.totalorder %s20, 3
      %s217 = scalar_select %p216, %s20, 3
      %p218 = scmp.lt.s32.totalorder %s215, 15
      %s219 = scalar_select %p218, %s215, 15
      %p220 = scmp.lt.s32.totalorder %s23, 0
      %s221 = scalar_select %p220, %s23, 0
      %s222 = sadd.s32 %s221, %s219
      %s223 = smul.addr %s217, 16
      %s224 = sadd.s32 %s222, %s223
      %s225 = smul.addr %s224, 4
      %s226 = scalar_lea.vmem %s0, %s225
      %p227 = pneg %p65
      %p228 = pneg %p62
      %s229 = smul.u32 16, %s23
      %p230 = scmp.lt.s32.totalorder %s20, 3
      %s231 = scalar_select %p230, %s20, 3
      %p232 = scmp.lt.s32.totalorder %s229, 15
      %s233 = scalar_select %p232, %s229, 15
      %p234 = scmp.lt.s32.totalorder %s22, 0
      %s235 = scalar_select %p234, %s22, 0
      %s236 = sadd.s32 %s235, %s233
      %s237 = smul.addr %s231, 16
      %s238 = sadd.s32 %s236, %s237
      %s239 = smul.addr %s238, 4
      %s240 = scalar_lea.vmem %s1, %s239
      %p241 = pneg %p95
      %p242 = pneg %p92
      %p243 = scmp.lt.s32.totalorder %s22, 0
      %s244 = scalar_select %p243, %s22, 0
      %s245 = scalar_lea.vmem %s2, %s244
      %p246 = pneg %p121
      %p247 = pneg %p118
      %p248 = pneg %p151
      %p249 = pneg %p148
      %s250 = smul.u32 16, %s21
      %p251 = scmp.lt.s32.totalorder %s20, 3
      %s252 = scalar_select %p251, %s20, 3
      %p253 = scmp.lt.s32.totalorder %s250, 15
      %s254 = scalar_select %p253, %s250, 15
      %p255 = scmp.lt.s32.totalorder %s22, 0
      %s256 = scalar_select %p255, %s22, 0
      %s257 = sadd.s32 %s256, %s254
      %s258 = smul.addr %s252, 16
      %s259 = sadd.s32 %s257, %s258
      %s260 = smul.addr %s259, 8
      %s261 = scalar_lea.vmem %s3, %s260
      %s262 = smul.u32 16, %s21
      %p263 = scmp.lt.s32.totalorder %s20, 3
      %s264 = scalar_select %p263, %s20, 3
      %p265 = scmp.lt.s32.totalorder %s262, 15
      %s266 = scalar_select %p265, %s262, 15
      %p267 = scmp.lt.s32.totalorder %s23, 0
      %s268 = scalar_select %p267, %s23, 0
      %s269 = sadd.s32 %s268, %s266
      %s270 = smul.addr %s264, 16
      %s271 = sadd.s32 %s269, %s270
      %s272 = smul.addr %s271, 4
      %s273 = scalar_lea.vmem %s0, %s272
      %s274 = smul.u32 16, %s21
      %s275 = smul.u32 16, %s23
      %p276 = scmp.lt.s32.totalorder %s20, 3
      %s277 = scalar_select %p276, %s20, 3
      %p278 = scmp.lt.s32.totalorder %s275, 15
      %s279 = scalar_select %p278, %s275, 15
      %p280 = scmp.lt.s32.totalorder %s22, 0
      %s281 = scalar_select %p280, %s22, 0
      %s282 = sadd.s32 %s281, %s279
      %s283 = smul.addr %s277, 16
      %s284 = sadd.s32 %s282, %s283
      %s285 = smul.addr %s284, 4
      %s286 = scalar_lea.vmem %s1, %s285
      %s287 = smul.u32 16, %s23
      %p288 = scmp.lt.s32.totalorder %s22, 0
      %s289 = scalar_select %p288, %s22, 0
      %s290 = scalar_lea.vmem %s2, %s289
      %s291 = smul.u32 16, %s21
      %p292 = scmp.lt.s32.totalorder %s20, 3
      %s293 = scalar_select %p292, %s20, 3
      %p294 = scmp.lt.s32.totalorder %s291, 15
      %s295 = scalar_select %p294, %s291, 15
      %p296 = scmp.lt.s32.totalorder %s22, 0
      %s297 = scalar_select %p296, %s22, 0
      %s298 = sadd.s32 %s297, %s295
      %s299 = smul.addr %s293, 16
      %s300 = sadd.s32 %s298, %s299
      %s301 = smul.addr %s300, 8
      %s302 = scalar_lea.vmem %s3, %s301
      %s303 = smul.u32 16, %s21
      %p305 = scmp.eq.s32.totalorder %s23, 0
      // Predicated region
      $region33: #{vae_forward.19} parent=31 // pred_check
        %p306 = pneg %p305
      $region34: #{vae_forward.19} parent=31 // pred_check_branch
        %308 = sbr.rel (%p306) target = $region36
      $region35: #{vae_forward.19} parent=31 // pred_region
        %309 = vst [vmem:[#allocation2] sm:$0xff] 0.0
        %310 = vst [vmem:[#allocation2 + $0x8] sm:$0xff] 0.0
        %311 = vst [vmem:[#allocation2 + $0x10] sm:$0xff] 0.0
        %312 = vst [vmem:[#allocation2 + $0x18] sm:$0xff] 0.0
        %313 = vst [vmem:[#allocation2 + $0x20] sm:$0xff] 0.0
        %314 = vst [vmem:[#allocation2 + $0x28] sm:$0xff] 0.0
        %315 = vst [vmem:[#allocation2 + $0x30] sm:$0xff] 0.0
        %316 = vst [vmem:[#allocation2 + $0x38] sm:$0xff] 0.0
        %317 = vst [vmem:[#allocation2 + $0x40] sm:$0xff] 0.0
        %318 = vst [vmem:[#allocation2 + $0x48] sm:$0xff] 0.0
        %319 = vst [vmem:[#allocation2 + $0x50] sm:$0xff] 0.0
        %320 = vst [vmem:[#allocation2 + $0x58] sm:$0xff] 0.0
        %321 = vst [vmem:[#allocation2 + $0x60] sm:$0xff] 0.0
        %322 = vst [vmem:[#allocation2 + $0x68] sm:$0xff] 0.0
        %323 = vst [vmem:[#allocation2 + $0x70] sm:$0xff] 0.0
        %324 = vst [vmem:[#allocation2 + $0x78] sm:$0xff] 0.0
      $region36: #{vae_forward.19} parent=31 // pred_fallthru
        _
      %v325 = vld [vmem:[#allocation2] sm:$0xff]
      %v326 = vld [vmem:[#allocation2 + $0x8] sm:$0xff]
      %v327 = vld [vmem:[#allocation2 + $0x10] sm:$0xff]
      %v328 = vld [vmem:[#allocation2 + $0x18] sm:$0xff]
      %v329 = vld [vmem:[#allocation2 + $0x20] sm:$0xff]
      %v330 = vld [vmem:[#allocation2 + $0x28] sm:$0xff]
      %v331 = vld [vmem:[#allocation2 + $0x30] sm:$0xff]
      %v332 = vld [vmem:[#allocation2 + $0x38] sm:$0xff]
      %v333 = vld [vmem:[#allocation2 + $0x40] sm:$0xff]
      %v334 = vld [vmem:[#allocation2 + $0x48] sm:$0xff]
      %v335 = vld [vmem:[#allocation2 + $0x50] sm:$0xff]
      %v336 = vld [vmem:[#allocation2 + $0x58] sm:$0xff]
      %v337 = vld [vmem:[#allocation2 + $0x60] sm:$0xff]
      %v338 = vld [vmem:[#allocation2 + $0x68] sm:$0xff]
      %v339 = vld [vmem:[#allocation2 + $0x70] sm:$0xff]
      %v340 = vld [vmem:[#allocation2 + $0x78] sm:$0xff]
      %v341 = vld [vmem:[%s273] sm:$0xf]
      %v342 = vld [vmem:[%s273 + $0x4] sm:$0xf]
      %v343 = vld [vmem:[%s273 + $0x8] sm:$0xf]
      %v344 = vld [vmem:[%s273 + $0xc] sm:$0xf]
      %v345 = vld [vmem:[%s273 + $0x10] sm:$0xf]
      %v346 = vld [vmem:[%s273 + $0x14] sm:$0xf]
      %v347 = vld [vmem:[%s273 + $0x18] sm:$0xf]
      %v348 = vld [vmem:[%s273 + $0x1c] sm:$0xf]
      %v349 = vld [vmem:[%s273 + $0x20] sm:$0xf]
      %v350 = vld [vmem:[%s273 + $0x24] sm:$0xf]
      %v351 = vld [vmem:[%s273 + $0x28] sm:$0xf]
      %v352 = vld [vmem:[%s273 + $0x2c] sm:$0xf]
      %v353 = vld [vmem:[%s273 + $0x30] sm:$0xf]
      %v354 = vld [vmem:[%s273 + $0x34] sm:$0xf]
      %v355 = vld [vmem:[%s273 + $0x38] sm:$0xf]
      %v356 = vld [vmem:[%s273 + $0x3c] sm:$0xf]
      %v357 = vld [vmem:[%s286] sm:$0xf]
      %v358 = vld [vmem:[%s286 + $0x4] sm:$0xf]
      %v359 = vld [vmem:[%s286 + $0x8] sm:$0xf]
      %v360 = vld [vmem:[%s286 + $0xc] sm:$0xf]
      %v361 = vld [vmem:[%s286 + $0x10] sm:$0xf]
      %v362 = vld [vmem:[%s286 + $0x14] sm:$0xf]
      %v363 = vld [vmem:[%s286 + $0x18] sm:$0xf]
      %v364 = vld [vmem:[%s286 + $0x1c] sm:$0xf]
      %v365 = vld [vmem:[%s286 + $0x20] sm:$0xf]
      %v366 = vld [vmem:[%s286 + $0x24] sm:$0xf]
      %v367 = vld [vmem:[%s286 + $0x28] sm:$0xf]
      %v368 = vld [vmem:[%s286 + $0x2c] sm:$0xf]
      %v369 = vld [vmem:[%s286 + $0x30] sm:$0xf]
      %v370 = vld [vmem:[%s286 + $0x34] sm:$0xf]
      %v371 = vld [vmem:[%s286 + $0x38] sm:$0xf]
      %v372 = vld [vmem:[%s286 + $0x3c] sm:$0xf]
      %v389 = vunpack.c.l.b16 %v341
      %v390 = vunpack.c.l.b16 %v342
      %v391 = vunpack.c.l.b16 %v343
      %v392 = vunpack.c.l.b16 %v344
      %v393 = vunpack.c.l.b16 %v345
      %v394 = vunpack.c.l.b16 %v346
      %v395 = vunpack.c.l.b16 %v347
      %v396 = vunpack.c.l.b16 %v348
      %v397 = vunpack.c.l.b16 %v349
      %v398 = vunpack.c.l.b16 %v350
      %v399 = vunpack.c.l.b16 %v351
      %v400 = vunpack.c.l.b16 %v352
      %v401 = vunpack.c.l.b16 %v353
      %v402 = vunpack.c.l.b16 %v354
      %v403 = vunpack.c.l.b16 %v355
      %v404 = vunpack.c.l.b16 %v356
      %v405 = vpack.c.b16 %v390, %v389
      %v406 = vpack.c.b16 %v392, %v391
      %v407 = vpack.c.b16 %v394, %v393
      %v408 = vpack.c.b16 %v396, %v395
      %v409 = vpack.c.b16 %v398, %v397
      %v410 = vpack.c.b16 %v400, %v399
      %v411 = vpack.c.b16 %v402, %v401
      %v412 = vpack.c.b16 %v404, %v403
      %v437 = vunpack.c.l.b16 %v357
      %v438 = vunpack.c.l.b16 %v358
      %v439 = vunpack.c.l.b16 %v359
      %v440 = vunpack.c.l.b16 %v360
      %v441 = vunpack.c.l.b16 %v361
      %v442 = vunpack.c.l.b16 %v362
      %v443 = vunpack.c.l.b16 %v363
      %v444 = vunpack.c.l.b16 %v364
      %v445 = vunpack.c.l.b16 %v365
      %v446 = vunpack.c.l.b16 %v366
      %v447 = vunpack.c.l.b16 %v367
      %v448 = vunpack.c.l.b16 %v368
      %v449 = vunpack.c.l.b16 %v369
      %v450 = vunpack.c.l.b16 %v370
      %v451 = vunpack.c.l.b16 %v371
      %v452 = vunpack.c.l.b16 %v372
      %v453 = vpack.c.b16 %v438, %v437
      %v454 = vpack.c.b16 %v440, %v439
      %v455 = vpack.c.b16 %v442, %v441
      %v456 = vpack.c.b16 %v444, %v443
      %v457 = vpack.c.b16 %v446, %v445
      %v458 = vpack.c.b16 %v448, %v447
      %v459 = vpack.c.b16 %v450, %v449
      %v460 = vpack.c.b16 %v452, %v451
      %469 = vmatprep.subr.bf16.mxu0 0
      %470 = vmatpush1.bf16.msra.mxu0 %v460
      %471 = vmatprep.subr.bf16.mxu0 0
      %472 = vmatpush1.bf16.msra.mxu0 %v459
      %473 = vmatprep.subr.bf16.mxu0 0
      %474 = vmatpush1.bf16.msra.mxu0 %v458
      %475 = vmatprep.subr.bf16.mxu0 0
      %476 = vmatpush1.bf16.msra.mxu0 %v457
      %477 = vmatprep.subr.bf16.mxu0 0
      %478 = vmatpush1.bf16.msra.mxu0 %v456
      %479 = vmatprep.subr.bf16.mxu0 0
      %480 = vmatpush1.bf16.msra.mxu0 %v455
      %481 = vmatprep.subr.bf16.mxu0 0
      %482 = vmatpush1.bf16.msra.mxu0 %v454
      %483 = vmatprep.subr.bf16.mxu0 0
      %484 = vmatpush1.bf16.msra.mxu0 %v453
      %485 = vmatprep.subr.bf16.mxu0 0
      %486 = vmatpush2.bf16.msra.mxu0 0
      %487 = vmatprep.subr.bf16.mxu0 0
      %488 = vmatpush2.bf16.msra.mxu0 0
      %489 = vmatprep.subr.bf16.mxu0 0
      %490 = vmatpush2.bf16.msra.mxu0 0
      %491 = vmatprep.subr.bf16.mxu0 0
      %492 = vmatpush2.bf16.msra.mxu0 0
      %493 = vmatprep.subr.bf16.mxu0 0
      %494 = vmatpush2.bf16.msra.mxu0 0
      %495 = vmatprep.subr.bf16.mxu0 0
      %496 = vmatpush2.bf16.msra.mxu0 0
      %497 = vmatprep.subr.bf16.mxu0 0
      %498 = vmatpush2.bf16.msra.mxu0 0
      %499 = vmatprep.subr.bf16.mxu0 0
      %500 = vmatpush2.bf16.msra.mxu0 0
      %501 = vmatprep.mubr.bf16.mxu0 0
      %502 = vmatmul.mubr.bf16.gmra.mxu0 %v405
      %v503 = vpop.f32.mrf.mxu0
      %v504 = vadd.f32 0.0, %v503
      %v505 = vpop.f32.mrf.mxu0
      %v506 = vpop.f32.mrf.mxu0
      %v507 = vadd.f32 0.0, %v506
      %v508 = vpop.f32.mrf.mxu0
      %509 = vmatprep.mubr.bf16.mxu0 0
      %510 = vmatmul.mubr.bf16.gmra.mxu0 %v406
      %v511 = vpop.f32.mrf.mxu0
      %v512 = vadd.f32 0.0, %v511
      %v513 = vpop.f32.mrf.mxu0
      %v514 = vpop.f32.mrf.mxu0
      %v515 = vadd.f32 0.0, %v514
      %v516 = vpop.f32.mrf.mxu0
      %517 = vmatprep.mubr.bf16.mxu0 0
      %518 = vmatmul.mubr.bf16.gmra.mxu0 %v407
      %v519 = vpop.f32.mrf.mxu0
      %v520 = vadd.f32 0.0, %v519
      %v521 = vpop.f32.mrf.mxu0
      %v522 = vpop.f32.mrf.mxu0
      %v523 = vadd.f32 0.0, %v522
      %v524 = vpop.f32.mrf.mxu0
      %525 = vmatprep.mubr.bf16.mxu0 0
      %526 = vmatmul.mubr.bf16.gmra.mxu0 %v408
      %v527 = vpop.f32.mrf.mxu0
      %v528 = vadd.f32 0.0, %v527
      %v529 = vpop.f32.mrf.mxu0
      %v530 = vpop.f32.mrf.mxu0
      %v531 = vadd.f32 0.0, %v530
      %v532 = vpop.f32.mrf.mxu0
      %533 = vmatprep.mubr.bf16.mxu0 0
      %534 = vmatmul.mubr.bf16.gmra.mxu0 %v409
      %v535 = vpop.f32.mrf.mxu0
      %v536 = vadd.f32 0.0, %v535
      %v537 = vpop.f32.mrf.mxu0
      %v538 = vpop.f32.mrf.mxu0
      %v539 = vadd.f32 0.0, %v538
      %v540 = vpop.f32.mrf.mxu0
      %541 = vmatprep.mubr.bf16.mxu0 0
      %542 = vmatmul.mubr.bf16.gmra.mxu0 %v410
      %v543 = vpop.f32.mrf.mxu0
      %v544 = vadd.f32 0.0, %v543
      %v545 = vpop.f32.mrf.mxu0
      %v546 = vpop.f32.mrf.mxu0
      %v547 = vadd.f32 0.0, %v546
      %v548 = vpop.f32.mrf.mxu0
      %549 = vmatprep.mubr.bf16.mxu0 0
      %550 = vmatmul.mubr.bf16.gmra.mxu0 %v411
      %v551 = vpop.f32.mrf.mxu0
      %v552 = vadd.f32 0.0, %v551
      %v553 = vpop.f32.mrf.mxu0
      %v554 = vpop.f32.mrf.mxu0
      %v555 = vadd.f32 0.0, %v554
      %v556 = vpop.f32.mrf.mxu0
      %557 = vmatprep.mubr.bf16.mxu0 0
      %558 = vmatmul.mubr.bf16.gmra.mxu0 %v412
      %v559 = vpop.f32.mrf.mxu0
      %v560 = vadd.f32 0.0, %v559
      %v561 = vpop.f32.mrf.mxu0
      %v562 = vpop.f32.mrf.mxu0
      %v563 = vadd.f32 0.0, %v562
      %v564 = vpop.f32.mrf.mxu0
      %565 = vdwg.mxu0
      %v566 = vadd.f32 %v325, %v504
      %v567 = vadd.f32 %v326, %v507
      %v568 = vadd.f32 %v327, %v512
      %v569 = vadd.f32 %v328, %v515
      %v570 = vadd.f32 %v329, %v520
      %v571 = vadd.f32 %v330, %v523
      %v572 = vadd.f32 %v331, %v528
      %v573 = vadd.f32 %v332, %v531
      %v574 = vadd.f32 %v333, %v536
      %v575 = vadd.f32 %v334, %v539
      %v576 = vadd.f32 %v335, %v544
      %v577 = vadd.f32 %v336, %v547
      %v578 = vadd.f32 %v337, %v552
      %v579 = vadd.f32 %v338, %v555
      %v580 = vadd.f32 %v339, %v560
      %v581 = vadd.f32 %v340, %v563
      %582 = vst [vmem:[#allocation2] sm:$0xff] %v566
      %583 = vst [vmem:[#allocation2 + $0x8] sm:$0xff] %v567
      %584 = vst [vmem:[#allocation2 + $0x10] sm:$0xff] %v568
      %585 = vst [vmem:[#allocation2 + $0x18] sm:$0xff] %v569
      %586 = vst [vmem:[#allocation2 + $0x20] sm:$0xff] %v570
      %587 = vst [vmem:[#allocation2 + $0x28] sm:$0xff] %v571
      %588 = vst [vmem:[#allocation2 + $0x30] sm:$0xff] %v572
      %589 = vst [vmem:[#allocation2 + $0x38] sm:$0xff] %v573
      %590 = vst [vmem:[#allocation2 + $0x40] sm:$0xff] %v574
      %591 = vst [vmem:[#allocation2 + $0x48] sm:$0xff] %v575
      %592 = vst [vmem:[#allocation2 + $0x50] sm:$0xff] %v576
      %593 = vst [vmem:[#allocation2 + $0x58] sm:$0xff] %v577
      %594 = vst [vmem:[#allocation2 + $0x60] sm:$0xff] %v578
      %595 = vst [vmem:[#allocation2 + $0x68] sm:$0xff] %v579
      %596 = vst [vmem:[#allocation2 + $0x70] sm:$0xff] %v580
      %597 = vst [vmem:[#allocation2 + $0x78] sm:$0xff] %v581
      // Predicated region
      $region37: #{vae_forward.19} parent=31 // pred_check
        %p598 = pneg %p305
      $region38: #{vae_forward.19} parent=31 // pred_check_branch
        %600 = sbr.rel (%p598) target = $region40
      $region39: #{vae_forward.19} parent=31 // pred_region
        %v601 = vld [vmem:[#allocation2] sm:$0xff]
        %v602 = vld [vmem:[#allocation2 + $0x8] sm:$0xff]
        %v603 = vld [vmem:[#allocation2 + $0x10] sm:$0xff]
        %v604 = vld [vmem:[#allocation2 + $0x18] sm:$0xff]
        %v605 = vld [vmem:[#allocation2 + $0x20] sm:$0xff]
        %v606 = vld [vmem:[#allocation2 + $0x28] sm:$0xff]
        %v607 = vld [vmem:[#allocation2 + $0x30] sm:$0xff]
        %v608 = vld [vmem:[#allocation2 + $0x38] sm:$0xff]
        %v609 = vld [vmem:[#allocation2 + $0x40] sm:$0xff]
        %v610 = vld [vmem:[#allocation2 + $0x48] sm:$0xff]
        %v611 = vld [vmem:[#allocation2 + $0x50] sm:$0xff]
        %v612 = vld [vmem:[#allocation2 + $0x58] sm:$0xff]
        %v613 = vld [vmem:[#allocation2 + $0x60] sm:$0xff]
        %v614 = vld [vmem:[#allocation2 + $0x68] sm:$0xff]
        %v615 = vld [vmem:[#allocation2 + $0x70] sm:$0xff]
        %v616 = vld [vmem:[#allocation2 + $0x78] sm:$0xff]
        %v617 = vld [vmem:[%s290] sm:$0x1]
        %v619 = vlaneseq
        %v620 = vshrl.u32 %v619, 7
        %v621 = vsub.s32 0, %v620
        %v622 = vrot.slane %v617, %v621
        %v624 = vadd.f32 %v601, %v622
        %v625 = vadd.f32 %v602, %v622
        %v626 = vadd.f32 %v603, %v622
        %v627 = vadd.f32 %v604, %v622
        %v628 = vadd.f32 %v605, %v622
        %v629 = vadd.f32 %v606, %v622
        %v630 = vadd.f32 %v607, %v622
        %v631 = vadd.f32 %v608, %v622
        %v632 = vadd.f32 %v609, %v622
        %v633 = vadd.f32 %v610, %v622
        %v634 = vadd.f32 %v611, %v622
        %v635 = vadd.f32 %v612, %v622
        %v636 = vadd.f32 %v613, %v622
        %v637 = vadd.f32 %v614, %v622
        %v638 = vadd.f32 %v615, %v622
        %v639 = vadd.f32 %v616, %v622
        %v640 = vxor.u32 %v624, 2147483648
        %v641 = vxor.u32 %v625, 2147483648
        %v642 = vxor.u32 %v626, 2147483648
        %v643 = vxor.u32 %v627, 2147483648
        %v644 = vxor.u32 %v628, 2147483648
        %v645 = vxor.u32 %v629, 2147483648
        %v646 = vxor.u32 %v630, 2147483648
        %v647 = vxor.u32 %v631, 2147483648
        %v648 = vxor.u32 %v632, 2147483648
        %v649 = vxor.u32 %v633, 2147483648
        %v650 = vxor.u32 %v634, 2147483648
        %v651 = vxor.u32 %v635, 2147483648
        %v652 = vxor.u32 %v636, 2147483648
        %v653 = vxor.u32 %v637, 2147483648
        %v654 = vxor.u32 %v638, 2147483648
        %v655 = vxor.u32 %v639, 2147483648
        %v656 = vmul.f32 %v640, 1.442695
        %v657 = vpow.pop %v656
        %v658 = vmul.f32 %v641, 1.442695
        %v659 = vpow.pop %v658
        %v660 = vmul.f32 %v642, 1.442695
        %v661 = vpow.pop %v660
        %v662 = vmul.f32 %v643, 1.442695
        %v663 = vpow.pop %v662
        %v664 = vmul.f32 %v644, 1.442695
        %v665 = vpow.pop %v664
        %v666 = vmul.f32 %v645, 1.442695
        %v667 = vpow.pop %v666
        %v668 = vmul.f32 %v646, 1.442695
        %v669 = vpow.pop %v668
        %v670 = vmul.f32 %v647, 1.442695
        %v671 = vpow.pop %v670
        %v672 = vmul.f32 %v648, 1.442695
        %v673 = vpow.pop %v672
        %v674 = vmul.f32 %v649, 1.442695
        %v675 = vpow.pop %v674
        %v676 = vmul.f32 %v650, 1.442695
        %v677 = vpow.pop %v676
        %v678 = vmul.f32 %v651, 1.442695
        %v679 = vpow.pop %v678
        %v680 = vmul.f32 %v652, 1.442695
        %v681 = vpow.pop %v680
        %v682 = vmul.f32 %v653, 1.442695
        %v683 = vpow.pop %v682
        %v684 = vmul.f32 %v654, 1.442695
        %v685 = vpow.pop %v684
        %v686 = vmul.f32 %v655, 1.442695
        %v687 = vpow.pop %v686
        %v688 = vadd.f32 %v657, 1.0
        %v689 = vadd.f32 %v659, 1.0
        %v690 = vadd.f32 %v661, 1.0
        %v691 = vadd.f32 %v663, 1.0
        %v692 = vadd.f32 %v665, 1.0
        %v693 = vadd.f32 %v667, 1.0
        %v694 = vadd.f32 %v669, 1.0
        %v695 = vadd.f32 %v671, 1.0
        %v696 = vadd.f32 %v673, 1.0
        %v697 = vadd.f32 %v675, 1.0
        %v698 = vadd.f32 %v677, 1.0
        %v699 = vadd.f32 %v679, 1.0
        %v700 = vadd.f32 %v681, 1.0
        %v701 = vadd.f32 %v683, 1.0
        %v702 = vadd.f32 %v685, 1.0
        %v703 = vadd.f32 %v687, 1.0
        %v704 = vrcp.pop %v688
        %v705 = vmul.f32 1.0, %v704
        %v706 = vrcp.pop %v689
        %v707 = vmul.f32 1.0, %v706
        %v708 = vrcp.pop %v690
        %v709 = vmul.f32 1.0, %v708
        %v710 = vrcp.pop %v691
        %v711 = vmul.f32 1.0, %v710
        %v712 = vrcp.pop %v692
        %v713 = vmul.f32 1.0, %v712
        %v714 = vrcp.pop %v693
        %v715 = vmul.f32 1.0, %v714
        %v716 = vrcp.pop %v694
        %v717 = vmul.f32 1.0, %v716
        %v718 = vrcp.pop %v695
        %v719 = vmul.f32 1.0, %v718
        %v720 = vrcp.pop %v696
        %v721 = vmul.f32 1.0, %v720
        %v722 = vrcp.pop %v697
        %v723 = vmul.f32 1.0, %v722
        %v724 = vrcp.pop %v698
        %v725 = vmul.f32 1.0, %v724
        %v726 = vrcp.pop %v699
        %v727 = vmul.f32 1.0, %v726
        %v728 = vrcp.pop %v700
        %v729 = vmul.f32 1.0, %v728
        %v730 = vrcp.pop %v701
        %v731 = vmul.f32 1.0, %v730
        %v732 = vrcp.pop %v702
        %v733 = vmul.f32 1.0, %v732
        %v734 = vrcp.pop %v703
        %v735 = vmul.f32 1.0, %v734
        %736 = vst [vmem:[%s302] sm:$0xff] %v705
        %737 = vst [vmem:[%s302 + $0x8] sm:$0xff] %v707
        %738 = vst [vmem:[%s302 + $0x10] sm:$0xff] %v709
        %739 = vst [vmem:[%s302 + $0x18] sm:$0xff] %v711
        %740 = vst [vmem:[%s302 + $0x20] sm:$0xff] %v713
        %741 = vst [vmem:[%s302 + $0x28] sm:$0xff] %v715
        %742 = vst [vmem:[%s302 + $0x30] sm:$0xff] %v717
        %743 = vst [vmem:[%s302 + $0x38] sm:$0xff] %v719
        %744 = vst [vmem:[%s302 + $0x40] sm:$0xff] %v721
        %745 = vst [vmem:[%s302 + $0x48] sm:$0xff] %v723
        %746 = vst [vmem:[%s302 + $0x50] sm:$0xff] %v725
        %747 = vst [vmem:[%s302 + $0x58] sm:$0xff] %v727
        %748 = vst [vmem:[%s302 + $0x60] sm:$0xff] %v729
        %749 = vst [vmem:[%s302 + $0x68] sm:$0xff] %v731
        %750 = vst [vmem:[%s302 + $0x70] sm:$0xff] %v733
        %751 = vst [vmem:[%s302 + $0x78] sm:$0xff] %v735
      $region40: #{vae_forward.19} parent=31 // pred_fallthru
        _
      %s752 = smul.u32 16, %s21
      %p753 = scmp.lt.s32.totalorder %s20, 3
      %s754 = scalar_select %p753, %s20, 3
      %p755 = scmp.lt.s32.totalorder %s752, 15
      %s756 = scalar_select %p755, %s752, 15
      %p757 = scmp.lt.s32.totalorder %s22, 0
      %s758 = scalar_select %p757, %s22, 0
      %s759 = sadd.s32 %s758, %s756
      %s760 = smul.addr %s754, 16
      %s761 = sadd.s32 %s759, %s760
      %s762 = smul.addr %s761, 8
      %s763 = scalar_lea.vmem %s3, %s762
      // Predicated region
      $region41: #{vae_forward.19} parent=31 // pred_check
        %p764 = pneg %p148
      $region42: #{vae_forward.19} parent=31 // pred_check_branch
        %766 = sbr.rel (%p764) target = $region44
      $region43: #{vae_forward.19} parent=31 // pred_region
        %s767 = smul.u32 16, %s21
      $region44: #{vae_forward.19} parent=31 // pred_fallthru
        _
    $region32: #{vae_forward.19} parent=5 // pred_fallthru
      _
    %p768 = scmp.le.s32.totalorder 2, %s9
    // Predicated region
    $region45: #{vae_forward.19} parent=5 // pred_check
      %p769 = pneg %p768
    $region46: #{vae_forward.19} parent=5 // pred_check_branch
      %771 = sbr.rel (%p769) target = $region48
    $region47: #{vae_forward.19} parent=5 // pred_region
      %s772 = ssub.s32 %s9, 2
      // Predicated region
      $region49: #{vae_forward.19} parent=47 // pred_check
        %p773 = pneg %p154
      $region50: #{vae_forward.19} parent=47 // pred_check_branch
        %775 = sbr.rel (%p773) target = $region52
      $region51: #{vae_forward.19} parent=47 // pred_region
        %s776 = smul.u32 16, %s25
        %p777 = scmp.lt.s32.totalorder %s24, 3
        %s778 = scalar_select %p777, %s24, 3
        %p779 = scmp.lt.s32.totalorder %s776, 15
        %s780 = scalar_select %p779, %s776, 15
        %p781 = scmp.lt.s32.totalorder %s26, 0
        %s782 = scalar_select %p781, %s26, 0
        %s783 = sadd.s32 %s782, %s780
        %s784 = smul.addr %s778, 16
        %s785 = sadd.s32 %s783, %s784
        %s786 = smul.addr %s785, 8
        %s787 = scalar_lea.vmem %s3, %s786
      $region52: #{vae_forward.19} parent=47 // pred_fallthru
        _
    $region48: #{vae_forward.19} parent=5 // pred_fallthru
      _
  $region6: #{vae_forward.19} parent=0 // loop_footer
    %s13 = sadd.s32 1, %s9
  $region7: #{vae_forward.19} parent=0 // loop_footer_branch
    %8 = sbr.rel target = $region3
  $region8: #{vae_forward.19} parent=0 // loop_exit
    _

</llo_original>
